<compile_context>
chip_gen: v6e
topology: v6e:2x2x1
jax: 0.10.0
libtpu: 0.0.40
codegen_flags: <defaults>
</compile_context>

<pallas_src>
import functools

import jax
import jax.numpy as jnp
import numpy as np
from jax.experimental import pallas as pl
from jax.experimental.pallas import tpu as pltpu


def _lrelu(y):
    return jnp.where(y > 0, y, 0.1 * y)


# ---------------------------------------------------------------------------
# Kernel 1: levels 5 & 4 (serial dependency chain, single grid step)
#   p5 = lrelu(c5 @ W5 * s5 + b5)
#   t4 = lrelu(c4 @ W4 * s4 + b4)
#   p4 = lrelu((G4 @ p5 + t4) @ Wsum4 * ssum4 + bsum4)
# ---------------------------------------------------------------------------
def _fpn_top_kernel(c5_ref, c4_ref,
                    w5_ref, s5_ref, b5_ref,
                    w4_ref, s4_ref, b4_ref,
                    wsum4_ref, ssum4_ref, bsum4_ref,
                    g4_ref,
                    p5_ref, p4f_ref, p4b_ref):
    p5 = _lrelu(jnp.dot(c5_ref[...], w5_ref[...],
                        preferred_element_type=jnp.float32)
                * s5_ref[...] + b5_ref[...])
    p5_ref[...] = p5

    t4 = _lrelu(jnp.dot(c4_ref[...], w4_ref[...],
                        preferred_element_type=jnp.float32)
                * s4_ref[...] + b4_ref[...])
    # nearest-2x upsample of p5 as a 0/1 gather-matrix matmul (MXU)
    up5 = jnp.dot(g4_ref[...], p5.astype(jnp.bfloat16),
                  preferred_element_type=jnp.float32)
    s4 = (up5 + t4).astype(jnp.bfloat16)

    p4 = _lrelu(jnp.dot(s4, wsum4_ref[...],
                        preferred_element_type=jnp.float32)
                * ssum4_ref[...] + bsum4_ref[...])
    p4f_ref[...] = p4                           # f32 (final output)
    p4b_ref[...] = p4.astype(jnp.bfloat16)      # bf16 (input to level-3 call)


# ---------------------------------------------------------------------------
# Kernel 2: level 3, tiled over rows (>=2 parallel tiles for v7x megacore)
#   p3_tile = lrelu((G3_tile @ p4 + lrelu(c3_tile @ W3 * s3 + b3))
#                   @ Wsum3 * ssum3 + bsum3)
# ---------------------------------------------------------------------------
def _fpn_p3_kernel(c3_ref, g3_ref, p4b_ref,
                   w3_ref, s3_ref, b3_ref,
                   wsum3_ref, ssum3_ref, bsum3_ref,
                   p3_ref):
    t3 = _lrelu(jnp.dot(c3_ref[...], w3_ref[...],
                        preferred_element_type=jnp.float32)
                * s3_ref[...] + b3_ref[...])
    up4 = jnp.dot(g3_ref[...], p4b_ref[...],
                  preferred_element_type=jnp.float32)
    s3 = (up4 + t3).astype(jnp.bfloat16)
    p3_ref[...] = _lrelu(jnp.dot(s3, wsum3_ref[...],
                                 preferred_element_type=jnp.float32)
                         * ssum3_ref[...] + bsum3_ref[...])


# ---------------------------------------------------------------------------
# Helpers
# ---------------------------------------------------------------------------
def _upsample_matrix_np(n, h, w):
    """0/1 matrix G with shape (n*2h*2w, n*h*w): (G @ x) == nearest-2x-upsample
    of x laid out as flattened NHWC rows.  Built with numpy at trace time, so
    it is embedded as a constant (no runtime ops)."""
    hh, ww = 2 * h, 2 * w
    r = np.arange(n * hh * ww)
    b, rem = r // (hh * ww), r % (hh * ww)
    ho, wo = rem // ww, rem % ww
    src = b * (h * w) + (ho // 2) * w + (wo // 2)
    g = np.zeros((n * hh * ww, n * h * w), np.float32)
    g[np.arange(r.size), src] = 1.0
    return jnp.asarray(g, jnp.bfloat16)


def _full_spec(arr):
    return pl.BlockSpec(arr.shape, lambda i: (0, 0))


def _fpn_top(params, c5_nhwc, c4_nhwc):
    n, h5, w5, _ = c5_nhwc.shape
    _, h4, w4, _ = c4_nhwc.shape
    assert (h4, w4) == (2 * h5, 2 * w5)
    m5, m4 = n * h5 * w5, n * h4 * w4

    c5_2d = c5_nhwc.reshape(m5, -1).astype(jnp.bfloat16)
    c4_2d = c4_nhwc.reshape(m4, -1).astype(jnp.bfloat16)
    g4 = _upsample_matrix_np(n, h5, w5)                       # (m4, m5)

    b5, b4, bs4 = (params["conv_c5_p5"], params["conv_c4_p4"],
                   params["conv_sum_p4"])
    cout = b5["w_mat"].shape[1]

    args = [c5_2d, c4_2d,
            b5["w_mat"], b5["scale"], b5["bias"],
            b4["w_mat"], b4["scale"], b4["bias"],
            bs4["w_mat"], bs4["scale"], bs4["bias"],
            g4]
    out_shape = (
        jax.ShapeDtypeStruct((m5, cout), jnp.float32),    # p5 (final)
        jax.ShapeDtypeStruct((m4, cout), jnp.float32),    # p4 (final)
        jax.ShapeDtypeStruct((m4, cout), jnp.bfloat16),   # p4 (for level-3)
    )
    p5_2d, p4_2d, p4_bf16 = pl.pallas_call(
        _fpn_top_kernel,
        grid=(1,),
        out_shape=out_shape,
        in_specs=[_full_spec(a) for a in args],
        out_specs=tuple(pl.BlockSpec(s.shape, lambda i: (0, 0))
                        for s in out_shape),
        compiler_params=pltpu.CompilerParams(
            dimension_semantics=("arbitrary",)),
    )(*args)
    return (p5_2d.reshape(n, h5, w5, cout),
            p4_2d.reshape(n, h4, w4, cout),
            p4_bf16)


def _fpn_level3(params, c3_nhwc, p4_bf16):
    n, h3, w3, cin3 = c3_nhwc.shape
    h4, w4 = h3 // 2, w3 // 2
    m3, m4 = n * h3 * w3, n * h4 * w4
    assert p4_bf16.shape[0] == m4

    c3_2d = c3_nhwc.reshape(m3, cin3).astype(jnp.bfloat16)
    g3 = _upsample_matrix_np(n, h4, w4)                       # (m3, m4)

    b3, bs3 = params["conv_c3_p3"], params["conv_sum_p3"]
    cout = bs3["w_mat"].shape[1]

    # Row tile: keep >=2 independent tiles so both v7x TensorCores get work,
    # but no more steps than needed (v5e/v6e are overhead-bound).
    tm = m3
    for t in (256, 128):
        if m3 % t == 0 and m3 // t >= 2:
            tm = t
            break
    grid = (m3 // tm,)

    in_specs = [
        pl.BlockSpec((tm, cin3), lambda i: (i, 0)),          # c3 row tile
        pl.BlockSpec((tm, m4), lambda i: (i, 0)),            # upsample rows
        pl.BlockSpec(p4_bf16.shape, lambda i: (0, 0)),       # p4 (resident)
        pl.BlockSpec(b3["w_mat"].shape, lambda i: (0, 0)),
        pl.BlockSpec(b3["scale"].shape, lambda i: (0, 0)),
        pl.BlockSpec(b3["bias"].shape, lambda i: (0, 0)),
        pl.BlockSpec(bs3["w_mat"].shape, lambda i: (0, 0)),
        pl.BlockSpec(bs3["scale"].shape, lambda i: (0, 0)),
        pl.BlockSpec(bs3["bias"].shape, lambda i: (0, 0)),
    ]
    p3_2d = pl.pallas_call(
        _fpn_p3_kernel,
        grid=grid,
        out_shape=jax.ShapeDtypeStruct((m3, cout), jnp.float32),
        in_specs=in_specs,
        out_specs=pl.BlockSpec((tm, cout), lambda i: (i, 0)),
        compiler_params=pltpu.CompilerParams(
            dimension_semantics=("parallel",)),
    )(c3_2d, g3, p4_bf16,
      b3["w_mat"], b3["scale"], b3["bias"],
      bs3["w_mat"], bs3["scale"], bs3["bias"])
    return p3_2d.reshape(n, h3, w3, cout)


# ---------------------------------------------------------------------------
# Deterministic parameter init (mirrors CNNBlock: Conv2d bias=False + BN2d)
# ---------------------------------------------------------------------------
def _init_cnn_block(key, cin, cout):
    ks = jax.random.split(key, 5)
    w = jax.random.normal(ks[0], (cout, cin, 1, 1), jnp.float32) / jnp.sqrt(cin)
    gamma = jax.random.uniform(ks[1], (cout,), jnp.float32, 0.5, 1.5)
    beta = 0.1 * jax.random.normal(ks[2], (cout,), jnp.float32)
    mean = 0.1 * jax.random.normal(ks[3], (cout,), jnp.float32)
    var = jax.random.uniform(ks[4], (cout,), jnp.float32, 0.5, 1.5)
    scale = gamma / jnp.sqrt(var + 1e-5)        # BatchNorm2d folded (eval mode)
    bias = beta - mean * scale
    w_oc = w.reshape(cout, cin)
    return dict(
        w_f32=w_oc,                                              # f32 reference
        w_mat=jnp.transpose(w_oc, (1, 0)).astype(jnp.bfloat16),  # (Cin,Cout) bf16
        scale=scale.reshape(1, cout),
        bias=bias.reshape(1, cout),
    )


def init_fpn(key):
    ks = jax.random.split(key, 5)
    return dict(
        conv_c5_p5=_init_cnn_block(ks[0], 1024, 256),
        conv_c4_p4=_init_cnn_block(ks[1], 512, 256),
        conv_sum_p4=_init_cnn_block(ks[2], 256, 256),
        conv_c3_p3=_init_cnn_block(ks[3], 256, 256),
        conv_sum_p3=_init_cnn_block(ks[4], 256, 256),
    )


# ---------------------------------------------------------------------------
# Forward pass (matches FPN.forward semantics; NCHW I/O like PyTorch)
# ---------------------------------------------------------------------------
def fpn_forward(params, c3, c4, c5):
    c3 = jnp.transpose(c3, (0, 2, 3, 1))   # NCHW -> NHWC
    c4 = jnp.transpose(c4, (0, 2, 3, 1))
    c5 = jnp.transpose(c5, (0, 2, 3, 1))

    p5_nhwc, p4_nhwc, p4_bf16 = _fpn_top(params, c5, c4)
    p3_nhwc = _fpn_level3(params, c3, p4_bf16)

    to_nchw = lambda t: jnp.transpose(t, (0, 3, 1, 2))
    return to_nchw(p3_nhwc), to_nchw(p4_nhwc), to_nchw(p5_nhwc)


# ---------------------------------------------------------------------------
# Pure-JAX f32 reference (for correctness check only)
# ---------------------------------------------------------------------------
def _upsample2x_nearest(x_nhwc):
    n, h, w, c = x_nhwc.shape
    x = jnp.broadcast_to(x_nhwc[:, :, None, :, None, :], (n, h, 2, w, 2, c))
    return x.reshape(n, 2 * h, 2 * w, c)


def _ref_block(x_nhwc, p):
    y = jnp.einsum("nhwc,oc->nhwo", x_nhwc, p["w_f32"])
    y = y * p["scale"].reshape(-1) + p["bias"].reshape(-1)
    return jnp.where(y > 0, y, 0.1 * y)


def fpn_forward_ref(params, c3, c4, c5):
    c3 = jnp.transpose(c3, (0, 2, 3, 1))
    c4 = jnp.transpose(c4, (0, 2, 3, 1))
    c5 = jnp.transpose(c5, (0, 2, 3, 1))
    p5 = _ref_block(c5, params["conv_c5_p5"])
    p4 = _ref_block(_upsample2x_nearest(p5) + _ref_block(c4, params["conv_c4_p4"]),
                    params["conv_sum_p4"])
    p3 = _ref_block(_upsample2x_nearest(p4) + _ref_block(c3, params["conv_c3_p3"]),
                    params["conv_sum_p3"])
    to_nchw = lambda t: jnp.transpose(t, (0, 3, 1, 2))
    return to_nchw(p3), to_nchw(p4), to_nchw(p5)


if __name__ == "__main__":
    key = jax.random.PRNGKey(0)
    pkey, k3, k4, k5 = jax.random.split(key, 4)
    params = init_fpn(pkey)

    # Backbone outputs: channels fixed by the module (256/512/1024), small spatial.
    c3 = jax.random.normal(k3, (2, 256, 16, 16), jnp.float32)
    c4 = jax.random.normal(k4, (2, 512, 8, 8), jnp.float32)
    c5 = jax.random.normal(k5, (2, 1024, 4, 4), jnp.float32)

    fwd = jax.jit(functools.partial(fpn_forward, params))
    p3, p4, p5 = jax.block_until_ready(fwd(c3, c4, c5))

    assert p3.shape == (2, 256, 16, 16), p3.shape
    assert p4.shape == (2, 256, 8, 8), p4.shape
    assert p5.shape == (2, 256, 4, 4), p5.shape
    assert all(bool(jnp.all(jnp.isfinite(t))) for t in (p3, p4, p5))

    # Loose check vs f32 reference (kernels use bf16 MXU operands, f32 accumulate).
    r3, r4, r5 = fpn_forward_ref(params, c3, c4, c5)
    for a, b in ((p3, r3), (p4, r4), (p5, r5)):
        err = float(jnp.max(jnp.abs(a - b)))
        ref_mag = float(jnp.max(jnp.abs(b)))
        assert err <= 0.05 * ref_mag + 0.05, (err, ref_mag)

    print("KERNEL_OK")
</pallas_src>

<mosaic_0001>
module attributes {stable_mosaic.version = 11 : i64} {
  func.func @_fpn_top_kernel(%arg0: i32, %arg1: memref<32x1024xbf16, #tpu.memory_space<vmem>>, %arg2: memref<128x512xbf16, #tpu.memory_space<vmem>>, %arg3: memref<1024x256xbf16, #tpu.memory_space<vmem>>, %arg4: memref<1x256xf32, #tpu.memory_space<vmem>>, %arg5: memref<1x256xf32, #tpu.memory_space<vmem>>, %arg6: memref<512x256xbf16, #tpu.memory_space<vmem>>, %arg7: memref<1x256xf32, #tpu.memory_space<vmem>>, %arg8: memref<1x256xf32, #tpu.memory_space<vmem>>, %arg9: memref<256x256xbf16, #tpu.memory_space<vmem>>, %arg10: memref<1x256xf32, #tpu.memory_space<vmem>>, %arg11: memref<1x256xf32, #tpu.memory_space<vmem>>, %arg12: memref<128x32xbf16, #tpu.memory_space<vmem>>, %arg13: memref<32x256xf32, #tpu.memory_space<vmem>>, %arg14: memref<128x256xf32, #tpu.memory_space<vmem>>, %arg15: memref<128x256xbf16, #tpu.memory_space<vmem>>) attributes {dimension_semantics = [#tpu.dimension_semantics<arbitrary>], iteration_bounds = array<i64: 1>, scalar_prefetch = 0 : i64, scratch_operands = 0 : i64, tpu.core_type = #tpu.core_type<tc>, window_params = [{pipeline_mode = #tpu.pipeline_mode<synchronous>, transform_indices = @transform_0, window_bounds = array<i64: 32, 1024>}, {pipeline_mode = #tpu.pipeline_mode<synchronous>, transform_indices = @transform_1, window_bounds = array<i64: 128, 512>}, {pipeline_mode = #tpu.pipeline_mode<synchronous>, transform_indices = @transform_2, window_bounds = array<i64: 1024, 256>}, {pipeline_mode = #tpu.pipeline_mode<synchronous>, transform_indices = @transform_3, window_bounds = array<i64: 1, 256>}, {pipeline_mode = #tpu.pipeline_mode<synchronous>, transform_indices = @transform_4, window_bounds = array<i64: 1, 256>}, {pipeline_mode = #tpu.pipeline_mode<synchronous>, transform_indices = @transform_5, window_bounds = array<i64: 512, 256>}, {pipeline_mode = #tpu.pipeline_mode<synchronous>, transform_indices = @transform_6, window_bounds = array<i64: 1, 256>}, {pipeline_mode = #tpu.pipeline_mode<synchronous>, transform_indices = @transform_7, window_bounds = array<i64: 1, 256>}, {pipeline_mode = #tpu.pipeline_mode<synchronous>, transform_indices = @transform_8, window_bounds = array<i64: 256, 256>}, {pipeline_mode = #tpu.pipeline_mode<synchronous>, transform_indices = @transform_9, window_bounds = array<i64: 1, 256>}, {pipeline_mode = #tpu.pipeline_mode<synchronous>, transform_indices = @transform_10, window_bounds = array<i64: 1, 256>}, {pipeline_mode = #tpu.pipeline_mode<synchronous>, transform_indices = @transform_11, window_bounds = array<i64: 128, 32>}, {pipeline_mode = #tpu.pipeline_mode<synchronous>, transform_indices = @transform_12, window_bounds = array<i64: 32, 256>}, {pipeline_mode = #tpu.pipeline_mode<synchronous>, transform_indices = @transform_13, window_bounds = array<i64: 128, 256>}, {pipeline_mode = #tpu.pipeline_mode<synchronous>, transform_indices = @transform_14, window_bounds = array<i64: 128, 256>}]} {
    %c0 = arith.constant 0 : index
    %c0_0 = arith.constant 0 : index
    %0 = vector.load %arg1[%c0, %c0_0] : memref<32x1024xbf16, #tpu.memory_space<vmem>>, vector<32x1024xbf16>
    %c0_1 = arith.constant 0 : index
    %c0_2 = arith.constant 0 : index
    %1 = vector.load %arg3[%c0_1, %c0_2] : memref<1024x256xbf16, #tpu.memory_space<vmem>>, vector<1024x256xbf16>
    %cst = arith.constant dense<0.000000e+00> : vector<32x256xf32>
    %2 = tpu.matmul %0, %1, %cst {dimension_numbers = #tpu.dot_dimension_numbers<[1], [0], [0], [1], [0, 0, 1, 1], [], []>} : vector<32x1024xbf16>, vector<1024x256xbf16>, vector<32x256xf32> -> vector<32x256xf32>
    %c0_3 = arith.constant 0 : index
    %c0_4 = arith.constant 0 : index
    %3 = vector.load %arg4[%c0_3, %c0_4] : memref<1x256xf32, #tpu.memory_space<vmem>>, vector<1x256xf32>
    %4 = vector.broadcast %3 : vector<1x256xf32> to vector<32x256xf32>
    %5 = arith.mulf %2, %4 : vector<32x256xf32>
    %c0_5 = arith.constant 0 : index
    %c0_6 = arith.constant 0 : index
    %6 = vector.load %arg5[%c0_5, %c0_6] : memref<1x256xf32, #tpu.memory_space<vmem>>, vector<1x256xf32>
    %7 = vector.broadcast %6 : vector<1x256xf32> to vector<32x256xf32>
    %8 = arith.addf %5, %7 : vector<32x256xf32>
    %cst_7 = arith.constant 0.000000e+00 : f32
    %9 = vector.broadcast %cst_7 : f32 to vector<32x256xf32>
    %10 = arith.cmpf ogt, %8, %9 : vector<32x256xf32>
    %cst_8 = arith.constant 1.000000e-01 : f32
    %11 = vector.broadcast %cst_8 : f32 to vector<32x256xf32>
    %12 = arith.mulf %11, %8 : vector<32x256xf32>
    %13 = arith.select %10, %8, %12 : vector<32x256xi1>, vector<32x256xf32>
    %c0_9 = arith.constant 0 : index
    %c0_10 = arith.constant 0 : index
    %14 = vector.load %arg13[%c0_9, %c0_10] : memref<32x256xf32, #tpu.memory_space<vmem>>, vector<32x256xf32>
    tpu.vector_store %arg13[%c0_9, %c0_10], %13 {strides = array<i32>} : memref<32x256xf32, #tpu.memory_space<vmem>>, vector<32x256xf32>,
    %c0_11 = arith.constant 0 : index
    %c0_12 = arith.constant 0 : index
    %15 = vector.load %arg2[%c0_11, %c0_12] : memref<128x512xbf16, #tpu.memory_space<vmem>>, vector<128x512xbf16>
    %c0_13 = arith.constant 0 : index
    %c0_14 = arith.constant 0 : index
    %16 = vector.load %arg6[%c0_13, %c0_14] : memref<512x256xbf16, #tpu.memory_space<vmem>>, vector<512x256xbf16>
    %cst_15 = arith.constant dense<0.000000e+00> : vector<128x256xf32>
    %17 = tpu.matmul %15, %16, %cst_15 {dimension_numbers = #tpu.dot_dimension_numbers<[1], [0], [0], [1], [0, 0, 1, 1], [], []>} : vector<128x512xbf16>, vector<512x256xbf16>, vector<128x256xf32> -> vector<128x256xf32>
    %c0_16 = arith.constant 0 : index
    %c0_17 = arith.constant 0 : index
    %18 = vector.load %arg7[%c0_16, %c0_17] : memref<1x256xf32, #tpu.memory_space<vmem>>, vector<1x256xf32>
    %19 = vector.broadcast %18 : vector<1x256xf32> to vector<128x256xf32>
    %20 = arith.mulf %17, %19 : vector<128x256xf32>
    %c0_18 = arith.constant 0 : index
    %c0_19 = arith.constant 0 : index
    %21 = vector.load %arg8[%c0_18, %c0_19] : memref<1x256xf32, #tpu.memory_space<vmem>>, vector<1x256xf32>
    %22 = vector.broadcast %21 : vector<1x256xf32> to vector<128x256xf32>
    %23 = arith.addf %20, %22 : vector<128x256xf32>
    %cst_20 = arith.constant 0.000000e+00 : f32
    %24 = vector.broadcast %cst_20 : f32 to vector<128x256xf32>
    %25 = arith.cmpf ogt, %23, %24 : vector<128x256xf32>
    %cst_21 = arith.constant 1.000000e-01 : f32
    %26 = vector.broadcast %cst_21 : f32 to vector<128x256xf32>
    %27 = arith.mulf %26, %23 : vector<128x256xf32>
    %28 = arith.select %25, %23, %27 : vector<128x256xi1>, vector<128x256xf32>
    %c0_22 = arith.constant 0 : index
    %c0_23 = arith.constant 0 : index
    %29 = vector.load %arg12[%c0_22, %c0_23] : memref<128x32xbf16, #tpu.memory_space<vmem>>, vector<128x32xbf16>
    %30 = arith.truncf %13 : vector<32x256xf32> to vector<32x256xbf16>
    %cst_24 = arith.constant dense<0.000000e+00> : vector<128x256xf32>
    %31 = tpu.matmul %29, %30, %cst_24 {dimension_numbers = #tpu.dot_dimension_numbers<[1], [0], [0], [1], [0, 0, 1, 1], [], []>} : vector<128x32xbf16>, vector<32x256xbf16>, vector<128x256xf32> -> vector<128x256xf32>
    %32 = arith.addf %31, %28 : vector<128x256xf32>
    %33 = arith.truncf %32 : vector<128x256xf32> to vector<128x256xbf16>
    %c0_25 = arith.constant 0 : index
    %c0_26 = arith.constant 0 : index
    %34 = vector.load %arg9[%c0_25, %c0_26] : memref<256x256xbf16, #tpu.memory_space<vmem>>, vector<256x256xbf16>
    %cst_27 = arith.constant dense<0.000000e+00> : vector<128x256xf32>
    %35 = tpu.matmul %33, %34, %cst_27 {dimension_numbers = #tpu.dot_dimension_numbers<[1], [0], [0], [1], [0, 0, 1, 1], [], []>} : vector<128x256xbf16>, vector<256x256xbf16>, vector<128x256xf32> -> vector<128x256xf32>
    %c0_28 = arith.constant 0 : index
    %c0_29 = arith.constant 0 : index
    %36 = vector.load %arg10[%c0_28, %c0_29] : memref<1x256xf32, #tpu.memory_space<vmem>>, vector<1x256xf32>
    %37 = vector.broadcast %36 : vector<1x256xf32> to vector<128x256xf32>
    %38 = arith.mulf %35, %37 : vector<128x256xf32>
    %c0_30 = arith.constant 0 : index
    %c0_31 = arith.constant 0 : index
    %39 = vector.load %arg11[%c0_30, %c0_31] : memref<1x256xf32, #tpu.memory_space<vmem>>, vector<1x256xf32>
    %40 = vector.broadcast %39 : vector<1x256xf32> to vector<128x256xf32>
    %41 = arith.addf %38, %40 : vector<128x256xf32>
    %cst_32 = arith.constant 0.000000e+00 : f32
    %42 = vector.broadcast %cst_32 : f32 to vector<128x256xf32>
    %43 = arith.cmpf ogt, %41, %42 : vector<128x256xf32>
    %cst_33 = arith.constant 1.000000e-01 : f32
    %44 = vector.broadcast %cst_33 : f32 to vector<128x256xf32>
    %45 = arith.mulf %44, %41 : vector<128x256xf32>
    %46 = arith.select %43, %41, %45 : vector<128x256xi1>, vector<128x256xf32>
    %c0_34 = arith.constant 0 : index
    %c0_35 = arith.constant 0 : index
    %47 = vector.load %arg14[%c0_34, %c0_35] : memref<128x256xf32, #tpu.memory_space<vmem>>, vector<128x256xf32>
    tpu.vector_store %arg14[%c0_34, %c0_35], %46 {strides = array<i32>} : memref<128x256xf32, #tpu.memory_space<vmem>>, vector<128x256xf32>,
    %48 = arith.truncf %46 : vector<128x256xf32> to vector<128x256xbf16>
    %c0_36 = arith.constant 0 : index
    %c0_37 = arith.constant 0 : index
    %49 = vector.load %arg15[%c0_36, %c0_37] : memref<128x256xbf16, #tpu.memory_space<vmem>>, vector<128x256xbf16>
    tpu.vector_store %arg15[%c0_36, %c0_37], %48 {strides = array<i32>} : memref<128x256xbf16, #tpu.memory_space<vmem>>, vector<128x256xbf16>,
    return
  }
  func.func @transform_0(%arg0: i32) -> (i32, i32) {
    %c0_i32 = arith.constant 0 : i32
    %c0_i32_0 = arith.constant 0 : i32
    %c0_i32_1 = arith.constant 0 : i32
    return %c0_i32, %c0_i32_0 : i32, i32
  }
  func.func @transform_1(%arg0: i32) -> (i32, i32) {
    %c0_i32 = arith.constant 0 : i32
    %c0_i32_0 = arith.constant 0 : i32
    %c0_i32_1 = arith.constant 0 : i32
    return %c0_i32, %c0_i32_0 : i32, i32
  }
  func.func @transform_2(%arg0: i32) -> (i32, i32) {
    %c0_i32 = arith.constant 0 : i32
    %c0_i32_0 = arith.constant 0 : i32
    %c0_i32_1 = arith.constant 0 : i32
    return %c0_i32, %c0_i32_0 : i32, i32
  }
  func.func @transform_3(%arg0: i32) -> (i32, i32) {
    %c0_i32 = arith.constant 0 : i32
    %c0_i32_0 = arith.constant 0 : i32
    %c0_i32_1 = arith.constant 0 : i32
    return %c0_i32, %c0_i32_0 : i32, i32
  }
  func.func @transform_4(%arg0: i32) -> (i32, i32) {
    %c0_i32 = arith.constant 0 : i32
    %c0_i32_0 = arith.constant 0 : i32
    %c0_i32_1 = arith.constant 0 : i32
    return %c0_i32, %c0_i32_0 : i32, i32
  }
  func.func @transform_5(%arg0: i32) -> (i32, i32) {
    %c0_i32 = arith.constant 0 : i32
    %c0_i32_0 = arith.constant 0 : i32
    %c0_i32_1 = arith.constant 0 : i32
    return %c0_i32, %c0_i32_0 : i32, i32
  }
  func.func @transform_6(%arg0: i32) -> (i32, i32) {
    %c0_i32 = arith.constant 0 : i32
    %c0_i32_0 = arith.constant 0 : i32
    %c0_i32_1 = arith.constant 0 : i32
    return %c0_i32, %c0_i32_0 : i32, i32
  }
  func.func @transform_7(%arg0: i32) -> (i32, i32) {
    %c0_i32 = arith.constant 0 : i32
    %c0_i32_0 = arith.constant 0 : i32
    %c0_i32_1 = arith.constant 0 : i32
    return %c0_i32, %c0_i32_0 : i32, i32
  }
  func.func @transform_8(%arg0: i32) -> (i32, i32) {
    %c0_i32 = arith.constant 0 : i32
    %c0_i32_0 = arith.constant 0 : i32
    %c0_i32_1 = arith.constant 0 : i32
    return %c0_i32, %c0_i32_0 : i32, i32
  }
  func.func @transform_9(%arg0: i32) -> (i32, i32) {
    %c0_i32 = arith.constant 0 : i32
    %c0_i32_0 = arith.constant 0 : i32
    %c0_i32_1 = arith.constant 0 : i32
    return %c0_i32, %c0_i32_0 : i32, i32
  }
  func.func @transform_10(%arg0: i32) -> (i32, i32) {
    %c0_i32 = arith.constant 0 : i32
    %c0_i32_0 = arith.constant 0 : i32
    %c0_i32_1 = arith.constant 0 : i32
    return %c0_i32, %c0_i32_0 : i32, i32
  }
  func.func @transform_11(%arg0: i32) -> (i32, i32) {
    %c0_i32 = arith.constant 0 : i32
    %c0_i32_0 = arith.constant 0 : i32
    %c0_i32_1 = arith.constant 0 : i32
    return %c0_i32, %c0_i32_0 : i32, i32
  }
  func.func @transform_12(%arg0: i32) -> (i32, i32) {
    %c0_i32 = arith.constant 0 : i32
    %c0_i32_0 = arith.constant 0 : i32
    %c0_i32_1 = arith.constant 0 : i32
    return %c0_i32, %c0_i32_0 : i32, i32
  }
  func.func @transform_13(%arg0: i32) -> (i32, i32) {
    %c0_i32 = arith.constant 0 : i32
    %c0_i32_0 = arith.constant 0 : i32
    %c0_i32_1 = arith.constant 0 : i32
    return %c0_i32, %c0_i32_0 : i32, i32
  }
  func.func @transform_14(%arg0: i32) -> (i32, i32) {
    %c0_i32 = arith.constant 0 : i32
    %c0_i32_0 = arith.constant 0 : i32
    %c0_i32_1 = arith.constant 0 : i32
    return %c0_i32, %c0_i32_0 : i32, i32
  }
}

module attributes {stable_mosaic.version = 11 : i64} {
  func.func @_fpn_p3_kernel(%arg0: i32, %arg1: memref<256x256xbf16, #tpu.memory_space<vmem>>, %arg2: memref<256x128xbf16, #tpu.memory_space<vmem>>, %arg3: memref<128x256xbf16, #tpu.memory_space<vmem>>, %arg4: memref<256x256xbf16, #tpu.memory_space<vmem>>, %arg5: memref<1x256xf32, #tpu.memory_space<vmem>>, %arg6: memref<1x256xf32, #tpu.memory_space<vmem>>, %arg7: memref<256x256xbf16, #tpu.memory_space<vmem>>, %arg8: memref<1x256xf32, #tpu.memory_space<vmem>>, %arg9: memref<1x256xf32, #tpu.memory_space<vmem>>, %arg10: memref<256x256xf32, #tpu.memory_space<vmem>>) attributes {dimension_semantics = [#tpu.dimension_semantics<parallel>], iteration_bounds = array<i64: 2>, scalar_prefetch = 0 : i64, scratch_operands = 0 : i64, tpu.core_type = #tpu.core_type<tc>, window_params = [{transform_indices = @transform_0, window_bounds = array<i64: 256, 256>}, {transform_indices = @transform_1, window_bounds = array<i64: 256, 128>}, {pipeline_mode = #tpu.pipeline_mode<synchronous>, transform_indices = @transform_2, window_bounds = array<i64: 128, 256>}, {pipeline_mode = #tpu.pipeline_mode<synchronous>, transform_indices = @transform_3, window_bounds = array<i64: 256, 256>}, {pipeline_mode = #tpu.pipeline_mode<synchronous>, transform_indices = @transform_4, window_bounds = array<i64: 1, 256>}, {pipeline_mode = #tpu.pipeline_mode<synchronous>, transform_indices = @transform_5, window_bounds = array<i64: 1, 256>}, {pipeline_mode = #tpu.pipeline_mode<synchronous>, transform_indices = @transform_6, window_bounds = array<i64: 256, 256>}, {pipeline_mode = #tpu.pipeline_mode<synchronous>, transform_indices = @transform_7, window_bounds = array<i64: 1, 256>}, {pipeline_mode = #tpu.pipeline_mode<synchronous>, transform_indices = @transform_8, window_bounds = array<i64: 1, 256>}, {transform_indices = @transform_9, window_bounds = array<i64: 256, 256>}]} {
    %c0 = arith.constant 0 : index
    %c0_0 = arith.constant 0 : index
    %0 = vector.load %arg1[%c0, %c0_0] : memref<256x256xbf16, #tpu.memory_space<vmem>>, vector<256x256xbf16>
    %c0_1 = arith.constant 0 : index
    %c0_2 = arith.constant 0 : index
    %1 = vector.load %arg4[%c0_1, %c0_2] : memref<256x256xbf16, #tpu.memory_space<vmem>>, vector<256x256xbf16>
    %cst = arith.constant dense<0.000000e+00> : vector<256x256xf32>
    %2 = tpu.matmul %0, %1, %cst {dimension_numbers = #tpu.dot_dimension_numbers<[1], [0], [0], [1], [0, 0, 1, 1], [], []>} : vector<256x256xbf16>, vector<256x256xbf16>, vector<256x256xf32> -> vector<256x256xf32>
    %c0_3 = arith.constant 0 : index
    %c0_4 = arith.constant 0 : index
    %3 = vector.load %arg5[%c0_3, %c0_4] : memref<1x256xf32, #tpu.memory_space<vmem>>, vector<1x256xf32>
    %4 = vector.broadcast %3 : vector<1x256xf32> to vector<256x256xf32>
    %5 = arith.mulf %2, %4 : vector<256x256xf32>
    %c0_5 = arith.constant 0 : index
    %c0_6 = arith.constant 0 : index
    %6 = vector.load %arg6[%c0_5, %c0_6] : memref<1x256xf32, #tpu.memory_space<vmem>>, vector<1x256xf32>
    %7 = vector.broadcast %6 : vector<1x256xf32> to vector<256x256xf32>
    %8 = arith.addf %5, %7 : vector<256x256xf32>
    %cst_7 = arith.constant 0.000000e+00 : f32
    %9 = vector.broadcast %cst_7 : f32 to vector<256x256xf32>
    %10 = arith.cmpf ogt, %8, %9 : vector<256x256xf32>
    %cst_8 = arith.constant 1.000000e-01 : f32
    %11 = vector.broadcast %cst_8 : f32 to vector<256x256xf32>
    %12 = arith.mulf %11, %8 : vector<256x256xf32>
    %13 = arith.select %10, %8, %12 : vector<256x256xi1>, vector<256x256xf32>
    %c0_9 = arith.constant 0 : index
    %c0_10 = arith.constant 0 : index
    %14 = vector.load %arg2[%c0_9, %c0_10] : memref<256x128xbf16, #tpu.memory_space<vmem>>, vector<256x128xbf16>
    %c0_11 = arith.constant 0 : index
    %c0_12 = arith.constant 0 : index
    %15 = vector.load %arg3[%c0_11, %c0_12] : memref<128x256xbf16, #tpu.memory_space<vmem>>, vector<128x256xbf16>
    %cst_13 = arith.constant dense<0.000000e+00> : vector<256x256xf32>
    %16 = tpu.matmul %14, %15, %cst_13 {dimension_numbers = #tpu.dot_dimension_numbers<[1], [0], [0], [1], [0, 0, 1, 1], [], []>} : vector<256x128xbf16>, vector<128x256xbf16>, vector<256x256xf32> -> vector<256x256xf32>
    %17 = arith.addf %16, %13 : vector<256x256xf32>
    %18 = arith.truncf %17 : vector<256x256xf32> to vector<256x256xbf16>
    %c0_14 = arith.constant 0 : index
    %c0_15 = arith.constant 0 : index
    %19 = vector.load %arg7[%c0_14, %c0_15] : memref<256x256xbf16, #tpu.memory_space<vmem>>, vector<256x256xbf16>
    %cst_16 = arith.constant dense<0.000000e+00> : vector<256x256xf32>
    %20 = tpu.matmul %18, %19, %cst_16 {dimension_numbers = #tpu.dot_dimension_numbers<[1], [0], [0], [1], [0, 0, 1, 1], [], []>} : vector<256x256xbf16>, vector<256x256xbf16>, vector<256x256xf32> -> vector<256x256xf32>
    %c0_17 = arith.constant 0 : index
    %c0_18 = arith.constant 0 : index
    %21 = vector.load %arg8[%c0_17, %c0_18] : memref<1x256xf32, #tpu.memory_space<vmem>>, vector<1x256xf32>
    %22 = vector.broadcast %21 : vector<1x256xf32> to vector<256x256xf32>
    %23 = arith.mulf %20, %22 : vector<256x256xf32>
    %c0_19 = arith.constant 0 : index
    %c0_20 = arith.constant 0 : index
    %24 = vector.load %arg9[%c0_19, %c0_20] : memref<1x256xf32, #tpu.memory_space<vmem>>, vector<1x256xf32>
    %25 = vector.broadcast %24 : vector<1x256xf32> to vector<256x256xf32>
    %26 = arith.addf %23, %25 : vector<256x256xf32>
    %cst_21 = arith.constant 0.000000e+00 : f32
    %27 = vector.broadcast %cst_21 : f32 to vector<256x256xf32>
    %28 = arith.cmpf ogt, %26, %27 : vector<256x256xf32>
    %cst_22 = arith.constant 1.000000e-01 : f32
    %29 = vector.broadcast %cst_22 : f32 to vector<256x256xf32>
    %30 = arith.mulf %29, %26 : vector<256x256xf32>
    %31 = arith.select %28, %26, %30 : vector<256x256xi1>, vector<256x256xf32>
    %c0_23 = arith.constant 0 : index
    %c0_24 = arith.constant 0 : index
    %32 = vector.load %arg10[%c0_23, %c0_24] : memref<256x256xf32, #tpu.memory_space<vmem>>, vector<256x256xf32>
    tpu.vector_store %arg10[%c0_23, %c0_24], %31 {strides = array<i32>} : memref<256x256xf32, #tpu.memory_space<vmem>>, vector<256x256xf32>,
    return
  }
  func.func @transform_0(%arg0: i32) -> (i32, i32) {
    %c0_i32 = arith.constant 0 : i32
    %c0_i32_0 = arith.constant 0 : i32
    return %arg0, %c0_i32 : i32, i32
  }
  func.func @transform_1(%arg0: i32) -> (i32, i32) {
    %c0_i32 = arith.constant 0 : i32
    %c0_i32_0 = arith.constant 0 : i32
    return %arg0, %c0_i32 : i32, i32
  }
  func.func @transform_2(%arg0: i32) -> (i32, i32) {
    %c0_i32 = arith.constant 0 : i32
    %c0_i32_0 = arith.constant 0 : i32
    %c0_i32_1 = arith.constant 0 : i32
    return %c0_i32, %c0_i32_0 : i32, i32
  }
  func.func @transform_3(%arg0: i32) -> (i32, i32) {
    %c0_i32 = arith.constant 0 : i32
    %c0_i32_0 = arith.constant 0 : i32
    %c0_i32_1 = arith.constant 0 : i32
    return %c0_i32, %c0_i32_0 : i32, i32
  }
  func.func @transform_4(%arg0: i32) -> (i32, i32) {
    %c0_i32 = arith.constant 0 : i32
    %c0_i32_0 = arith.constant 0 : i32
    %c0_i32_1 = arith.constant 0 : i32
    return %c0_i32, %c0_i32_0 : i32, i32
  }
  func.func @transform_5(%arg0: i32) -> (i32, i32) {
    %c0_i32 = arith.constant 0 : i32
    %c0_i32_0 = arith.constant 0 : i32
    %c0_i32_1 = arith.constant 0 : i32
    return %c0_i32, %c0_i32_0 : i32, i32
  }
  func.func @transform_6(%arg0: i32) -> (i32, i32) {
    %c0_i32 = arith.constant 0 : i32
    %c0_i32_0 = arith.constant 0 : i32
    %c0_i32_1 = arith.constant 0 : i32
    return %c0_i32, %c0_i32_0 : i32, i32
  }
  func.func @transform_7(%arg0: i32) -> (i32, i32) {
    %c0_i32 = arith.constant 0 : i32
    %c0_i32_0 = arith.constant 0 : i32
    %c0_i32_1 = arith.constant 0 : i32
    return %c0_i32, %c0_i32_0 : i32, i32
  }
  func.func @transform_8(%arg0: i32) -> (i32, i32) {
    %c0_i32 = arith.constant 0 : i32
    %c0_i32_0 = arith.constant 0 : i32
    %c0_i32_1 = arith.constant 0 : i32
    return %c0_i32, %c0_i32_0 : i32, i32
  }
  func.func @transform_9(%arg0: i32) -> (i32, i32) {
    %c0_i32 = arith.constant 0 : i32
    %c0_i32_0 = arith.constant 0 : i32
    return %arg0, %c0_i32 : i32, i32
  }
}

</mosaic_0001>

<llo_original>
// kernel: fpn_forward.3
$region0: #{fpn_forward.3}
  #allocation0 [shape = 'u32[]', space=smem, size = 0x4, offset = 0x4, fixed_abs, tag = 'smem constant byte address 0x4 - core index']
  #allocation1 [shape = 'u32[144,128]{1,0:T(1,128)}', space=vmem, size = 0x12000, scoped, tag = 'internal scratch']
  %s0 = inlined_call_operand.vmem [shape: bf16[512,256], index: 0, kind: input, shape index: {}]
  %s1 = inlined_call_operand.vmem [shape: bf16[512,128], index: 1, kind: input, shape index: {}]
  %s2 = inlined_call_operand.vmem [shape: bf16[128,256], index: 2, kind: input, shape index: {}]
  %s3 = inlined_call_operand.vmem [shape: bf16[256,256], index: 3, kind: input, shape index: {}]
  %s4 = inlined_call_operand.vmem [shape: f32[1,256], index: 4, kind: input, shape index: {}]
  %s5 = inlined_call_operand.vmem [shape: f32[1,256], index: 5, kind: input, shape index: {}]
  %s6 = inlined_call_operand.vmem [shape: bf16[256,256], index: 6, kind: input, shape index: {}]
  %s7 = inlined_call_operand.vmem [shape: f32[1,256], index: 7, kind: input, shape index: {}]
  %s8 = inlined_call_operand.vmem [shape: f32[1,256], index: 8, kind: input, shape index: {}]
  %s9 = inlined_call_operand.hbm [shape: f32[512,256], index: 9, kind: output, shape index: {}]
  %s10 = sld [smem:[#allocation0]]
  $region69: #{fpn_forward.3} parent=0
    _
  %s12 = ssub.s32 1, %s10
  %s13 = scalar_select 0, %s12, %s10
  $region1: #{fpn_forward.3} parent=0
    #allocation2 [shape = 'u8[524288]{0}', space=vmem, size = 0x80000, scoped, tag = 'output window, operand 0']
    #allocation3 [shape = 's32[2]{0}', space=sflag, size = 0x8, scoped, tag = 'scoped memory for fpn_forward.3']
    %14 = vsyncpa [#allocation3], 0
    %s15 = scalar_lea.sflag [#allocation3], 1
    %16 = vsyncpa %s15, 0
    loop: start=0, step=1, limit=4
    $region2: #{fpn_forward.3} parent=1 // loop_pre_header
      _
    $region3: #{fpn_forward.3} parent=1 // loop_header
      %s18 = sphi 0, %s22
      %p19 = scmp.ge.s32.totalorder %s18, 4
      %s28 = sphi 0, %s30
      %s31 = sphi 0, %s28
      %s32 = sphi 0, %s31
      %s48 = sphi 0, %s32
      %s54 = sphi 0, %s56
      %s57 = sphi 0, %s54
      %s58 = sphi 0, %s57
      %s74 = sphi 0, %s58
      %s78 = sphi 0, %s78
      %s80 = sphi 0, %s78
      %s81 = sphi 0, %s80
      %s95 = sphi 0, %s81
      %s99 = sphi 0, %s99
      %s101 = sphi 0, %s99
      %s102 = sphi 0, %s101
      %s116 = sphi 0, %s102
      %s120 = sphi 0, %s120
      %s122 = sphi 0, %s120
      %s123 = sphi 0, %s122
      %s137 = sphi 0, %s123
      %s141 = sphi 0, %s141
      %s143 = sphi 0, %s141
      %s144 = sphi 0, %s143
      %s158 = sphi 0, %s144
      %s162 = sphi 0, %s162
      %s164 = sphi 0, %s162
      %s165 = sphi 0, %s164
      %s179 = sphi 0, %s165
      %s183 = sphi 0, %s183
      %s185 = sphi 0, %s183
      %s186 = sphi 0, %s185
      %s200 = sphi 0, %s186
      %s204 = sphi 0, %s204
      %s206 = sphi 0, %s204
      %s207 = sphi 0, %s206
      %s221 = sphi 0, %s207
      %s227 = sphi 0, %s229
      %s230 = sphi 0, %s227
      %s231 = sphi 0, %s230
      %s247 = sphi 0, %s231
    $region4: #{fpn_forward.3} parent=1 // loop_header_branch
      %21 = sbr.rel (%p19) target = $region8
    $region5: #{fpn_forward.3} parent=1 // loop_body
      %s23 = ssub.s32 %s18, 1
      %s24 = ssub.s32 %s18, 2
      %s25 = sadd.s32 %s18, 1
      %s26 = ssub.s32 %s18, %s25
      %p27 = scmp.eq.s32.totalorder %s26, 0
      %s29 = sadd.s32 %s28, 1
      %s30 = scalar_select %p27, %s28, %s29
      %p33 = pneg %p27
      %p34 = scmp.eq.s32.totalorder %s18, 1
      %p35 = por %p33, %p34
      %p36 = scmp.ne.s32.totalorder %s28, %s31
      %p37 = scmp.eq.s32.totalorder %s18, 0
      %p38 = por %p36, %p37
      %p39 = scmp.ne.s32.totalorder %s28, %s31
      %p40 = scmp.eq.s32.totalorder %s23, 1
      %p41 = por %p39, %p40
      %p42 = scmp.ne.s32.totalorder %s31, %s32
      %p43 = scmp.eq.s32.totalorder %s23, 0
      %p44 = por %p42, %p43
      %p45 = scmp.ne.s32.totalorder %s31, %s32
      %p46 = scmp.eq.s32.totalorder %s24, 1
      %p47 = por %p45, %p46
      %p49 = scmp.ne.s32.totalorder %s32, %s48
      %p50 = scmp.eq.s32.totalorder %s24, 0
      %p51 = por %p49, %p50
      %s52 = ssub.s32 %s18, %s25
      %p53 = scmp.eq.s32.totalorder %s52, 0
      %s55 = sadd.s32 %s54, 1
      %s56 = scalar_select %p53, %s54, %s55
      %p59 = pneg %p53
      %p60 = scmp.eq.s32.totalorder %s18, 1
      %p61 = por %p59, %p60
      %p62 = scmp.ne.s32.totalorder %s54, %s57
      %p63 = scmp.eq.s32.totalorder %s18, 0
      %p64 = por %p62, %p63
      %p65 = scmp.ne.s32.totalorder %s54, %s57
      %p66 = scmp.eq.s32.totalorder %s23, 1
      %p67 = por %p65, %p66
      %p68 = scmp.ne.s32.totalorder %s57, %s58
      %p69 = scmp.eq.s32.totalorder %s23, 0
      %p70 = por %p68, %p69
      %p71 = scmp.ne.s32.totalorder %s57, %s58
      %p72 = scmp.eq.s32.totalorder %s24, 1
      %p73 = por %p71, %p72
      %p75 = scmp.ne.s32.totalorder %s58, %s74
      %p76 = scmp.eq.s32.totalorder %s24, 0
      %p77 = por %p75, %p76
      %s79 = sadd.s32 %s78, 1
      %p82 = scmp.eq.s32.totalorder %s18, 1
      %p83 = scmp.ne.s32.totalorder %s78, %s80
      %p84 = scmp.eq.s32.totalorder %s18, 0
      %p85 = por %p83, %p84
      %p86 = scmp.ne.s32.totalorder %s78, %s80
      %p87 = scmp.eq.s32.totalorder %s23, 1
      %p88 = por %p86, %p87
      %p89 = scmp.ne.s32.totalorder %s80, %s81
      %p90 = scmp.eq.s32.totalorder %s23, 0
      %p91 = por %p89, %p90
      %p92 = scmp.ne.s32.totalorder %s80, %s81
      %p93 = scmp.eq.s32.totalorder %s24, 1
      %p94 = por %p92, %p93
      %p96 = scmp.ne.s32.totalorder %s81, %s95
      %p97 = scmp.eq.s32.totalorder %s24, 0
      %p98 = por %p96, %p97
      %s100 = sadd.s32 %s99, 1
      %p103 = scmp.eq.s32.totalorder %s18, 1
      %p104 = scmp.ne.s32.totalorder %s99, %s101
      %p105 = scmp.eq.s32.totalorder %s18, 0
      %p106 = por %p104, %p105
      %p107 = scmp.ne.s32.totalorder %s99, %s101
      %p108 = scmp.eq.s32.totalorder %s23, 1
      %p109 = por %p107, %p108
      %p110 = scmp.ne.s32.totalorder %s101, %s102
      %p111 = scmp.eq.s32.totalorder %s23, 0
      %p112 = por %p110, %p111
      %p113 = scmp.ne.s32.totalorder %s101, %s102
      %p114 = scmp.eq.s32.totalorder %s24, 1
      %p115 = por %p113, %p114
      %p117 = scmp.ne.s32.totalorder %s102, %s116
      %p118 = scmp.eq.s32.totalorder %s24, 0
      %p119 = por %p117, %p118
      %s121 = sadd.s32 %s120, 1
      %p124 = scmp.eq.s32.totalorder %s18, 1
      %p125 = scmp.ne.s32.totalorder %s120, %s122
      %p126 = scmp.eq.s32.totalorder %s18, 0
      %p127 = por %p125, %p126
      %p128 = scmp.ne.s32.totalorder %s120, %s122
      %p129 = scmp.eq.s32.totalorder %s23, 1
      %p130 = por %p128, %p129
      %p131 = scmp.ne.s32.totalorder %s122, %s123
      %p132 = scmp.eq.s32.totalorder %s23, 0
      %p133 = por %p131, %p132
      %p134 = scmp.ne.s32.totalorder %s122, %s123
      %p135 = scmp.eq.s32.totalorder %s24, 1
      %p136 = por %p134, %p135
      %p138 = scmp.ne.s32.totalorder %s123, %s137
      %p139 = scmp.eq.s32.totalorder %s24, 0
      %p140 = por %p138, %p139
      %s142 = sadd.s32 %s141, 1
      %p145 = scmp.eq.s32.totalorder %s18, 1
      %p146 = scmp.ne.s32.totalorder %s141, %s143
      %p147 = scmp.eq.s32.totalorder %s18, 0
      %p148 = por %p146, %p147
      %p149 = scmp.ne.s32.totalorder %s141, %s143
      %p150 = scmp.eq.s32.totalorder %s23, 1
      %p151 = por %p149, %p150
      %p152 = scmp.ne.s32.totalorder %s143, %s144
      %p153 = scmp.eq.s32.totalorder %s23, 0
      %p154 = por %p152, %p153
      %p155 = scmp.ne.s32.totalorder %s143, %s144
      %p156 = scmp.eq.s32.totalorder %s24, 1
      %p157 = por %p155, %p156
      %p159 = scmp.ne.s32.totalorder %s144, %s158
      %p160 = scmp.eq.s32.totalorder %s24, 0
      %p161 = por %p159, %p160
      %s163 = sadd.s32 %s162, 1
      %p166 = scmp.eq.s32.totalorder %s18, 1
      %p167 = scmp.ne.s32.totalorder %s162, %s164
      %p168 = scmp.eq.s32.totalorder %s18, 0
      %p169 = por %p167, %p168
      %p170 = scmp.ne.s32.totalorder %s162, %s164
      %p171 = scmp.eq.s32.totalorder %s23, 1
      %p172 = por %p170, %p171
      %p173 = scmp.ne.s32.totalorder %s164, %s165
      %p174 = scmp.eq.s32.totalorder %s23, 0
      %p175 = por %p173, %p174
      %p176 = scmp.ne.s32.totalorder %s164, %s165
      %p177 = scmp.eq.s32.totalorder %s24, 1
      %p178 = por %p176, %p177
      %p180 = scmp.ne.s32.totalorder %s165, %s179
      %p181 = scmp.eq.s32.totalorder %s24, 0
      %p182 = por %p180, %p181
      %s184 = sadd.s32 %s183, 1
      %p187 = scmp.eq.s32.totalorder %s18, 1
      %p188 = scmp.ne.s32.totalorder %s183, %s185
      %p189 = scmp.eq.s32.totalorder %s18, 0
      %p190 = por %p188, %p189
      %p191 = scmp.ne.s32.totalorder %s183, %s185
      %p192 = scmp.eq.s32.totalorder %s23, 1
      %p193 = por %p191, %p192
      %p194 = scmp.ne.s32.totalorder %s185, %s186
      %p195 = scmp.eq.s32.totalorder %s23, 0
      %p196 = por %p194, %p195
      %p197 = scmp.ne.s32.totalorder %s185, %s186
      %p198 = scmp.eq.s32.totalorder %s24, 1
      %p199 = por %p197, %p198
      %p201 = scmp.ne.s32.totalorder %s186, %s200
      %p202 = scmp.eq.s32.totalorder %s24, 0
      %p203 = por %p201, %p202
      %s205 = sadd.s32 %s204, 1
      %p208 = scmp.eq.s32.totalorder %s18, 1
      %p209 = scmp.ne.s32.totalorder %s204, %s206
      %p210 = scmp.eq.s32.totalorder %s18, 0
      %p211 = por %p209, %p210
      %p212 = scmp.ne.s32.totalorder %s204, %s206
      %p213 = scmp.eq.s32.totalorder %s23, 1
      %p214 = por %p212, %p213
      %p215 = scmp.ne.s32.totalorder %s206, %s207
      %p216 = scmp.eq.s32.totalorder %s23, 0
      %p217 = por %p215, %p216
      %p218 = scmp.ne.s32.totalorder %s206, %s207
      %p219 = scmp.eq.s32.totalorder %s24, 1
      %p220 = por %p218, %p219
      %p222 = scmp.ne.s32.totalorder %s207, %s221
      %p223 = scmp.eq.s32.totalorder %s24, 0
      %p224 = por %p222, %p223
      %s225 = ssub.s32 %s18, %s25
      %p226 = scmp.eq.s32.totalorder %s225, 0
      %s228 = sadd.s32 %s227, 1
      %s229 = scalar_select %p226, %s227, %s228
      %p232 = pneg %p226
      %p233 = scmp.eq.s32.totalorder %s18, 1
      %p234 = por %p232, %p233
      %p235 = scmp.ne.s32.totalorder %s227, %s230
      %p236 = scmp.eq.s32.totalorder %s18, 0
      %p237 = por %p235, %p236
      %p238 = scmp.ne.s32.totalorder %s227, %s230
      %p239 = scmp.eq.s32.totalorder %s23, 1
      %p240 = por %p238, %p239
      %p241 = scmp.ne.s32.totalorder %s230, %s231
      %p242 = scmp.eq.s32.totalorder %s23, 0
      %p243 = por %p241, %p242
      %p244 = scmp.ne.s32.totalorder %s230, %s231
      %p245 = scmp.eq.s32.totalorder %s24, 1
      %p246 = por %p244, %p245
      %p248 = scmp.ne.s32.totalorder %s231, %s247
      %p249 = scmp.eq.s32.totalorder %s24, 0
      %p250 = por %p248, %p249
      %p251 = scmp.le.s32.totalorder 1, %s18
      %p252 = scmp.lt.s32.totalorder %s18, 3
      %p253 = pnand %p251, %p252
      %p254 = pneg %p253
      // Predicated region
      $region9: #{fpn_forward.3} parent=5 // pred_check
        _
      $region10: #{fpn_forward.3} parent=5 // pred_check_branch
        %256 = sbr.rel (%p253) target = $region12
      $region11: #{fpn_forward.3} parent=5 // pred_region
        %s257 = ssub.s32 %s18, 1
        // Predicated region
        $region13: #{fpn_forward.3} parent=11 // pred_check
          %p258 = pneg %p91
        $region14: #{fpn_forward.3} parent=11 // pred_check_branch
          %260 = sbr.rel (%p258) target = $region16
        $region15: #{fpn_forward.3} parent=11 // pred_region
          _
        $region16: #{fpn_forward.3} parent=11 // pred_fallthru
          _
        // Predicated region
        $region17: #{fpn_forward.3} parent=11 // pred_check
          %p261 = pneg %p112
        $region18: #{fpn_forward.3} parent=11 // pred_check_branch
          %263 = sbr.rel (%p261) target = $region20
        $region19: #{fpn_forward.3} parent=11 // pred_region
          _
        $region20: #{fpn_forward.3} parent=11 // pred_fallthru
          _
        // Predicated region
        $region21: #{fpn_forward.3} parent=11 // pred_check
          %p264 = pneg %p133
        $region22: #{fpn_forward.3} parent=11 // pred_check_branch
          %266 = sbr.rel (%p264) target = $region24
        $region23: #{fpn_forward.3} parent=11 // pred_region
          _
        $region24: #{fpn_forward.3} parent=11 // pred_fallthru
          _
        // Predicated region
        $region25: #{fpn_forward.3} parent=11 // pred_check
          %p267 = pneg %p154
        $region26: #{fpn_forward.3} parent=11 // pred_check_branch
          %269 = sbr.rel (%p267) target = $region28
        $region27: #{fpn_forward.3} parent=11 // pred_region
          _
        $region28: #{fpn_forward.3} parent=11 // pred_fallthru
          _
        // Predicated region
        $region29: #{fpn_forward.3} parent=11 // pred_check
          %p270 = pneg %p175
        $region30: #{fpn_forward.3} parent=11 // pred_check_branch
          %272 = sbr.rel (%p270) target = $region32
        $region31: #{fpn_forward.3} parent=11 // pred_region
          _
        $region32: #{fpn_forward.3} parent=11 // pred_fallthru
          _
        // Predicated region
        $region33: #{fpn_forward.3} parent=11 // pred_check
          %p273 = pneg %p196
        $region34: #{fpn_forward.3} parent=11 // pred_check_branch
          %275 = sbr.rel (%p273) target = $region36
        $region35: #{fpn_forward.3} parent=11 // pred_region
          _
        $region36: #{fpn_forward.3} parent=11 // pred_fallthru
          _
        // Predicated region
        $region37: #{fpn_forward.3} parent=11 // pred_check
          %p276 = pneg %p217
        $region38: #{fpn_forward.3} parent=11 // pred_check_branch
          %278 = sbr.rel (%p276) target = $region40
        $region39: #{fpn_forward.3} parent=11 // pred_region
          _
        $region40: #{fpn_forward.3} parent=11 // pred_fallthru
          _
      $region12: #{fpn_forward.3} parent=5 // pred_fallthru
        _
      %p279 = scmp.lt.s32.totalorder %s18, 2
      // Predicated region
      $region41: #{fpn_forward.3} parent=5 // pred_check
        %p280 = pneg %p279
      $region42: #{fpn_forward.3} parent=5 // pred_check_branch
        %282 = sbr.rel (%p280) target = $region44
      $region43: #{fpn_forward.3} parent=5 // pred_region
        // Predicated region
        $region45: #{fpn_forward.3} parent=43 // pred_check
          %p283 = pneg %p38
        $region46: #{fpn_forward.3} parent=43 // pred_check_branch
          %285 = sbr.rel (%p283) target = $region48
        $region47: #{fpn_forward.3} parent=43 // pred_region
          %s286 = smul.u32 32, %s18
          %p287 = scmp.lt.s32.totalorder %s286, 63
          %s288 = scalar_select %p287, %s286, 63
          %s289 = smul.addr %s288, 2
          %s290 = smul.addr %s289, 4
          %s291 = scalar_lea.vmem %s0, %s290
          %s292 = smul.u32 32, %s18
        $region48: #{fpn_forward.3} parent=43 // pred_fallthru
          _
        // Predicated region
        $region49: #{fpn_forward.3} parent=43 // pred_check
          %p293 = pneg %p64
        $region50: #{fpn_forward.3} parent=43 // pred_check_branch
          %295 = sbr.rel (%p293) target = $region52
        $region51: #{fpn_forward.3} parent=43 // pred_region
          %s296 = smul.u32 32, %s18
          %p297 = scmp.lt.s32.totalorder %s296, 63
          %s298 = scalar_select %p297, %s296, 63
          %s299 = smul.addr %s298, 4
          %s300 = scalar_lea.vmem %s1, %s299
          %s301 = smul.u32 32, %s18
        $region52: #{fpn_forward.3} parent=43 // pred_fallthru
          _
      $region44: #{fpn_forward.3} parent=5 // pred_fallthru
        _
      %p302 = scmp.le.s32.totalorder 1, %s18
      %p303 = scmp.lt.s32.totalorder %s18, 3
      %p304 = pnand %p302, %p303
      %p305 = pneg %p304
      // Predicated region
      $region53: #{fpn_forward.3} parent=5 // pred_check
        _
      $region54: #{fpn_forward.3} parent=5 // pred_check_branch
        %307 = sbr.rel (%p304) target = $region56
      $region55: #{fpn_forward.3} parent=5 // pred_region
        %s308 = ssub.s32 %s18, 1
        %s309 = smul.u32 32, %s23
        %p310 = scmp.lt.s32.totalorder %s309, 63
        %s311 = scalar_select %p310, %s309, 63
        %s312 = smul.addr %s311, 2
        %s313 = smul.addr %s312, 4
        %s314 = scalar_lea.vmem %s0, %s313
        %p315 = pneg %p44
        %p316 = pneg %p41
        %s317 = smul.u32 32, %s23
        %p318 = scmp.lt.s32.totalorder %s317, 63
        %s319 = scalar_select %p318, %s317, 63
        %s320 = smul.addr %s319, 4
        %s321 = scalar_lea.vmem %s1, %s320
        %p322 = pneg %p70
        %p323 = pneg %p67
        %p324 = pneg %p91
        %p325 = pneg %p88
        %p326 = pneg %p112
        %p327 = pneg %p109
        %p328 = pneg %p133
        %p329 = pneg %p130
        %p330 = pneg %p154
        %p331 = pneg %p151
        %p332 = pneg %p175
        %p333 = pneg %p172
        %p334 = pneg %p196
        %p335 = pneg %p193
        %p336 = pneg %p217
        %p337 = pneg %p214
        %p338 = pneg %p243
        %p339 = pneg %p240
        %s340 = sand.u32 %s230, 1
        %s341 = scalar_lea.sflag [#allocation3], %s340
        %s342 = sand.u32 %s230, 1
        %s343 = smul.addr %s342, 512
        %s344 = scalar_lea.vmem [#allocation2], %s343
        %s345 = smul.u32 32, %s23
        %p346 = scmp.lt.s32.totalorder %s345, 63
        %s347 = scalar_select %p346, %s345, 63
        %s348 = smul.addr %s347, 2
        %s349 = smul.addr %s348, 4
        %s350 = scalar_lea.vmem %s0, %s349
        %s351 = smul.u32 32, %s23
        %s352 = smul.u32 32, %s23
        %p353 = scmp.lt.s32.totalorder %s352, 63
        %s354 = scalar_select %p353, %s352, 63
        %s355 = smul.addr %s354, 4
        %s356 = scalar_lea.vmem %s1, %s355
        %s357 = smul.u32 32, %s23
        %s358 = smul.u32 32, %s23
        %v360 = vld [vmem:[%s350] sm:$0xff]
        %v361 = vld [vmem:[%s350 + $0x8] sm:$0xff]
        %v362 = vld [vmem:[%s350 + $0x10] sm:$0xff]
        %v363 = vld [vmem:[%s350 + $0x18] sm:$0xff]
        %v364 = vld [vmem:[%s350 + $0x20] sm:$0xff]
        %v365 = vld [vmem:[%s350 + $0x28] sm:$0xff]
        %v366 = vld [vmem:[%s350 + $0x30] sm:$0xff]
        %v367 = vld [vmem:[%s350 + $0x38] sm:$0xff]
        %v368 = vld [vmem:[%s350 + $0x40] sm:$0xff]
        %v369 = vld [vmem:[%s350 + $0x48] sm:$0xff]
        %v370 = vld [vmem:[%s350 + $0x50] sm:$0xff]
        %v371 = vld [vmem:[%s350 + $0x58] sm:$0xff]
        %v372 = vld [vmem:[%s350 + $0x60] sm:$0xff]
        %v373 = vld [vmem:[%s350 + $0x68] sm:$0xff]
        %v374 = vld [vmem:[%s350 + $0x70] sm:$0xff]
        %v375 = vld [vmem:[%s350 + $0x78] sm:$0xff]
        %v376 = vld [vmem:[%s350 + $0x80] sm:$0xff]
        %v377 = vld [vmem:[%s350 + $0x88] sm:$0xff]
        %v378 = vld [vmem:[%s350 + $0x90] sm:$0xff]
        %v379 = vld [vmem:[%s350 + $0x98] sm:$0xff]
        %v380 = vld [vmem:[%s350 + $0xa0] sm:$0xff]
        %v381 = vld [vmem:[%s350 + $0xa8] sm:$0xff]
        %v382 = vld [vmem:[%s350 + $0xb0] sm:$0xff]
        %v383 = vld [vmem:[%s350 + $0xb8] sm:$0xff]
        %v384 = vld [vmem:[%s350 + $0xc0] sm:$0xff]
        %v385 = vld [vmem:[%s350 + $0xc8] sm:$0xff]
        %v386 = vld [vmem:[%s350 + $0xd0] sm:$0xff]
        %v387 = vld [vmem:[%s350 + $0xd8] sm:$0xff]
        %v388 = vld [vmem:[%s350 + $0xe0] sm:$0xff]
        %v389 = vld [vmem:[%s350 + $0xe8] sm:$0xff]
        %v390 = vld [vmem:[%s350 + $0xf0] sm:$0xff]
        %v391 = vld [vmem:[%s350 + $0xf8] sm:$0xff]
        %v392 = vld [vmem:[%s3] sm:$0xff]
        %v393 = vld [vmem:[%s3 + $0x8] sm:$0xff]
        %v394 = vld [vmem:[%s3 + $0x10] sm:$0xff]
        %v395 = vld [vmem:[%s3 + $0x18] sm:$0xff]
        %v396 = vld [vmem:[%s3 + $0x20] sm:$0xff]
        %v397 = vld [vmem:[%s3 + $0x28] sm:$0xff]
        %v398 = vld [vmem:[%s3 + $0x30] sm:$0xff]
        %v399 = vld [vmem:[%s3 + $0x38] sm:$0xff]
        %v400 = vld [vmem:[%s3 + $0x40] sm:$0xff]
        %v401 = vld [vmem:[%s3 + $0x48] sm:$0xff]
        %v402 = vld [vmem:[%s3 + $0x50] sm:$0xff]
        %v403 = vld [vmem:[%s3 + $0x58] sm:$0xff]
        %v404 = vld [vmem:[%s3 + $0x60] sm:$0xff]
        %v405 = vld [vmem:[%s3 + $0x68] sm:$0xff]
        %v406 = vld [vmem:[%s3 + $0x70] sm:$0xff]
        %v407 = vld [vmem:[%s3 + $0x78] sm:$0xff]
        %v408 = vld [vmem:[%s3 + $0x80] sm:$0xff]
        %v409 = vld [vmem:[%s3 + $0x88] sm:$0xff]
        %v410 = vld [vmem:[%s3 + $0x90] sm:$0xff]
        %v411 = vld [vmem:[%s3 + $0x98] sm:$0xff]
        %v412 = vld [vmem:[%s3 + $0xa0] sm:$0xff]
        %v413 = vld [vmem:[%s3 + $0xa8] sm:$0xff]
        %v414 = vld [vmem:[%s3 + $0xb0] sm:$0xff]
        %v415 = vld [vmem:[%s3 + $0xb8] sm:$0xff]
        %v416 = vld [vmem:[%s3 + $0xc0] sm:$0xff]
        %v417 = vld [vmem:[%s3 + $0xc8] sm:$0xff]
        %v418 = vld [vmem:[%s3 + $0xd0] sm:$0xff]
        %v419 = vld [vmem:[%s3 + $0xd8] sm:$0xff]
        %v420 = vld [vmem:[%s3 + $0xe0] sm:$0xff]
        %v421 = vld [vmem:[%s3 + $0xe8] sm:$0xff]
        %v422 = vld [vmem:[%s3 + $0xf0] sm:$0xff]
        %v423 = vld [vmem:[%s3 + $0xf8] sm:$0xff]
        %v456 = vunpack.c.l.b16 %v360
        %v457 = vunpack.c.h.b16 %v360
        %v458 = vunpack.c.l.b16 %v361
        %v459 = vunpack.c.h.b16 %v361
        %v460 = vunpack.c.l.b16 %v362
        %v461 = vunpack.c.h.b16 %v362
        %v462 = vunpack.c.l.b16 %v363
        %v463 = vunpack.c.h.b16 %v363
        %v464 = vunpack.c.l.b16 %v364
        %v465 = vunpack.c.h.b16 %v364
        %v466 = vunpack.c.l.b16 %v365
        %v467 = vunpack.c.h.b16 %v365
        %v468 = vunpack.c.l.b16 %v366
        %v469 = vunpack.c.h.b16 %v366
        %v470 = vunpack.c.l.b16 %v367
        %v471 = vunpack.c.h.b16 %v367
        %v472 = vunpack.c.l.b16 %v368
        %v473 = vunpack.c.h.b16 %v368
        %v474 = vunpack.c.l.b16 %v369
        %v475 = vunpack.c.h.b16 %v369
        %v476 = vunpack.c.l.b16 %v370
        %v477 = vunpack.c.h.b16 %v370
        %v478 = vunpack.c.l.b16 %v371
        %v479 = vunpack.c.h.b16 %v371
        %v480 = vunpack.c.l.b16 %v372
        %v481 = vunpack.c.h.b16 %v372
        %v482 = vunpack.c.l.b16 %v373
        %v483 = vunpack.c.h.b16 %v373
        %v484 = vunpack.c.l.b16 %v374
        %v485 = vunpack.c.h.b16 %v374
        %v486 = vunpack.c.l.b16 %v375
        %v487 = vunpack.c.h.b16 %v375
        %v488 = vunpack.c.l.b16 %v376
        %v489 = vunpack.c.h.b16 %v376
        %v490 = vunpack.c.l.b16 %v377
        %v491 = vunpack.c.h.b16 %v377
        %v492 = vunpack.c.l.b16 %v378
        %v493 = vunpack.c.h.b16 %v378
        %v494 = vunpack.c.l.b16 %v379
        %v495 = vunpack.c.h.b16 %v379
        %v496 = vunpack.c.l.b16 %v380
        %v497 = vunpack.c.h.b16 %v380
        %v498 = vunpack.c.l.b16 %v381
        %v499 = vunpack.c.h.b16 %v381
        %v500 = vunpack.c.l.b16 %v382
        %v501 = vunpack.c.h.b16 %v382
        %v502 = vunpack.c.l.b16 %v383
        %v503 = vunpack.c.h.b16 %v383
        %v504 = vunpack.c.l.b16 %v384
        %v505 = vunpack.c.h.b16 %v384
        %v506 = vunpack.c.l.b16 %v385
        %v507 = vunpack.c.h.b16 %v385
        %v508 = vunpack.c.l.b16 %v386
        %v509 = vunpack.c.h.b16 %v386
        %v510 = vunpack.c.l.b16 %v387
        %v511 = vunpack.c.h.b16 %v387
        %v512 = vunpack.c.l.b16 %v388
        %v513 = vunpack.c.h.b16 %v388
        %v514 = vunpack.c.l.b16 %v389
        %v515 = vunpack.c.h.b16 %v389
        %v516 = vunpack.c.l.b16 %v390
        %v517 = vunpack.c.h.b16 %v390
        %v518 = vunpack.c.l.b16 %v391
        %v519 = vunpack.c.h.b16 %v391
        %v520 = vpack.c.b16 %v458, %v456
        %v521 = vpack.c.b16 %v459, %v457
        %v522 = vpack.c.b16 %v462, %v460
        %v523 = vpack.c.b16 %v463, %v461
        %v524 = vpack.c.b16 %v466, %v464
        %v525 = vpack.c.b16 %v467, %v465
        %v526 = vpack.c.b16 %v470, %v468
        %v527 = vpack.c.b16 %v471, %v469
        %v528 = vpack.c.b16 %v474, %v472
        %v529 = vpack.c.b16 %v475, %v473
        %v530 = vpack.c.b16 %v478, %v476
        %v531 = vpack.c.b16 %v479, %v477
        %v532 = vpack.c.b16 %v482, %v480
        %v533 = vpack.c.b16 %v483, %v481
        %v534 = vpack.c.b16 %v486, %v484
        %v535 = vpack.c.b16 %v487, %v485
        %v536 = vpack.c.b16 %v490, %v488
        %v537 = vpack.c.b16 %v491, %v489
        %v538 = vpack.c.b16 %v494, %v492
        %v539 = vpack.c.b16 %v495, %v493
        %v540 = vpack.c.b16 %v498, %v496
        %v541 = vpack.c.b16 %v499, %v497
        %v542 = vpack.c.b16 %v502, %v500
        %v543 = vpack.c.b16 %v503, %v501
        %v544 = vpack.c.b16 %v506, %v504
        %v545 = vpack.c.b16 %v507, %v505
        %v546 = vpack.c.b16 %v510, %v508
        %v547 = vpack.c.b16 %v511, %v509
        %v548 = vpack.c.b16 %v514, %v512
        %v549 = vpack.c.b16 %v515, %v513
        %v550 = vpack.c.b16 %v518, %v516
        %v551 = vpack.c.b16 %v519, %v517
        %v616 = vunpack.c.l.b16 %v392
        %v617 = vunpack.c.h.b16 %v392
        %v618 = vunpack.c.l.b16 %v393
        %v619 = vunpack.c.h.b16 %v393
        %v620 = vunpack.c.l.b16 %v394
        %v621 = vunpack.c.h.b16 %v394
        %v622 = vunpack.c.l.b16 %v395
        %v623 = vunpack.c.h.b16 %v395
        %v624 = vunpack.c.l.b16 %v396
        %v625 = vunpack.c.h.b16 %v396
        %v626 = vunpack.c.l.b16 %v397
        %v627 = vunpack.c.h.b16 %v397
        %v628 = vunpack.c.l.b16 %v398
        %v629 = vunpack.c.h.b16 %v398
        %v630 = vunpack.c.l.b16 %v399
        %v631 = vunpack.c.h.b16 %v399
        %v632 = vunpack.c.l.b16 %v400
        %v633 = vunpack.c.h.b16 %v400
        %v634 = vunpack.c.l.b16 %v401
        %v635 = vunpack.c.h.b16 %v401
        %v636 = vunpack.c.l.b16 %v402
        %v637 = vunpack.c.h.b16 %v402
        %v638 = vunpack.c.l.b16 %v403
        %v639 = vunpack.c.h.b16 %v403
        %v640 = vunpack.c.l.b16 %v404
        %v641 = vunpack.c.h.b16 %v404
        %v642 = vunpack.c.l.b16 %v405
        %v643 = vunpack.c.h.b16 %v405
        %v644 = vunpack.c.l.b16 %v406
        %v645 = vunpack.c.h.b16 %v406
        %v646 = vunpack.c.l.b16 %v407
        %v647 = vunpack.c.h.b16 %v407
        %v648 = vunpack.c.l.b16 %v408
        %v649 = vunpack.c.h.b16 %v408
        %v650 = vunpack.c.l.b16 %v409
        %v651 = vunpack.c.h.b16 %v409
        %v652 = vunpack.c.l.b16 %v410
        %v653 = vunpack.c.h.b16 %v410
        %v654 = vunpack.c.l.b16 %v411
        %v655 = vunpack.c.h.b16 %v411
        %v656 = vunpack.c.l.b16 %v412
        %v657 = vunpack.c.h.b16 %v412
        %v658 = vunpack.c.l.b16 %v413
        %v659 = vunpack.c.h.b16 %v413
        %v660 = vunpack.c.l.b16 %v414
        %v661 = vunpack.c.h.b16 %v414
        %v662 = vunpack.c.l.b16 %v415
        %v663 = vunpack.c.h.b16 %v415
        %v664 = vunpack.c.l.b16 %v416
        %v665 = vunpack.c.h.b16 %v416
        %v666 = vunpack.c.l.b16 %v417
        %v667 = vunpack.c.h.b16 %v417
        %v668 = vunpack.c.l.b16 %v418
        %v669 = vunpack.c.h.b16 %v418
        %v670 = vunpack.c.l.b16 %v419
        %v671 = vunpack.c.h.b16 %v419
        %v672 = vunpack.c.l.b16 %v420
        %v673 = vunpack.c.h.b16 %v420
        %v674 = vunpack.c.l.b16 %v421
        %v675 = vunpack.c.h.b16 %v421
        %v676 = vunpack.c.l.b16 %v422
        %v677 = vunpack.c.h.b16 %v422
        %v678 = vunpack.c.l.b16 %v423
        %v679 = vunpack.c.h.b16 %v423
        %v680 = vpack.c.b16 %v618, %v616
        %v681 = vpack.c.b16 %v619, %v617
        %v682 = vpack.c.b16 %v622, %v620
        %v683 = vpack.c.b16 %v623, %v621
        %v684 = vpack.c.b16 %v626, %v624
        %v685 = vpack.c.b16 %v627, %v625
        %v686 = vpack.c.b16 %v630, %v628
        %v687 = vpack.c.b16 %v631, %v629
        %v688 = vpack.c.b16 %v634, %v632
        %v689 = vpack.c.b16 %v635, %v633
        %v690 = vpack.c.b16 %v638, %v636
        %v691 = vpack.c.b16 %v639, %v637
        %v692 = vpack.c.b16 %v642, %v640
        %v693 = vpack.c.b16 %v643, %v641
        %v694 = vpack.c.b16 %v646, %v644
        %v695 = vpack.c.b16 %v647, %v645
        %v696 = vpack.c.b16 %v650, %v648
        %v697 = vpack.c.b16 %v651, %v649
        %v698 = vpack.c.b16 %v654, %v652
        %v699 = vpack.c.b16 %v655, %v653
        %v700 = vpack.c.b16 %v658, %v656
        %v701 = vpack.c.b16 %v659, %v657
        %v702 = vpack.c.b16 %v662, %v660
        %v703 = vpack.c.b16 %v663, %v661
        %v704 = vpack.c.b16 %v666, %v664
        %v705 = vpack.c.b16 %v667, %v665
        %v706 = vpack.c.b16 %v670, %v668
        %v707 = vpack.c.b16 %v671, %v669
        %v708 = vpack.c.b16 %v674, %v672
        %v709 = vpack.c.b16 %v675, %v673
        %v710 = vpack.c.b16 %v678, %v676
        %v711 = vpack.c.b16 %v679, %v677
        %744 = vmatprep.subr.bf16.mxu0 %v695
        %745 = vmatpush1.bf16.msra.mxu0 %v694
        %746 = vmatprep.subr.bf16.mxu0 %v693
        %747 = vmatpush1.bf16.msra.mxu0 %v692
        %748 = vmatprep.subr.bf16.mxu0 %v691
        %749 = vmatpush1.bf16.msra.mxu0 %v690
        %750 = vmatprep.subr.bf16.mxu0 %v689
        %751 = vmatpush1.bf16.msra.mxu0 %v688
        %752 = vmatprep.subr.bf16.mxu0 %v687
        %753 = vmatpush1.bf16.msra.mxu0 %v686
        %754 = vmatprep.subr.bf16.mxu0 %v685
        %755 = vmatpush1.bf16.msra.mxu0 %v684
        %756 = vmatprep.subr.bf16.mxu0 %v683
        %757 = vmatpush1.bf16.msra.mxu0 %v682
        %758 = vmatprep.subr.bf16.mxu0 %v681
        %759 = vmatpush1.bf16.msra.mxu0 %v680
        %760 = vmatprep.subr.bf16.mxu0 %v711
        %761 = vmatpush2.bf16.msra.mxu0 %v710
        %762 = vmatprep.subr.bf16.mxu0 %v709
        %763 = vmatpush2.bf16.msra.mxu0 %v708
        %764 = vmatprep.subr.bf16.mxu0 %v707
        %765 = vmatpush2.bf16.msra.mxu0 %v706
        %766 = vmatprep.subr.bf16.mxu0 %v705
        %767 = vmatpush2.bf16.msra.mxu0 %v704
        %768 = vmatprep.subr.bf16.mxu0 %v703
        %769 = vmatpush2.bf16.msra.mxu0 %v702
        %770 = vmatprep.subr.bf16.mxu0 %v701
        %771 = vmatpush2.bf16.msra.mxu0 %v700
        %772 = vmatprep.subr.bf16.mxu0 %v699
        %773 = vmatpush2.bf16.msra.mxu0 %v698
        %774 = vmatprep.subr.bf16.mxu0 %v697
        %775 = vmatpush2.bf16.msra.mxu0 %v696
        %776 = vmatprep.mubr.bf16.mxu0 %v521
        %777 = vmatmul.mubr.bf16.gmra.mxu0 %v520
        %v778 = vpop.f32.mrf.mxu0
        %v779 = vadd.f32 0.0, %v778
        %v780 = vpop.f32.mrf.mxu0
        %v781 = vadd.f32 0.0, %v780
        %v782 = vpop.f32.mrf.mxu0
        %v783 = vadd.f32 0.0, %v782
        %v784 = vpop.f32.mrf.mxu0
        %v785 = vadd.f32 0.0, %v784
        %786 = vmatprep.mubr.bf16.mxu0 %v523
        %787 = vmatmul.mubr.bf16.gmra.mxu0 %v522
        %v788 = vpop.f32.mrf.mxu0
        %v789 = vadd.f32 0.0, %v788
        %v790 = vpop.f32.mrf.mxu0
        %v791 = vadd.f32 0.0, %v790
        %v792 = vpop.f32.mrf.mxu0
        %v793 = vadd.f32 0.0, %v792
        %v794 = vpop.f32.mrf.mxu0
        %v795 = vadd.f32 0.0, %v794
        %796 = vmatprep.mubr.bf16.mxu0 %v525
        %797 = vmatmul.mubr.bf16.gmra.mxu0 %v524
        %v798 = vpop.f32.mrf.mxu0
        %v799 = vadd.f32 0.0, %v798
        %v800 = vpop.f32.mrf.mxu0
        %v801 = vadd.f32 0.0, %v800
        %v802 = vpop.f32.mrf.mxu0
        %v803 = vadd.f32 0.0, %v802
        %v804 = vpop.f32.mrf.mxu0
        %v805 = vadd.f32 0.0, %v804
        %806 = vmatprep.mubr.bf16.mxu0 %v527
        %807 = vmatmul.mubr.bf16.gmra.mxu0 %v526
        %v808 = vpop.f32.mrf.mxu0
        %v809 = vadd.f32 0.0, %v808
        %v810 = vpop.f32.mrf.mxu0
        %v811 = vadd.f32 0.0, %v810
        %v812 = vpop.f32.mrf.mxu0
        %v813 = vadd.f32 0.0, %v812
        %v814 = vpop.f32.mrf.mxu0
        %v815 = vadd.f32 0.0, %v814
        %816 = vmatprep.mubr.bf16.mxu0 %v529
        %817 = vmatmul.mubr.bf16.gmra.mxu0 %v528
        %v818 = vpop.f32.mrf.mxu0
        %v819 = vadd.f32 0.0, %v818
        %v820 = vpop.f32.mrf.mxu0
        %v821 = vadd.f32 0.0, %v820
        %v822 = vpop.f32.mrf.mxu0
        %v823 = vadd.f32 0.0, %v822
        %v824 = vpop.f32.mrf.mxu0
        %v825 = vadd.f32 0.0, %v824
        %826 = vmatprep.mubr.bf16.mxu0 %v531
        %827 = vmatmul.mubr.bf16.gmra.mxu0 %v530
        %v828 = vpop.f32.mrf.mxu0
        %v829 = vadd.f32 0.0, %v828
        %v830 = vpop.f32.mrf.mxu0
        %v831 = vadd.f32 0.0, %v830
        %v832 = vpop.f32.mrf.mxu0
        %v833 = vadd.f32 0.0, %v832
        %v834 = vpop.f32.mrf.mxu0
        %v835 = vadd.f32 0.0, %v834
        %836 = vmatprep.mubr.bf16.mxu0 %v533
        %837 = vmatmul.mubr.bf16.gmra.mxu0 %v532
        %v838 = vpop.f32.mrf.mxu0
        %v839 = vadd.f32 0.0, %v838
        %v840 = vpop.f32.mrf.mxu0
        %v841 = vadd.f32 0.0, %v840
        %v842 = vpop.f32.mrf.mxu0
        %v843 = vadd.f32 0.0, %v842
        %v844 = vpop.f32.mrf.mxu0
        %v845 = vadd.f32 0.0, %v844
        %846 = vmatprep.mubr.bf16.mxu0 %v535
        %847 = vmatmul.mubr.bf16.gmra.mxu0 %v534
        %v848 = vpop.f32.mrf.mxu0
        %v849 = vadd.f32 0.0, %v848
        %v850 = vpop.f32.mrf.mxu0
        %v851 = vadd.f32 0.0, %v850
        %v852 = vpop.f32.mrf.mxu0
        %v853 = vadd.f32 0.0, %v852
        %v854 = vpop.f32.mrf.mxu0
        %v855 = vadd.f32 0.0, %v854
        %856 = vmatprep.mubr.bf16.mxu0 %v537
        %857 = vmatmul.mubr.bf16.gmra.mxu0 %v536
        %v858 = vpop.f32.mrf.mxu0
        %v859 = vadd.f32 0.0, %v858
        %v860 = vpop.f32.mrf.mxu0
        %v861 = vadd.f32 0.0, %v860
        %v862 = vpop.f32.mrf.mxu0
        %v863 = vadd.f32 0.0, %v862
        %v864 = vpop.f32.mrf.mxu0
        %v865 = vadd.f32 0.0, %v864
        %866 = vmatprep.mubr.bf16.mxu0 %v539
        %867 = vmatmul.mubr.bf16.gmra.mxu0 %v538
        %v868 = vpop.f32.mrf.mxu0
        %v869 = vadd.f32 0.0, %v868
        %v870 = vpop.f32.mrf.mxu0
        %v871 = vadd.f32 0.0, %v870
        %v872 = vpop.f32.mrf.mxu0
        %v873 = vadd.f32 0.0, %v872
        %v874 = vpop.f32.mrf.mxu0
        %v875 = vadd.f32 0.0, %v874
        %876 = vmatprep.mubr.bf16.mxu0 %v541
        %877 = vmatmul.mubr.bf16.gmra.mxu0 %v540
        %v878 = vpop.f32.mrf.mxu0
        %v879 = vadd.f32 0.0, %v878
        %v880 = vpop.f32.mrf.mxu0
        %v881 = vadd.f32 0.0, %v880
        %v882 = vpop.f32.mrf.mxu0
        %v883 = vadd.f32 0.0, %v882
        %v884 = vpop.f32.mrf.mxu0
        %v885 = vadd.f32 0.0, %v884
        %886 = vmatprep.mubr.bf16.mxu0 %v543
        %887 = vmatmul.mubr.bf16.gmra.mxu0 %v542
        %v888 = vpop.f32.mrf.mxu0
        %v889 = vadd.f32 0.0, %v888
        %v890 = vpop.f32.mrf.mxu0
        %v891 = vadd.f32 0.0, %v890
        %v892 = vpop.f32.mrf.mxu0
        %v893 = vadd.f32 0.0, %v892
        %v894 = vpop.f32.mrf.mxu0
        %v895 = vadd.f32 0.0, %v894
        %896 = vmatprep.mubr.bf16.mxu0 %v545
        %897 = vmatmul.mubr.bf16.gmra.mxu0 %v544
        %v898 = vpop.f32.mrf.mxu0
        %v899 = vadd.f32 0.0, %v898
        %v900 = vpop.f32.mrf.mxu0
        %v901 = vadd.f32 0.0, %v900
        %v902 = vpop.f32.mrf.mxu0
        %v903 = vadd.f32 0.0, %v902
        %v904 = vpop.f32.mrf.mxu0
        %v905 = vadd.f32 0.0, %v904
        %906 = vmatprep.mubr.bf16.mxu0 %v547
        %907 = vmatmul.mubr.bf16.gmra.mxu0 %v546
        %v908 = vpop.f32.mrf.mxu0
        %v909 = vadd.f32 0.0, %v908
        %v910 = vpop.f32.mrf.mxu0
        %v911 = vadd.f32 0.0, %v910
        %v912 = vpop.f32.mrf.mxu0
        %v913 = vadd.f32 0.0, %v912
        %v914 = vpop.f32.mrf.mxu0
        %v915 = vadd.f32 0.0, %v914
        %916 = vmatprep.mubr.bf16.mxu0 %v549
        %917 = vmatmul.mubr.bf16.gmra.mxu0 %v548
        %v918 = vpop.f32.mrf.mxu0
        %v919 = vadd.f32 0.0, %v918
        %v920 = vpop.f32.mrf.mxu0
        %v921 = vadd.f32 0.0, %v920
        %v922 = vpop.f32.mrf.mxu0
        %v923 = vadd.f32 0.0, %v922
        %v924 = vpop.f32.mrf.mxu0
        %v925 = vadd.f32 0.0, %v924
        %926 = vmatprep.mubr.bf16.mxu0 %v551
        %927 = vmatmul.mubr.bf16.gmra.mxu0 %v550
        %v928 = vpop.f32.mrf.mxu0
        %v929 = vadd.f32 0.0, %v928
        %v930 = vpop.f32.mrf.mxu0
        %v931 = vadd.f32 0.0, %v930
        %v932 = vpop.f32.mrf.mxu0
        %v933 = vadd.f32 0.0, %v932
        %v934 = vpop.f32.mrf.mxu0
        %v935 = vadd.f32 0.0, %v934
        %936 = vdwg.mxu0
        %v937 = vld [vmem:[%s4] sm:$0x3]
        %v939 = vlaneseq
        %v940 = vshrl.u32 %v939, 7
        %v941 = vsub.s32 0, %v940
        %v942 = vrot.slane %v937, %v941
        %v943 = vlaneseq
        %v944 = vshrl.u32 %v943, 7
        %v945 = vsub.s32 1, %v944
        %v946 = vrot.slane %v937, %v945
        %v949 = vmul.f32 %v779, %v942
        %v950 = vmul.f32 %v781, %v946
        %v951 = vmul.f32 %v783, %v942
        %v952 = vmul.f32 %v785, %v946
        %v953 = vmul.f32 %v789, %v942
        %v954 = vmul.f32 %v791, %v946
        %v955 = vmul.f32 %v793, %v942
        %v956 = vmul.f32 %v795, %v946
        %v957 = vmul.f32 %v799, %v942
        %v958 = vmul.f32 %v801, %v946
        %v959 = vmul.f32 %v803, %v942
        %v960 = vmul.f32 %v805, %v946
        %v961 = vmul.f32 %v809, %v942
        %v962 = vmul.f32 %v811, %v946
        %v963 = vmul.f32 %v813, %v942
        %v964 = vmul.f32 %v815, %v946
        %v965 = vmul.f32 %v819, %v942
        %v966 = vmul.f32 %v821, %v946
        %v967 = vmul.f32 %v823, %v942
        %v968 = vmul.f32 %v825, %v946
        %v969 = vmul.f32 %v829, %v942
        %v970 = vmul.f32 %v831, %v946
        %v971 = vmul.f32 %v833, %v942
        %v972 = vmul.f32 %v835, %v946
        %v973 = vmul.f32 %v839, %v942
        %v974 = vmul.f32 %v841, %v946
        %v975 = vmul.f32 %v843, %v942
        %v976 = vmul.f32 %v845, %v946
        %v977 = vmul.f32 %v849, %v942
        %v978 = vmul.f32 %v851, %v946
        %v979 = vmul.f32 %v853, %v942
        %v980 = vmul.f32 %v855, %v946
        %v981 = vmul.f32 %v859, %v942
        %v982 = vmul.f32 %v861, %v946
        %v983 = vmul.f32 %v863, %v942
        %v984 = vmul.f32 %v865, %v946
        %v985 = vmul.f32 %v869, %v942
        %v986 = vmul.f32 %v871, %v946
        %v987 = vmul.f32 %v873, %v942
        %v988 = vmul.f32 %v875, %v946
        %v989 = vmul.f32 %v879, %v942
        %v990 = vmul.f32 %v881, %v946
        %v991 = vmul.f32 %v883, %v942
        %v992 = vmul.f32 %v885, %v946
        %v993 = vmul.f32 %v889, %v942
        %v994 = vmul.f32 %v891, %v946
        %v995 = vmul.f32 %v893, %v942
        %v996 = vmul.f32 %v895, %v946
        %v997 = vmul.f32 %v899, %v942
        %v998 = vmul.f32 %v901, %v946
        %v999 = vmul.f32 %v903, %v942
        %v1000 = vmul.f32 %v905, %v946
        %v1001 = vmul.f32 %v909, %v942
        %v1002 = vmul.f32 %v911, %v946
        %v1003 = vmul.f32 %v913, %v942
        %v1004 = vmul.f32 %v915, %v946
        %v1005 = vmul.f32 %v919, %v942
        %v1006 = vmul.f32 %v921, %v946
        %v1007 = vmul.f32 %v923, %v942
        %v1008 = vmul.f32 %v925, %v946
        %v1009 = vmul.f32 %v929, %v942
        %v1010 = vmul.f32 %v931, %v946
        %v1011 = vmul.f32 %v933, %v942
        %v1012 = vmul.f32 %v935, %v946
        %v1013 = vld [vmem:[%s5] sm:$0x3]
        %v1015 = vlaneseq
        %v1016 = vshrl.u32 %v1015, 7
        %v1017 = vsub.s32 0, %v1016
        %v1018 = vrot.slane %v1013, %v1017
        %v1019 = vlaneseq
        %v1020 = vshrl.u32 %v1019, 7
        %v1021 = vsub.s32 1, %v1020
        %v1022 = vrot.slane %v1013, %v1021
        %v1025 = vadd.f32 %v949, %v1018
        %v1026 = vadd.f32 %v950, %v1022
        %v1027 = vadd.f32 %v951, %v1018
        %v1028 = vadd.f32 %v952, %v1022
        %v1029 = vadd.f32 %v953, %v1018
        %v1030 = vadd.f32 %v954, %v1022
        %v1031 = vadd.f32 %v955, %v1018
        %v1032 = vadd.f32 %v956, %v1022
        %v1033 = vadd.f32 %v957, %v1018
        %v1034 = vadd.f32 %v958, %v1022
        %v1035 = vadd.f32 %v959, %v1018
        %v1036 = vadd.f32 %v960, %v1022
        %v1037 = vadd.f32 %v961, %v1018
        %v1038 = vadd.f32 %v962, %v1022
        %v1039 = vadd.f32 %v963, %v1018
        %v1040 = vadd.f32 %v964, %v1022
        %v1041 = vadd.f32 %v965, %v1018
        %v1042 = vadd.f32 %v966, %v1022
        %v1043 = vadd.f32 %v967, %v1018
        %v1044 = vadd.f32 %v968, %v1022
        %v1045 = vadd.f32 %v969, %v1018
        %v1046 = vadd.f32 %v970, %v1022
        %v1047 = vadd.f32 %v971, %v1018
        %v1048 = vadd.f32 %v972, %v1022
        %v1049 = vadd.f32 %v973, %v1018
        %v1050 = vadd.f32 %v974, %v1022
        %v1051 = vadd.f32 %v975, %v1018
        %v1052 = vadd.f32 %v976, %v1022
        %v1053 = vadd.f32 %v977, %v1018
        %v1054 = vadd.f32 %v978, %v1022
        %v1055 = vadd.f32 %v979, %v1018
        %v1056 = vadd.f32 %v980, %v1022
        %v1057 = vadd.f32 %v981, %v1018
        %v1058 = vadd.f32 %v982, %v1022
        %v1059 = vadd.f32 %v983, %v1018
        %v1060 = vadd.f32 %v984, %v1022
        %v1061 = vadd.f32 %v985, %v1018
        %v1062 = vadd.f32 %v986, %v1022
        %v1063 = vadd.f32 %v987, %v1018
        %v1064 = vadd.f32 %v988, %v1022
        %v1065 = vadd.f32 %v989, %v1018
        %v1066 = vadd.f32 %v990, %v1022
        %v1067 = vadd.f32 %v991, %v1018
        %v1068 = vadd.f32 %v992, %v1022
        %v1069 = vadd.f32 %v993, %v1018
        %v1070 = vadd.f32 %v994, %v1022
        %v1071 = vadd.f32 %v995, %v1018
        %v1072 = vadd.f32 %v996, %v1022
        %v1073 = vadd.f32 %v997, %v1018
        %v1074 = vadd.f32 %v998, %v1022
        %v1075 = vadd.f32 %v999, %v1018
        %v1076 = vadd.f32 %v1000, %v1022
        %v1077 = vadd.f32 %v1001, %v1018
        %v1078 = vadd.f32 %v1002, %v1022
        %v1079 = vadd.f32 %v1003, %v1018
        %v1080 = vadd.f32 %v1004, %v1022
        %v1081 = vadd.f32 %v1005, %v1018
        %v1082 = vadd.f32 %v1006, %v1022
        %v1083 = vadd.f32 %v1007, %v1018
        %v1084 = vadd.f32 %v1008, %v1022
        %v1085 = vadd.f32 %v1009, %v1018
        %v1086 = vadd.f32 %v1010, %v1022
        %v1087 = vadd.f32 %v1011, %v1018
        %v1088 = vadd.f32 %v1012, %v1022
        %vm1089 = vcmp.gt.f32.partialorder %v1025, 0.0
        %vm1090 = vcmp.gt.f32.partialorder %v1026, 0.0
        %vm1091 = vcmp.gt.f32.partialorder %v1027, 0.0
        %vm1092 = vcmp.gt.f32.partialorder %v1028, 0.0
        %vm1093 = vcmp.gt.f32.partialorder %v1029, 0.0
        %vm1094 = vcmp.gt.f32.partialorder %v1030, 0.0
        %vm1095 = vcmp.gt.f32.partialorder %v1031, 0.0
        %vm1096 = vcmp.gt.f32.partialorder %v1032, 0.0
        %vm1097 = vcmp.gt.f32.partialorder %v1033, 0.0
        %vm1098 = vcmp.gt.f32.partialorder %v1034, 0.0
        %vm1099 = vcmp.gt.f32.partialorder %v1035, 0.0
        %vm1100 = vcmp.gt.f32.partialorder %v1036, 0.0
        %vm1101 = vcmp.gt.f32.partialorder %v1037, 0.0
        %vm1102 = vcmp.gt.f32.partialorder %v1038, 0.0
        %vm1103 = vcmp.gt.f32.partialorder %v1039, 0.0
        %vm1104 = vcmp.gt.f32.partialorder %v1040, 0.0
        %vm1105 = vcmp.gt.f32.partialorder %v1041, 0.0
        %vm1106 = vcmp.gt.f32.partialorder %v1042, 0.0
        %vm1107 = vcmp.gt.f32.partialorder %v1043, 0.0
        %vm1108 = vcmp.gt.f32.partialorder %v1044, 0.0
        %vm1109 = vcmp.gt.f32.partialorder %v1045, 0.0
        %vm1110 = vcmp.gt.f32.partialorder %v1046, 0.0
        %vm1111 = vcmp.gt.f32.partialorder %v1047, 0.0
        %vm1112 = vcmp.gt.f32.partialorder %v1048, 0.0
        %vm1113 = vcmp.gt.f32.partialorder %v1049, 0.0
        %vm1114 = vcmp.gt.f32.partialorder %v1050, 0.0
        %vm1115 = vcmp.gt.f32.partialorder %v1051, 0.0
        %vm1116 = vcmp.gt.f32.partialorder %v1052, 0.0
        %vm1117 = vcmp.gt.f32.partialorder %v1053, 0.0
        %vm1118 = vcmp.gt.f32.partialorder %v1054, 0.0
        %vm1119 = vcmp.gt.f32.partialorder %v1055, 0.0
        %vm1120 = vcmp.gt.f32.partialorder %v1056, 0.0
        %vm1121 = vcmp.gt.f32.partialorder %v1057, 0.0
        %vm1122 = vcmp.gt.f32.partialorder %v1058, 0.0
        %vm1123 = vcmp.gt.f32.partialorder %v1059, 0.0
        %vm1124 = vcmp.gt.f32.partialorder %v1060, 0.0
        %vm1125 = vcmp.gt.f32.partialorder %v1061, 0.0
        %vm1126 = vcmp.gt.f32.partialorder %v1062, 0.0
        %vm1127 = vcmp.gt.f32.partialorder %v1063, 0.0
        %vm1128 = vcmp.gt.f32.partialorder %v1064, 0.0
        %vm1129 = vcmp.gt.f32.partialorder %v1065, 0.0
        %vm1130 = vcmp.gt.f32.partialorder %v1066, 0.0
        %vm1131 = vcmp.gt.f32.partialorder %v1067, 0.0
        %vm1132 = vcmp.gt.f32.partialorder %v1068, 0.0
        %vm1133 = vcmp.gt.f32.partialorder %v1069, 0.0
        %vm1134 = vcmp.gt.f32.partialorder %v1070, 0.0
        %vm1135 = vcmp.gt.f32.partialorder %v1071, 0.0
        %vm1136 = vcmp.gt.f32.partialorder %v1072, 0.0
        %vm1137 = vcmp.gt.f32.partialorder %v1073, 0.0
        %vm1138 = vcmp.gt.f32.partialorder %v1074, 0.0
        %vm1139 = vcmp.gt.f32.partialorder %v1075, 0.0
        %vm1140 = vcmp.gt.f32.partialorder %v1076, 0.0
        %vm1141 = vcmp.gt.f32.partialorder %v1077, 0.0
        %vm1142 = vcmp.gt.f32.partialorder %v1078, 0.0
        %vm1143 = vcmp.gt.f32.partialorder %v1079, 0.0
        %vm1144 = vcmp.gt.f32.partialorder %v1080, 0.0
        %vm1145 = vcmp.gt.f32.partialorder %v1081, 0.0
        %vm1146 = vcmp.gt.f32.partialorder %v1082, 0.0
        %vm1147 = vcmp.gt.f32.partialorder %v1083, 0.0
        %vm1148 = vcmp.gt.f32.partialorder %v1084, 0.0
        %vm1149 = vcmp.gt.f32.partialorder %v1085, 0.0
        %vm1150 = vcmp.gt.f32.partialorder %v1086, 0.0
        %vm1151 = vcmp.gt.f32.partialorder %v1087, 0.0
        %vm1152 = vcmp.gt.f32.partialorder %v1088, 0.0
        %v1153 = vmul.f32 %v1025, 0.1
        %v1154 = vmul.f32 %v1026, 0.1
        %v1155 = vmul.f32 %v1027, 0.1
        %v1156 = vmul.f32 %v1028, 0.1
        %v1157 = vmul.f32 %v1029, 0.1
        %v1158 = vmul.f32 %v1030, 0.1
        %v1159 = vmul.f32 %v1031, 0.1
        %v1160 = vmul.f32 %v1032, 0.1
        %v1161 = vmul.f32 %v1033, 0.1
        %v1162 = vmul.f32 %v1034, 0.1
        %v1163 = vmul.f32 %v1035, 0.1
        %v1164 = vmul.f32 %v1036, 0.1
        %v1165 = vmul.f32 %v1037, 0.1
        %v1166 = vmul.f32 %v1038, 0.1
        %v1167 = vmul.f32 %v1039, 0.1
        %v1168 = vmul.f32 %v1040, 0.1
        %v1169 = vmul.f32 %v1041, 0.1
        %v1170 = vmul.f32 %v1042, 0.1
        %v1171 = vmul.f32 %v1043, 0.1
        %v1172 = vmul.f32 %v1044, 0.1
        %v1173 = vmul.f32 %v1045, 0.1
        %v1174 = vmul.f32 %v1046, 0.1
        %v1175 = vmul.f32 %v1047, 0.1
        %v1176 = vmul.f32 %v1048, 0.1
        %v1177 = vmul.f32 %v1049, 0.1
        %v1178 = vmul.f32 %v1050, 0.1
        %v1179 = vmul.f32 %v1051, 0.1
        %v1180 = vmul.f32 %v1052, 0.1
        %v1181 = vmul.f32 %v1053, 0.1
        %v1182 = vmul.f32 %v1054, 0.1
        %v1183 = vmul.f32 %v1055, 0.1
        %v1184 = vmul.f32 %v1056, 0.1
        %v1185 = vmul.f32 %v1057, 0.1
        %v1186 = vmul.f32 %v1058, 0.1
        %v1187 = vmul.f32 %v1059, 0.1
        %v1188 = vmul.f32 %v1060, 0.1
        %v1189 = vmul.f32 %v1061, 0.1
        %v1190 = vmul.f32 %v1062, 0.1
        %v1191 = vmul.f32 %v1063, 0.1
        %v1192 = vmul.f32 %v1064, 0.1
        %v1193 = vmul.f32 %v1065, 0.1
        %v1194 = vmul.f32 %v1066, 0.1
        %v1195 = vmul.f32 %v1067, 0.1
        %v1196 = vmul.f32 %v1068, 0.1
        %v1197 = vmul.f32 %v1069, 0.1
        %v1198 = vmul.f32 %v1070, 0.1
        %v1199 = vmul.f32 %v1071, 0.1
        %v1200 = vmul.f32 %v1072, 0.1
        %v1201 = vmul.f32 %v1073, 0.1
        %v1202 = vmul.f32 %v1074, 0.1
        %v1203 = vmul.f32 %v1075, 0.1
        %v1204 = vmul.f32 %v1076, 0.1
        %v1205 = vmul.f32 %v1077, 0.1
        %v1206 = vmul.f32 %v1078, 0.1
        %v1207 = vmul.f32 %v1079, 0.1
        %v1208 = vmul.f32 %v1080, 0.1
        %v1209 = vmul.f32 %v1081, 0.1
        %v1210 = vmul.f32 %v1082, 0.1
        %v1211 = vmul.f32 %v1083, 0.1
        %v1212 = vmul.f32 %v1084, 0.1
        %v1213 = vmul.f32 %v1085, 0.1
        %v1214 = vmul.f32 %v1086, 0.1
        %v1215 = vmul.f32 %v1087, 0.1
        %v1216 = vmul.f32 %v1088, 0.1
        %v1217 = vsel %vm1089, %v1025, %v1153
        %v1218 = vsel %vm1090, %v1026, %v1154
        %v1219 = vsel %vm1091, %v1027, %v1155
        %v1220 = vsel %vm1092, %v1028, %v1156
        %v1221 = vsel %vm1093, %v1029, %v1157
        %v1222 = vsel %vm1094, %v1030, %v1158
        %v1223 = vsel %vm1095, %v1031, %v1159
        %v1224 = vsel %vm1096, %v1032, %v1160
        %v1225 = vsel %vm1097, %v1033, %v1161
        %v1226 = vsel %vm1098, %v1034, %v1162
        %v1227 = vsel %vm1099, %v1035, %v1163
        %v1228 = vsel %vm1100, %v1036, %v1164
        %v1229 = vsel %vm1101, %v1037, %v1165
        %v1230 = vsel %vm1102, %v1038, %v1166
        %v1231 = vsel %vm1103, %v1039, %v1167
        %v1232 = vsel %vm1104, %v1040, %v1168
        %v1233 = vsel %vm1105, %v1041, %v1169
        %v1234 = vsel %vm1106, %v1042, %v1170
        %v1235 = vsel %vm1107, %v1043, %v1171
        %v1236 = vsel %vm1108, %v1044, %v1172
        %v1237 = vsel %vm1109, %v1045, %v1173
        %v1238 = vsel %vm1110, %v1046, %v1174
        %v1239 = vsel %vm1111, %v1047, %v1175
        %v1240 = vsel %vm1112, %v1048, %v1176
        %v1241 = vsel %vm1113, %v1049, %v1177
        %v1242 = vsel %vm1114, %v1050, %v1178
        %v1243 = vsel %vm1115, %v1051, %v1179
        %v1244 = vsel %vm1116, %v1052, %v1180
        %v1245 = vsel %vm1117, %v1053, %v1181
        %v1246 = vsel %vm1118, %v1054, %v1182
        %v1247 = vsel %vm1119, %v1055, %v1183
        %v1248 = vsel %vm1120, %v1056, %v1184
        %v1249 = vsel %vm1121, %v1057, %v1185
        %v1250 = vsel %vm1122, %v1058, %v1186
        %v1251 = vsel %vm1123, %v1059, %v1187
        %v1252 = vsel %vm1124, %v1060, %v1188
        %v1253 = vsel %vm1125, %v1061, %v1189
        %v1254 = vsel %vm1126, %v1062, %v1190
        %v1255 = vsel %vm1127, %v1063, %v1191
        %v1256 = vsel %vm1128, %v1064, %v1192
        %v1257 = vsel %vm1129, %v1065, %v1193
        %v1258 = vsel %vm1130, %v1066, %v1194
        %v1259 = vsel %vm1131, %v1067, %v1195
        %v1260 = vsel %vm1132, %v1068, %v1196
        %v1261 = vsel %vm1133, %v1069, %v1197
        %v1262 = vsel %vm1134, %v1070, %v1198
        %v1263 = vsel %vm1135, %v1071, %v1199
        %v1264 = vsel %vm1136, %v1072, %v1200
        %v1265 = vsel %vm1137, %v1073, %v1201
        %v1266 = vsel %vm1138, %v1074, %v1202
        %v1267 = vsel %vm1139, %v1075, %v1203
        %v1268 = vsel %vm1140, %v1076, %v1204
        %v1269 = vsel %vm1141, %v1077, %v1205
        %v1270 = vsel %vm1142, %v1078, %v1206
        %v1271 = vsel %vm1143, %v1079, %v1207
        %v1272 = vsel %vm1144, %v1080, %v1208
        %v1273 = vsel %vm1145, %v1081, %v1209
        %v1274 = vsel %vm1146, %v1082, %v1210
        %v1275 = vsel %vm1147, %v1083, %v1211
        %v1276 = vsel %vm1148, %v1084, %v1212
        %v1277 = vsel %vm1149, %v1085, %v1213
        %v1278 = vsel %vm1150, %v1086, %v1214
        %v1279 = vsel %vm1151, %v1087, %v1215
        %v1280 = vsel %vm1152, %v1088, %v1216
        %v1281 = vld [vmem:[%s356] sm:$0xf]
        %v1282 = vld [vmem:[%s356 + $0x4] sm:$0xf]
        %v1283 = vld [vmem:[%s356 + $0x8] sm:$0xf]
        %v1284 = vld [vmem:[%s356 + $0xc] sm:$0xf]
        %v1285 = vld [vmem:[%s356 + $0x10] sm:$0xf]
        %v1286 = vld [vmem:[%s356 + $0x14] sm:$0xf]
        %v1287 = vld [vmem:[%s356 + $0x18] sm:$0xf]
        %v1288 = vld [vmem:[%s356 + $0x1c] sm:$0xf]
        %v1289 = vld [vmem:[%s356 + $0x20] sm:$0xf]
        %v1290 = vld [vmem:[%s356 + $0x24] sm:$0xf]
        %v1291 = vld [vmem:[%s356 + $0x28] sm:$0xf]
        %v1292 = vld [vmem:[%s356 + $0x2c] sm:$0xf]
        %v1293 = vld [vmem:[%s356 + $0x30] sm:$0xf]
        %v1294 = vld [vmem:[%s356 + $0x34] sm:$0xf]
        %v1295 = vld [vmem:[%s356 + $0x38] sm:$0xf]
        %v1296 = vld [vmem:[%s356 + $0x3c] sm:$0xf]
        %v1297 = vld [vmem:[%s356 + $0x40] sm:$0xf]
        %v1298 = vld [vmem:[%s356 + $0x44] sm:$0xf]
        %v1299 = vld [vmem:[%s356 + $0x48] sm:$0xf]
        %v1300 = vld [vmem:[%s356 + $0x4c] sm:$0xf]
        %v1301 = vld [vmem:[%s356 + $0x50] sm:$0xf]
        %v1302 = vld [vmem:[%s356 + $0x54] sm:$0xf]
        %v1303 = vld [vmem:[%s356 + $0x58] sm:$0xf]
        %v1304 = vld [vmem:[%s356 + $0x5c] sm:$0xf]
        %v1305 = vld [vmem:[%s356 + $0x60] sm:$0xf]
        %v1306 = vld [vmem:[%s356 + $0x64] sm:$0xf]
        %v1307 = vld [vmem:[%s356 + $0x68] sm:$0xf]
        %v1308 = vld [vmem:[%s356 + $0x6c] sm:$0xf]
        %v1309 = vld [vmem:[%s356 + $0x70] sm:$0xf]
        %v1310 = vld [vmem:[%s356 + $0x74] sm:$0xf]
        %v1311 = vld [vmem:[%s356 + $0x78] sm:$0xf]
        %v1312 = vld [vmem:[%s356 + $0x7c] sm:$0xf]
        %v1313 = vld [vmem:[%s2] sm:$0xff]
        %v1314 = vld [vmem:[%s2 + $0x8] sm:$0xff]
        %v1315 = vld [vmem:[%s2 + $0x10] sm:$0xff]
        %v1316 = vld [vmem:[%s2 + $0x18] sm:$0xff]
        %v1317 = vld [vmem:[%s2 + $0x20] sm:$0xff]
        %v1318 = vld [vmem:[%s2 + $0x28] sm:$0xff]
        %v1319 = vld [vmem:[%s2 + $0x30] sm:$0xff]
        %v1320 = vld [vmem:[%s2 + $0x38] sm:$0xff]
        %v1321 = vld [vmem:[%s2 + $0x40] sm:$0xff]
        %v1322 = vld [vmem:[%s2 + $0x48] sm:$0xff]
        %v1323 = vld [vmem:[%s2 + $0x50] sm:$0xff]
        %v1324 = vld [vmem:[%s2 + $0x58] sm:$0xff]
        %v1325 = vld [vmem:[%s2 + $0x60] sm:$0xff]
        %v1326 = vld [vmem:[%s2 + $0x68] sm:$0xff]
        %v1327 = vld [vmem:[%s2 + $0x70] sm:$0xff]
        %v1328 = vld [vmem:[%s2 + $0x78] sm:$0xff]
        %v1361 = vunpack.c.l.b16 %v1281
        %v1362 = vunpack.c.l.b16 %v1282
        %v1363 = vunpack.c.l.b16 %v1283
        %v1364 = vunpack.c.l.b16 %v1284
        %v1365 = vunpack.c.l.b16 %v1285
        %v1366 = vunpack.c.l.b16 %v1286
        %v1367 = vunpack.c.l.b16 %v1287
        %v1368 = vunpack.c.l.b16 %v1288
        %v1369 = vunpack.c.l.b16 %v1289
        %v1370 = vunpack.c.l.b16 %v1290
        %v1371 = vunpack.c.l.b16 %v1291
        %v1372 = vunpack.c.l.b16 %v1292
        %v1373 = vunpack.c.l.b16 %v1293
        %v1374 = vunpack.c.l.b16 %v1294
        %v1375 = vunpack.c.l.b16 %v1295
        %v1376 = vunpack.c.l.b16 %v1296
        %v1377 = vunpack.c.l.b16 %v1297
        %v1378 = vunpack.c.l.b16 %v1298
        %v1379 = vunpack.c.l.b16 %v1299
        %v1380 = vunpack.c.l.b16 %v1300
        %v1381 = vunpack.c.l.b16 %v1301
        %v1382 = vunpack.c.l.b16 %v1302
        %v1383 = vunpack.c.l.b16 %v1303
        %v1384 = vunpack.c.l.b16 %v1304
        %v1385 = vunpack.c.l.b16 %v1305
        %v1386 = vunpack.c.l.b16 %v1306
        %v1387 = vunpack.c.l.b16 %v1307
        %v1388 = vunpack.c.l.b16 %v1308
        %v1389 = vunpack.c.l.b16 %v1309
        %v1390 = vunpack.c.l.b16 %v1310
        %v1391 = vunpack.c.l.b16 %v1311
        %v1392 = vunpack.c.l.b16 %v1312
        %v1393 = vpack.c.b16 %v1362, %v1361
        %v1394 = vpack.c.b16 %v1364, %v1363
        %v1395 = vpack.c.b16 %v1366, %v1365
        %v1396 = vpack.c.b16 %v1368, %v1367
        %v1397 = vpack.c.b16 %v1370, %v1369
        %v1398 = vpack.c.b16 %v1372, %v1371
        %v1399 = vpack.c.b16 %v1374, %v1373
        %v1400 = vpack.c.b16 %v1376, %v1375
        %v1401 = vpack.c.b16 %v1378, %v1377
        %v1402 = vpack.c.b16 %v1380, %v1379
        %v1403 = vpack.c.b16 %v1382, %v1381
        %v1404 = vpack.c.b16 %v1384, %v1383
        %v1405 = vpack.c.b16 %v1386, %v1385
        %v1406 = vpack.c.b16 %v1388, %v1387
        %v1407 = vpack.c.b16 %v1390, %v1389
        %v1408 = vpack.c.b16 %v1392, %v1391
        %v1441 = vunpack.c.l.b16 %v1313
        %v1442 = vunpack.c.h.b16 %v1313
        %v1443 = vunpack.c.l.b16 %v1314
        %v1444 = vunpack.c.h.b16 %v1314
        %v1445 = vunpack.c.l.b16 %v1315
        %v1446 = vunpack.c.h.b16 %v1315
        %v1447 = vunpack.c.l.b16 %v1316
        %v1448 = vunpack.c.h.b16 %v1316
        %v1449 = vunpack.c.l.b16 %v1317
        %v1450 = vunpack.c.h.b16 %v1317
        %v1451 = vunpack.c.l.b16 %v1318
        %v1452 = vunpack.c.h.b16 %v1318
        %v1453 = vunpack.c.l.b16 %v1319
        %v1454 = vunpack.c.h.b16 %v1319
        %v1455 = vunpack.c.l.b16 %v1320
        %v1456 = vunpack.c.h.b16 %v1320
        %v1457 = vunpack.c.l.b16 %v1321
        %v1458 = vunpack.c.h.b16 %v1321
        %v1459 = vunpack.c.l.b16 %v1322
        %v1460 = vunpack.c.h.b16 %v1322
        %v1461 = vunpack.c.l.b16 %v1323
        %v1462 = vunpack.c.h.b16 %v1323
        %v1463 = vunpack.c.l.b16 %v1324
        %v1464 = vunpack.c.h.b16 %v1324
        %v1465 = vunpack.c.l.b16 %v1325
        %v1466 = vunpack.c.h.b16 %v1325
        %v1467 = vunpack.c.l.b16 %v1326
        %v1468 = vunpack.c.h.b16 %v1326
        %v1469 = vunpack.c.l.b16 %v1327
        %v1470 = vunpack.c.h.b16 %v1327
        %v1471 = vunpack.c.l.b16 %v1328
        %v1472 = vunpack.c.h.b16 %v1328
        %v1473 = vpack.c.b16 %v1443, %v1441
        %v1474 = vpack.c.b16 %v1444, %v1442
        %v1475 = vpack.c.b16 %v1447, %v1445
        %v1476 = vpack.c.b16 %v1448, %v1446
        %v1477 = vpack.c.b16 %v1451, %v1449
        %v1478 = vpack.c.b16 %v1452, %v1450
        %v1479 = vpack.c.b16 %v1455, %v1453
        %v1480 = vpack.c.b16 %v1456, %v1454
        %v1481 = vpack.c.b16 %v1459, %v1457
        %v1482 = vpack.c.b16 %v1460, %v1458
        %v1483 = vpack.c.b16 %v1463, %v1461
        %v1484 = vpack.c.b16 %v1464, %v1462
        %v1485 = vpack.c.b16 %v1467, %v1465
        %v1486 = vpack.c.b16 %v1468, %v1466
        %v1487 = vpack.c.b16 %v1471, %v1469
        %v1488 = vpack.c.b16 %v1472, %v1470
        %1505 = vmatprep.subr.bf16.mxu0 %v1488
        %1506 = vmatpush1.bf16.msra.mxu0 %v1487
        %1507 = vmatprep.subr.bf16.mxu0 %v1486
        %1508 = vmatpush1.bf16.msra.mxu0 %v1485
        %1509 = vmatprep.subr.bf16.mxu0 %v1484
        %1510 = vmatpush1.bf16.msra.mxu0 %v1483
        %1511 = vmatprep.subr.bf16.mxu0 %v1482
        %1512 = vmatpush1.bf16.msra.mxu0 %v1481
        %1513 = vmatprep.subr.bf16.mxu0 %v1480
        %1514 = vmatpush1.bf16.msra.mxu0 %v1479
        %1515 = vmatprep.subr.bf16.mxu0 %v1478
        %1516 = vmatpush1.bf16.msra.mxu0 %v1477
        %1517 = vmatprep.subr.bf16.mxu0 %v1476
        %1518 = vmatpush1.bf16.msra.mxu0 %v1475
        %1519 = vmatprep.subr.bf16.mxu0 %v1474
        %1520 = vmatpush1.bf16.msra.mxu0 %v1473
        %1521 = vmatprep.subr.bf16.mxu0 0
        %1522 = vmatpush2.bf16.msra.mxu0 0
        %1523 = vmatprep.subr.bf16.mxu0 0
        %1524 = vmatpush2.bf16.msra.mxu0 0
        %1525 = vmatprep.subr.bf16.mxu0 0
        %1526 = vmatpush2.bf16.msra.mxu0 0
        %1527 = vmatprep.subr.bf16.mxu0 0
        %1528 = vmatpush2.bf16.msra.mxu0 0
        %1529 = vmatprep.subr.bf16.mxu0 0
        %1530 = vmatpush2.bf16.msra.mxu0 0
        %1531 = vmatprep.subr.bf16.mxu0 0
        %1532 = vmatpush2.bf16.msra.mxu0 0
        %1533 = vmatprep.subr.bf16.mxu0 0
        %1534 = vmatpush2.bf16.msra.mxu0 0
        %1535 = vmatprep.subr.bf16.mxu0 0
        %1536 = vmatpush2.bf16.msra.mxu0 0
        %1537 = vmatprep.mubr.bf16.mxu0 0
        %1538 = vmatmul.mubr.bf16.gmra.mxu0 %v1393
        %v1539 = vpop.f32.mrf.mxu0
        %v1540 = vadd.f32 %v1217, %v1539
        %v1541 = vpop.f32.mrf.mxu0
        %v1542 = vadd.f32 %v1218, %v1541
        %v1543 = vpop.f32.mrf.mxu0
        %v1544 = vadd.f32 %v1219, %v1543
        %v1545 = vpop.f32.mrf.mxu0
        %v1546 = vadd.f32 %v1220, %v1545
        %1547 = vmatprep.mubr.bf16.mxu0 0
        %1548 = vmatmul.mubr.bf16.gmra.mxu0 %v1394
        %v1549 = vpop.f32.mrf.mxu0
        %v1550 = vadd.f32 %v1221, %v1549
        %v1551 = vpop.f32.mrf.mxu0
        %v1552 = vadd.f32 %v1222, %v1551
        %v1553 = vpop.f32.mrf.mxu0
        %v1554 = vadd.f32 %v1223, %v1553
        %v1555 = vpop.f32.mrf.mxu0
        %v1556 = vadd.f32 %v1224, %v1555
        %1557 = vmatprep.mubr.bf16.mxu0 0
        %1558 = vmatmul.mubr.bf16.gmra.mxu0 %v1395
        %v1559 = vpop.f32.mrf.mxu0
        %v1560 = vadd.f32 %v1225, %v1559
        %v1561 = vpop.f32.mrf.mxu0
        %v1562 = vadd.f32 %v1226, %v1561
        %v1563 = vpop.f32.mrf.mxu0
        %v1564 = vadd.f32 %v1227, %v1563
        %v1565 = vpop.f32.mrf.mxu0
        %v1566 = vadd.f32 %v1228, %v1565
        %1567 = vmatprep.mubr.bf16.mxu0 0
        %1568 = vmatmul.mubr.bf16.gmra.mxu0 %v1396
        %v1569 = vpop.f32.mrf.mxu0
        %v1570 = vadd.f32 %v1229, %v1569
        %v1571 = vpop.f32.mrf.mxu0
        %v1572 = vadd.f32 %v1230, %v1571
        %v1573 = vpop.f32.mrf.mxu0
        %v1574 = vadd.f32 %v1231, %v1573
        %v1575 = vpop.f32.mrf.mxu0
        %v1576 = vadd.f32 %v1232, %v1575
        %1577 = vmatprep.mubr.bf16.mxu0 0
        %1578 = vmatmul.mubr.bf16.gmra.mxu0 %v1397
        %v1579 = vpop.f32.mrf.mxu0
        %v1580 = vadd.f32 %v1233, %v1579
        %v1581 = vpop.f32.mrf.mxu0
        %v1582 = vadd.f32 %v1234, %v1581
        %v1583 = vpop.f32.mrf.mxu0
        %v1584 = vadd.f32 %v1235, %v1583
        %v1585 = vpop.f32.mrf.mxu0
        %v1586 = vadd.f32 %v1236, %v1585
        %1587 = vmatprep.mubr.bf16.mxu0 0
        %1588 = vmatmul.mubr.bf16.gmra.mxu0 %v1398
        %v1589 = vpop.f32.mrf.mxu0
        %v1590 = vadd.f32 %v1237, %v1589
        %v1591 = vpop.f32.mrf.mxu0
        %v1592 = vadd.f32 %v1238, %v1591
        %v1593 = vpop.f32.mrf.mxu0
        %v1594 = vadd.f32 %v1239, %v1593
        %v1595 = vpop.f32.mrf.mxu0
        %v1596 = vadd.f32 %v1240, %v1595
        %1597 = vmatprep.mubr.bf16.mxu0 0
        %1598 = vmatmul.mubr.bf16.gmra.mxu0 %v1399
        %v1599 = vpop.f32.mrf.mxu0
        %v1600 = vadd.f32 %v1241, %v1599
        %v1601 = vpop.f32.mrf.mxu0
        %v1602 = vadd.f32 %v1242, %v1601
        %v1603 = vpop.f32.mrf.mxu0
        %v1604 = vadd.f32 %v1243, %v1603
        %v1605 = vpop.f32.mrf.mxu0
        %v1606 = vadd.f32 %v1244, %v1605
        %1607 = vmatprep.mubr.bf16.mxu0 0
        %1608 = vmatmul.mubr.bf16.gmra.mxu0 %v1400
        %v1609 = vpop.f32.mrf.mxu0
        %v1610 = vadd.f32 %v1245, %v1609
        %v1611 = vpop.f32.mrf.mxu0
        %v1612 = vadd.f32 %v1246, %v1611
        %v1613 = vpop.f32.mrf.mxu0
        %v1614 = vadd.f32 %v1247, %v1613
        %v1615 = vpop.f32.mrf.mxu0
        %v1616 = vadd.f32 %v1248, %v1615
        %1617 = vmatprep.mubr.bf16.mxu0 0
        %1618 = vmatmul.mubr.bf16.gmra.mxu0 %v1401
        %v1619 = vpop.f32.mrf.mxu0
        %v1620 = vadd.f32 %v1249, %v1619
        %v1621 = vpop.f32.mrf.mxu0
        %v1622 = vadd.f32 %v1250, %v1621
        %v1623 = vpop.f32.mrf.mxu0
        %v1624 = vadd.f32 %v1251, %v1623
        %v1625 = vpop.f32.mrf.mxu0
        %v1626 = vadd.f32 %v1252, %v1625
        %1627 = vmatprep.mubr.bf16.mxu0 0
        %1628 = vmatmul.mubr.bf16.gmra.mxu0 %v1402
        %v1629 = vpop.f32.mrf.mxu0
        %v1630 = vadd.f32 %v1253, %v1629
        %v1631 = vpop.f32.mrf.mxu0
        %v1632 = vadd.f32 %v1254, %v1631
        %v1633 = vpop.f32.mrf.mxu0
        %v1634 = vadd.f32 %v1255, %v1633
        %v1635 = vpop.f32.mrf.mxu0
        %v1636 = vadd.f32 %v1256, %v1635
        %1637 = vmatprep.mubr.bf16.mxu0 0
        %1638 = vmatmul.mubr.bf16.gmra.mxu0 %v1403
        %v1639 = vpop.f32.mrf.mxu0
        %v1640 = vadd.f32 %v1257, %v1639
        %v1641 = vpop.f32.mrf.mxu0
        %v1642 = vadd.f32 %v1258, %v1641
        %v1643 = vpop.f32.mrf.mxu0
        %v1644 = vadd.f32 %v1259, %v1643
        %v1645 = vpop.f32.mrf.mxu0
        %v1646 = vadd.f32 %v1260, %v1645
        %1647 = vmatprep.mubr.bf16.mxu0 0
        %1648 = vmatmul.mubr.bf16.gmra.mxu0 %v1404
        %v1649 = vpop.f32.mrf.mxu0
        %v1650 = vadd.f32 %v1261, %v1649
        %v1651 = vpop.f32.mrf.mxu0
        %v1652 = vadd.f32 %v1262, %v1651
        %v1653 = vpop.f32.mrf.mxu0
        %v1654 = vadd.f32 %v1263, %v1653
        %v1655 = vpop.f32.mrf.mxu0
        %v1656 = vadd.f32 %v1264, %v1655
        %1657 = vmatprep.mubr.bf16.mxu0 0
        %1658 = vmatmul.mubr.bf16.gmra.mxu0 %v1405
        %v1659 = vpop.f32.mrf.mxu0
        %v1660 = vadd.f32 %v1265, %v1659
        %v1661 = vpop.f32.mrf.mxu0
        %v1662 = vadd.f32 %v1266, %v1661
        %v1663 = vpop.f32.mrf.mxu0
        %v1664 = vadd.f32 %v1267, %v1663
        %v1665 = vpop.f32.mrf.mxu0
        %v1666 = vadd.f32 %v1268, %v1665
        %1667 = vmatprep.mubr.bf16.mxu0 0
        %1668 = vmatmul.mubr.bf16.gmra.mxu0 %v1406
        %v1669 = vpop.f32.mrf.mxu0
        %v1670 = vadd.f32 %v1269, %v1669
        %v1671 = vpop.f32.mrf.mxu0
        %v1672 = vadd.f32 %v1270, %v1671
        %v1673 = vpop.f32.mrf.mxu0
        %v1674 = vadd.f32 %v1271, %v1673
        %v1675 = vpop.f32.mrf.mxu0
        %v1676 = vadd.f32 %v1272, %v1675
        %1677 = vmatprep.mubr.bf16.mxu0 0
        %1678 = vmatmul.mubr.bf16.gmra.mxu0 %v1407
        %v1679 = vpop.f32.mrf.mxu0
        %v1680 = vadd.f32 %v1273, %v1679
        %v1681 = vpop.f32.mrf.mxu0
        %v1682 = vadd.f32 %v1274, %v1681
        %v1683 = vpop.f32.mrf.mxu0
        %v1684 = vadd.f32 %v1275, %v1683
        %v1685 = vpop.f32.mrf.mxu0
        %v1686 = vadd.f32 %v1276, %v1685
        %1687 = vmatprep.mubr.bf16.mxu0 0
        %1688 = vmatmul.mubr.bf16.gmra.mxu0 %v1408
        %v1689 = vpop.f32.mrf.mxu0
        %v1690 = vadd.f32 %v1277, %v1689
        %v1691 = vpop.f32.mrf.mxu0
        %v1692 = vadd.f32 %v1278, %v1691
        %v1693 = vpop.f32.mrf.mxu0
        %v1694 = vadd.f32 %v1279, %v1693
        %v1695 = vpop.f32.mrf.mxu0
        %v1696 = vadd.f32 %v1280, %v1695
        %1697 = vdwg.mxu0
        %v1698 = vpack.c.bf16 %v1544, %v1540
        %v1699 = vpack.c.bf16 %v1546, %v1542
        %v1700 = vpack.c.bf16 %v1554, %v1550
        %v1701 = vpack.c.bf16 %v1556, %v1552
        %v1702 = vpack.c.bf16 %v1564, %v1560
        %v1703 = vpack.c.bf16 %v1566, %v1562
        %v1704 = vpack.c.bf16 %v1574, %v1570
        %v1705 = vpack.c.bf16 %v1576, %v1572
        %v1706 = vpack.c.bf16 %v1584, %v1580
        %v1707 = vpack.c.bf16 %v1586, %v1582
        %v1708 = vpack.c.bf16 %v1594, %v1590
        %v1709 = vpack.c.bf16 %v1596, %v1592
        %v1710 = vpack.c.bf16 %v1604, %v1600
        %v1711 = vpack.c.bf16 %v1606, %v1602
        %v1712 = vpack.c.bf16 %v1614, %v1610
        %v1713 = vpack.c.bf16 %v1616, %v1612
        %v1714 = vpack.c.bf16 %v1624, %v1620
        %v1715 = vpack.c.bf16 %v1626, %v1622
        %v1716 = vpack.c.bf16 %v1634, %v1630
        %v1717 = vpack.c.bf16 %v1636, %v1632
        %v1718 = vpack.c.bf16 %v1644, %v1640
        %v1719 = vpack.c.bf16 %v1646, %v1642
        %v1720 = vpack.c.bf16 %v1654, %v1650
        %v1721 = vpack.c.bf16 %v1656, %v1652
        %v1722 = vpack.c.bf16 %v1664, %v1660
        %v1723 = vpack.c.bf16 %v1666, %v1662
        %v1724 = vpack.c.bf16 %v1674, %v1670
        %v1725 = vpack.c.bf16 %v1676, %v1672
        %v1726 = vpack.c.bf16 %v1684, %v1680
        %v1727 = vpack.c.bf16 %v1686, %v1682
        %v1728 = vpack.c.bf16 %v1694, %v1690
        %v1729 = vpack.c.bf16 %v1696, %v1692
        %v1730 = vld [vmem:[%s6] sm:$0xff]
        %v1731 = vld [vmem:[%s6 + $0x8] sm:$0xff]
        %v1732 = vld [vmem:[%s6 + $0x10] sm:$0xff]
        %v1733 = vld [vmem:[%s6 + $0x18] sm:$0xff]
        %v1734 = vld [vmem:[%s6 + $0x20] sm:$0xff]
        %v1735 = vld [vmem:[%s6 + $0x28] sm:$0xff]
        %v1736 = vld [vmem:[%s6 + $0x30] sm:$0xff]
        %v1737 = vld [vmem:[%s6 + $0x38] sm:$0xff]
        %v1738 = vld [vmem:[%s6 + $0x40] sm:$0xff]
        %v1739 = vld [vmem:[%s6 + $0x48] sm:$0xff]
        %v1740 = vld [vmem:[%s6 + $0x50] sm:$0xff]
        %v1741 = vld [vmem:[%s6 + $0x58] sm:$0xff]
        %v1742 = vld [vmem:[%s6 + $0x60] sm:$0xff]
        %v1743 = vld [vmem:[%s6 + $0x68] sm:$0xff]
        %v1744 = vld [vmem:[%s6 + $0x70] sm:$0xff]
        %v1745 = vld [vmem:[%s6 + $0x78] sm:$0xff]
        %v1746 = vld [vmem:[%s6 + $0x80] sm:$0xff]
        %v1747 = vld [vmem:[%s6 + $0x88] sm:$0xff]
        %v1748 = vld [vmem:[%s6 + $0x90] sm:$0xff]
        %v1749 = vld [vmem:[%s6 + $0x98] sm:$0xff]
        %v1750 = vld [vmem:[%s6 + $0xa0] sm:$0xff]
        %v1751 = vld [vmem:[%s6 + $0xa8] sm:$0xff]
        %v1752 = vld [vmem:[%s6 + $0xb0] sm:$0xff]
        %v1753 = vld [vmem:[%s6 + $0xb8] sm:$0xff]
        %v1754 = vld [vmem:[%s6 + $0xc0] sm:$0xff]
        %v1755 = vld [vmem:[%s6 + $0xc8] sm:$0xff]
        %v1756 = vld [vmem:[%s6 + $0xd0] sm:$0xff]
        %v1757 = vld [vmem:[%s6 + $0xd8] sm:$0xff]
        %v1758 = vld [vmem:[%s6 + $0xe0] sm:$0xff]
        %v1759 = vld [vmem:[%s6 + $0xe8] sm:$0xff]
        %v1760 = vld [vmem:[%s6 + $0xf0] sm:$0xff]
        %v1761 = vld [vmem:[%s6 + $0xf8] sm:$0xff]
        %v1794 = vunpack.c.l.b16 %v1730
        %v1795 = vunpack.c.h.b16 %v1730
        %v1796 = vunpack.c.l.b16 %v1731
        %v1797 = vunpack.c.h.b16 %v1731
        %v1798 = vunpack.c.l.b16 %v1732
        %v1799 = vunpack.c.h.b16 %v1732
        %v1800 = vunpack.c.l.b16 %v1733
        %v1801 = vunpack.c.h.b16 %v1733
        %v1802 = vunpack.c.l.b16 %v1734
        %v1803 = vunpack.c.h.b16 %v1734
        %v1804 = vunpack.c.l.b16 %v1735
        %v1805 = vunpack.c.h.b16 %v1735
        %v1806 = vunpack.c.l.b16 %v1736
        %v1807 = vunpack.c.h.b16 %v1736
        %v1808 = vunpack.c.l.b16 %v1737
        %v1809 = vunpack.c.h.b16 %v1737
        %v1810 = vunpack.c.l.b16 %v1738
        %v1811 = vunpack.c.h.b16 %v1738
        %v1812 = vunpack.c.l.b16 %v1739
        %v1813 = vunpack.c.h.b16 %v1739
        %v1814 = vunpack.c.l.b16 %v1740
        %v1815 = vunpack.c.h.b16 %v1740
        %v1816 = vunpack.c.l.b16 %v1741
        %v1817 = vunpack.c.h.b16 %v1741
        %v1818 = vunpack.c.l.b16 %v1742
        %v1819 = vunpack.c.h.b16 %v1742
        %v1820 = vunpack.c.l.b16 %v1743
        %v1821 = vunpack.c.h.b16 %v1743
        %v1822 = vunpack.c.l.b16 %v1744
        %v1823 = vunpack.c.h.b16 %v1744
        %v1824 = vunpack.c.l.b16 %v1745
        %v1825 = vunpack.c.h.b16 %v1745
        %v1826 = vunpack.c.l.b16 %v1746
        %v1827 = vunpack.c.h.b16 %v1746
        %v1828 = vunpack.c.l.b16 %v1747
        %v1829 = vunpack.c.h.b16 %v1747
        %v1830 = vunpack.c.l.b16 %v1748
        %v1831 = vunpack.c.h.b16 %v1748
        %v1832 = vunpack.c.l.b16 %v1749
        %v1833 = vunpack.c.h.b16 %v1749
        %v1834 = vunpack.c.l.b16 %v1750
        %v1835 = vunpack.c.h.b16 %v1750
        %v1836 = vunpack.c.l.b16 %v1751
        %v1837 = vunpack.c.h.b16 %v1751
        %v1838 = vunpack.c.l.b16 %v1752
        %v1839 = vunpack.c.h.b16 %v1752
        %v1840 = vunpack.c.l.b16 %v1753
        %v1841 = vunpack.c.h.b16 %v1753
        %v1842 = vunpack.c.l.b16 %v1754
        %v1843 = vunpack.c.h.b16 %v1754
        %v1844 = vunpack.c.l.b16 %v1755
        %v1845 = vunpack.c.h.b16 %v1755
        %v1846 = vunpack.c.l.b16 %v1756
        %v1847 = vunpack.c.h.b16 %v1756
        %v1848 = vunpack.c.l.b16 %v1757
        %v1849 = vunpack.c.h.b16 %v1757
        %v1850 = vunpack.c.l.b16 %v1758
        %v1851 = vunpack.c.h.b16 %v1758
        %v1852 = vunpack.c.l.b16 %v1759
        %v1853 = vunpack.c.h.b16 %v1759
        %v1854 = vunpack.c.l.b16 %v1760
        %v1855 = vunpack.c.h.b16 %v1760
        %v1856 = vunpack.c.l.b16 %v1761
        %v1857 = vunpack.c.h.b16 %v1761
        %v1858 = vpack.c.b16 %v1796, %v1794
        %v1859 = vpack.c.b16 %v1797, %v1795
        %v1860 = vpack.c.b16 %v1800, %v1798
        %v1861 = vpack.c.b16 %v1801, %v1799
        %v1862 = vpack.c.b16 %v1804, %v1802
        %v1863 = vpack.c.b16 %v1805, %v1803
        %v1864 = vpack.c.b16 %v1808, %v1806
        %v1865 = vpack.c.b16 %v1809, %v1807
        %v1866 = vpack.c.b16 %v1812, %v1810
        %v1867 = vpack.c.b16 %v1813, %v1811
        %v1868 = vpack.c.b16 %v1816, %v1814
        %v1869 = vpack.c.b16 %v1817, %v1815
        %v1870 = vpack.c.b16 %v1820, %v1818
        %v1871 = vpack.c.b16 %v1821, %v1819
        %v1872 = vpack.c.b16 %v1824, %v1822
        %v1873 = vpack.c.b16 %v1825, %v1823
        %v1874 = vpack.c.b16 %v1828, %v1826
        %v1875 = vpack.c.b16 %v1829, %v1827
        %v1876 = vpack.c.b16 %v1832, %v1830
        %v1877 = vpack.c.b16 %v1833, %v1831
        %v1878 = vpack.c.b16 %v1836, %v1834
        %v1879 = vpack.c.b16 %v1837, %v1835
        %v1880 = vpack.c.b16 %v1840, %v1838
        %v1881 = vpack.c.b16 %v1841, %v1839
        %v1882 = vpack.c.b16 %v1844, %v1842
        %v1883 = vpack.c.b16 %v1845, %v1843
        %v1884 = vpack.c.b16 %v1848, %v1846
        %v1885 = vpack.c.b16 %v1849, %v1847
        %v1886 = vpack.c.b16 %v1852, %v1850
        %v1887 = vpack.c.b16 %v1853, %v1851
        %v1888 = vpack.c.b16 %v1856, %v1854
        %v1889 = vpack.c.b16 %v1857, %v1855
        %1922 = vmatprep.subr.bf16.mxu0 %v1873
        %1923 = vmatpush1.bf16.msra.mxu0 %v1872
        %1924 = vmatprep.subr.bf16.mxu0 %v1871
        %1925 = vmatpush1.bf16.msra.mxu0 %v1870
        %1926 = vmatprep.subr.bf16.mxu0 %v1869
        %1927 = vmatpush1.bf16.msra.mxu0 %v1868
        %1928 = vmatprep.subr.bf16.mxu0 %v1867
        %1929 = vmatpush1.bf16.msra.mxu0 %v1866
        %1930 = vmatprep.subr.bf16.mxu0 %v1865
        %1931 = vmatpush1.bf16.msra.mxu0 %v1864
        %1932 = vmatprep.subr.bf16.mxu0 %v1863
        %1933 = vmatpush1.bf16.msra.mxu0 %v1862
        %1934 = vmatprep.subr.bf16.mxu0 %v1861
        %1935 = vmatpush1.bf16.msra.mxu0 %v1860
        %1936 = vmatprep.subr.bf16.mxu0 %v1859
        %1937 = vmatpush1.bf16.msra.mxu0 %v1858
        %1938 = vmatprep.subr.bf16.mxu0 %v1889
        %1939 = vmatpush2.bf16.msra.mxu0 %v1888
        %1940 = vmatprep.subr.bf16.mxu0 %v1887
        %1941 = vmatpush2.bf16.msra.mxu0 %v1886
        %1942 = vmatprep.subr.bf16.mxu0 %v1885
        %1943 = vmatpush2.bf16.msra.mxu0 %v1884
        %1944 = vmatprep.subr.bf16.mxu0 %v1883
        %1945 = vmatpush2.bf16.msra.mxu0 %v1882
        %1946 = vmatprep.subr.bf16.mxu0 %v1881
        %1947 = vmatpush2.bf16.msra.mxu0 %v1880
        %1948 = vmatprep.subr.bf16.mxu0 %v1879
        %1949 = vmatpush2.bf16.msra.mxu0 %v1878
        %1950 = vmatprep.subr.bf16.mxu0 %v1877
        %1951 = vmatpush2.bf16.msra.mxu0 %v1876
        %1952 = vmatprep.subr.bf16.mxu0 %v1875
        %1953 = vmatpush2.bf16.msra.mxu0 %v1874
        %1954 = vmatprep.mubr.bf16.mxu0 %v1699
        %1955 = vmatmul.mubr.bf16.gmra.mxu0 %v1698
        %v1956 = vpop.f32.mrf.mxu0
        %v1957 = vadd.f32 0.0, %v1956
        %v1958 = vpop.f32.mrf.mxu0
        %v1959 = vadd.f32 0.0, %v1958
        %v1960 = vpop.f32.mrf.mxu0
        %v1961 = vadd.f32 0.0, %v1960
        %v1962 = vpop.f32.mrf.mxu0
        %v1963 = vadd.f32 0.0, %v1962
        %1964 = vmatprep.mubr.bf16.mxu0 %v1701
        %1965 = vmatmul.mubr.bf16.gmra.mxu0 %v1700
        %v1966 = vpop.f32.mrf.mxu0
        %v1967 = vadd.f32 0.0, %v1966
        %v1968 = vpop.f32.mrf.mxu0
        %v1969 = vadd.f32 0.0, %v1968
        %v1970 = vpop.f32.mrf.mxu0
        %v1971 = vadd.f32 0.0, %v1970
        %v1972 = vpop.f32.mrf.mxu0
        %v1973 = vadd.f32 0.0, %v1972
        %1974 = vmatprep.mubr.bf16.mxu0 %v1703
        %1975 = vmatmul.mubr.bf16.gmra.mxu0 %v1702
        %v1976 = vpop.f32.mrf.mxu0
        %v1977 = vadd.f32 0.0, %v1976
        %v1978 = vpop.f32.mrf.mxu0
        %v1979 = vadd.f32 0.0, %v1978
        %v1980 = vpop.f32.mrf.mxu0
        %v1981 = vadd.f32 0.0, %v1980
        %v1982 = vpop.f32.mrf.mxu0
        %v1983 = vadd.f32 0.0, %v1982
        %1984 = vmatprep.mubr.bf16.mxu0 %v1705
        %1985 = vmatmul.mubr.bf16.gmra.mxu0 %v1704
        %v1986 = vpop.f32.mrf.mxu0
        %v1987 = vadd.f32 0.0, %v1986
        %v1988 = vpop.f32.mrf.mxu0
        %v1989 = vadd.f32 0.0, %v1988
        %v1990 = vpop.f32.mrf.mxu0
        %v1991 = vadd.f32 0.0, %v1990
        %v1992 = vpop.f32.mrf.mxu0
        %v1993 = vadd.f32 0.0, %v1992
        %1994 = vmatprep.mubr.bf16.mxu0 %v1707
        %1995 = vmatmul.mubr.bf16.gmra.mxu0 %v1706
        %v1996 = vpop.f32.mrf.mxu0
        %v1997 = vadd.f32 0.0, %v1996
        %v1998 = vpop.f32.mrf.mxu0
        %v1999 = vadd.f32 0.0, %v1998
        %v2000 = vpop.f32.mrf.mxu0
        %v2001 = vadd.f32 0.0, %v2000
        %v2002 = vpop.f32.mrf.mxu0
        %v2003 = vadd.f32 0.0, %v2002
        %2004 = vmatprep.mubr.bf16.mxu0 %v1709
        %2005 = vmatmul.mubr.bf16.gmra.mxu0 %v1708
        %v2006 = vpop.f32.mrf.mxu0
        %v2007 = vadd.f32 0.0, %v2006
        %v2008 = vpop.f32.mrf.mxu0
        %v2009 = vadd.f32 0.0, %v2008
        %v2010 = vpop.f32.mrf.mxu0
        %v2011 = vadd.f32 0.0, %v2010
        %v2012 = vpop.f32.mrf.mxu0
        %v2013 = vadd.f32 0.0, %v2012
        %2014 = vmatprep.mubr.bf16.mxu0 %v1711
        %2015 = vmatmul.mubr.bf16.gmra.mxu0 %v1710
        %v2016 = vpop.f32.mrf.mxu0
        %v2017 = vadd.f32 0.0, %v2016
        %v2018 = vpop.f32.mrf.mxu0
        %v2019 = vadd.f32 0.0, %v2018
        %v2020 = vpop.f32.mrf.mxu0
        %v2021 = vadd.f32 0.0, %v2020
        %v2022 = vpop.f32.mrf.mxu0
        %v2023 = vadd.f32 0.0, %v2022
        %2024 = vmatprep.mubr.bf16.mxu0 %v1713
        %2025 = vmatmul.mubr.bf16.gmra.mxu0 %v1712
        %v2026 = vpop.f32.mrf.mxu0
        %v2027 = vadd.f32 0.0, %v2026
        %v2028 = vpop.f32.mrf.mxu0
        %v2029 = vadd.f32 0.0, %v2028
        %v2030 = vpop.f32.mrf.mxu0
        %v2031 = vadd.f32 0.0, %v2030
        %v2032 = vpop.f32.mrf.mxu0
        %v2033 = vadd.f32 0.0, %v2032
        %2034 = vmatprep.mubr.bf16.mxu0 %v1715
        %2035 = vmatmul.mubr.bf16.gmra.mxu0 %v1714
        %v2036 = vpop.f32.mrf.mxu0
        %v2037 = vadd.f32 0.0, %v2036
        %v2038 = vpop.f32.mrf.mxu0
        %v2039 = vadd.f32 0.0, %v2038
        %v2040 = vpop.f32.mrf.mxu0
        %v2041 = vadd.f32 0.0, %v2040
        %v2042 = vpop.f32.mrf.mxu0
        %v2043 = vadd.f32 0.0, %v2042
        %2044 = vmatprep.mubr.bf16.mxu0 %v1717
        %2045 = vmatmul.mubr.bf16.gmra.mxu0 %v1716
        %v2046 = vpop.f32.mrf.mxu0
        %v2047 = vadd.f32 0.0, %v2046
        %v2048 = vpop.f32.mrf.mxu0
        %v2049 = vadd.f32 0.0, %v2048
        %v2050 = vpop.f32.mrf.mxu0
        %v2051 = vadd.f32 0.0, %v2050
        %v2052 = vpop.f32.mrf.mxu0
        %v2053 = vadd.f32 0.0, %v2052
        %2054 = vmatprep.mubr.bf16.mxu0 %v1719
        %2055 = vmatmul.mubr.bf16.gmra.mxu0 %v1718
        %v2056 = vpop.f32.mrf.mxu0
        %v2057 = vadd.f32 0.0, %v2056
        %v2058 = vpop.f32.mrf.mxu0
        %v2059 = vadd.f32 0.0, %v2058
        %v2060 = vpop.f32.mrf.mxu0
        %v2061 = vadd.f32 0.0, %v2060
        %v2062 = vpop.f32.mrf.mxu0
        %v2063 = vadd.f32 0.0, %v2062
        %2064 = vmatprep.mubr.bf16.mxu0 %v1721
        %2065 = vmatmul.mubr.bf16.gmra.mxu0 %v1720
        %v2066 = vpop.f32.mrf.mxu0
        %v2067 = vadd.f32 0.0, %v2066
        %v2068 = vpop.f32.mrf.mxu0
        %v2069 = vadd.f32 0.0, %v2068
        %v2070 = vpop.f32.mrf.mxu0
        %v2071 = vadd.f32 0.0, %v2070
        %v2072 = vpop.f32.mrf.mxu0
        %v2073 = vadd.f32 0.0, %v2072
        %2074 = vmatprep.mubr.bf16.mxu0 %v1723
        %2075 = vmatmul.mubr.bf16.gmra.mxu0 %v1722
        %v2076 = vpop.f32.mrf.mxu0
        %v2077 = vadd.f32 0.0, %v2076
        %v2078 = vpop.f32.mrf.mxu0
        %v2079 = vadd.f32 0.0, %v2078
        %v2080 = vpop.f32.mrf.mxu0
        %v2081 = vadd.f32 0.0, %v2080
        %v2082 = vpop.f32.mrf.mxu0
        %v2083 = vadd.f32 0.0, %v2082
        %2084 = vmatprep.mubr.bf16.mxu0 %v1725
        %2085 = vmatmul.mubr.bf16.gmra.mxu0 %v1724
        %v2086 = vpop.f32.mrf.mxu0
        %v2087 = vadd.f32 0.0, %v2086
        %v2088 = vpop.f32.mrf.mxu0
        %v2089 = vadd.f32 0.0, %v2088
        %v2090 = vpop.f32.mrf.mxu0
        %v2091 = vadd.f32 0.0, %v2090
        %v2092 = vpop.f32.mrf.mxu0
        %v2093 = vadd.f32 0.0, %v2092
        %2094 = vmatprep.mubr.bf16.mxu0 %v1727
        %2095 = vmatmul.mubr.bf16.gmra.mxu0 %v1726
        %v2096 = vpop.f32.mrf.mxu0
        %v2097 = vadd.f32 0.0, %v2096
        %v2098 = vpop.f32.mrf.mxu0
        %v2099 = vadd.f32 0.0, %v2098
        %v2100 = vpop.f32.mrf.mxu0
        %v2101 = vadd.f32 0.0, %v2100
        %v2102 = vpop.f32.mrf.mxu0
        %v2103 = vadd.f32 0.0, %v2102
        %2104 = vmatprep.mubr.bf16.mxu0 %v1729
        %2105 = vmatmul.mubr.bf16.gmra.mxu0 %v1728
        %v2106 = vpop.f32.mrf.mxu0
        %v2107 = vadd.f32 0.0, %v2106
        %v2108 = vpop.f32.mrf.mxu0
        %v2109 = vadd.f32 0.0, %v2108
        %v2110 = vpop.f32.mrf.mxu0
        %v2111 = vadd.f32 0.0, %v2110
        %v2112 = vpop.f32.mrf.mxu0
        %v2113 = vadd.f32 0.0, %v2112
        %2114 = vdwg.mxu0
        %v2115 = vld [vmem:[%s7] sm:$0x3]
        %v2117 = vlaneseq
        %v2118 = vshrl.u32 %v2117, 7
        %v2119 = vsub.s32 0, %v2118
        %v2120 = vrot.slane %v2115, %v2119
        %v2121 = vlaneseq
        %v2122 = vshrl.u32 %v2121, 7
        %v2123 = vsub.s32 1, %v2122
        %v2124 = vrot.slane %v2115, %v2123
        %v2127 = vmul.f32 %v1957, %v2120
        %v2128 = vmul.f32 %v1959, %v2124
        %v2129 = vmul.f32 %v1961, %v2120
        %v2130 = vmul.f32 %v1963, %v2124
        %v2131 = vmul.f32 %v1967, %v2120
        %v2132 = vmul.f32 %v1969, %v2124
        %v2133 = vmul.f32 %v1971, %v2120
        %v2134 = vmul.f32 %v1973, %v2124
        %v2135 = vmul.f32 %v1977, %v2120
        %v2136 = vmul.f32 %v1979, %v2124
        %v2137 = vmul.f32 %v1981, %v2120
        %v2138 = vmul.f32 %v1983, %v2124
        %v2139 = vmul.f32 %v1987, %v2120
        %v2140 = vmul.f32 %v1989, %v2124
        %v2141 = vmul.f32 %v1991, %v2120
        %v2142 = vmul.f32 %v1993, %v2124
        %v2143 = vmul.f32 %v1997, %v2120
        %v2144 = vmul.f32 %v1999, %v2124
        %v2145 = vmul.f32 %v2001, %v2120
        %v2146 = vmul.f32 %v2003, %v2124
        %v2147 = vmul.f32 %v2007, %v2120
        %v2148 = vmul.f32 %v2009, %v2124
        %v2149 = vmul.f32 %v2011, %v2120
        %v2150 = vmul.f32 %v2013, %v2124
        %v2151 = vmul.f32 %v2017, %v2120
        %v2152 = vmul.f32 %v2019, %v2124
        %v2153 = vmul.f32 %v2021, %v2120
        %v2154 = vmul.f32 %v2023, %v2124
        %v2155 = vmul.f32 %v2027, %v2120
        %v2156 = vmul.f32 %v2029, %v2124
        %v2157 = vmul.f32 %v2031, %v2120
        %v2158 = vmul.f32 %v2033, %v2124
        %v2159 = vmul.f32 %v2037, %v2120
        %v2160 = vmul.f32 %v2039, %v2124
        %v2161 = vmul.f32 %v2041, %v2120
        %v2162 = vmul.f32 %v2043, %v2124
        %v2163 = vmul.f32 %v2047, %v2120
        %v2164 = vmul.f32 %v2049, %v2124
        %v2165 = vmul.f32 %v2051, %v2120
        %v2166 = vmul.f32 %v2053, %v2124
        %v2167 = vmul.f32 %v2057, %v2120
        %v2168 = vmul.f32 %v2059, %v2124
        %v2169 = vmul.f32 %v2061, %v2120
        %v2170 = vmul.f32 %v2063, %v2124
        %v2171 = vmul.f32 %v2067, %v2120
        %v2172 = vmul.f32 %v2069, %v2124
        %v2173 = vmul.f32 %v2071, %v2120
        %v2174 = vmul.f32 %v2073, %v2124
        %v2175 = vmul.f32 %v2077, %v2120
        %v2176 = vmul.f32 %v2079, %v2124
        %v2177 = vmul.f32 %v2081, %v2120
        %v2178 = vmul.f32 %v2083, %v2124
        %v2179 = vmul.f32 %v2087, %v2120
        %v2180 = vmul.f32 %v2089, %v2124
        %v2181 = vmul.f32 %v2091, %v2120
        %v2182 = vmul.f32 %v2093, %v2124
        %v2183 = vmul.f32 %v2097, %v2120
        %v2184 = vmul.f32 %v2099, %v2124
        %v2185 = vmul.f32 %v2101, %v2120
        %v2186 = vmul.f32 %v2103, %v2124
        %v2187 = vmul.f32 %v2107, %v2120
        %v2188 = vmul.f32 %v2109, %v2124
        %v2189 = vmul.f32 %v2111, %v2120
        %v2190 = vmul.f32 %v2113, %v2124
        %v2191 = vld [vmem:[%s8] sm:$0x3]
        %v2193 = vlaneseq
        %v2194 = vshrl.u32 %v2193, 7
        %v2195 = vsub.s32 0, %v2194
        %v2196 = vrot.slane %v2191, %v2195
        %v2197 = vlaneseq
        %v2198 = vshrl.u32 %v2197, 7
        %v2199 = vsub.s32 1, %v2198
        %v2200 = vrot.slane %v2191, %v2199
        %v2203 = vadd.f32 %v2127, %v2196
        %v2204 = vadd.f32 %v2128, %v2200
        %v2205 = vadd.f32 %v2129, %v2196
        %v2206 = vadd.f32 %v2130, %v2200
        %v2207 = vadd.f32 %v2131, %v2196
        %v2208 = vadd.f32 %v2132, %v2200
        %v2209 = vadd.f32 %v2133, %v2196
        %v2210 = vadd.f32 %v2134, %v2200
        %v2211 = vadd.f32 %v2135, %v2196
        %v2212 = vadd.f32 %v2136, %v2200
        %v2213 = vadd.f32 %v2137, %v2196
        %v2214 = vadd.f32 %v2138, %v2200
        %v2215 = vadd.f32 %v2139, %v2196
        %v2216 = vadd.f32 %v2140, %v2200
        %v2217 = vadd.f32 %v2141, %v2196
        %v2218 = vadd.f32 %v2142, %v2200
        %v2219 = vadd.f32 %v2143, %v2196
        %v2220 = vadd.f32 %v2144, %v2200
        %v2221 = vadd.f32 %v2145, %v2196
        %v2222 = vadd.f32 %v2146, %v2200
        %v2223 = vadd.f32 %v2147, %v2196
        %v2224 = vadd.f32 %v2148, %v2200
        %v2225 = vadd.f32 %v2149, %v2196
        %v2226 = vadd.f32 %v2150, %v2200
        %v2227 = vadd.f32 %v2151, %v2196
        %v2228 = vadd.f32 %v2152, %v2200
        %v2229 = vadd.f32 %v2153, %v2196
        %v2230 = vadd.f32 %v2154, %v2200
        %v2231 = vadd.f32 %v2155, %v2196
        %v2232 = vadd.f32 %v2156, %v2200
        %v2233 = vadd.f32 %v2157, %v2196
        %v2234 = vadd.f32 %v2158, %v2200
        %v2235 = vadd.f32 %v2159, %v2196
        %v2236 = vadd.f32 %v2160, %v2200
        %v2237 = vadd.f32 %v2161, %v2196
        %v2238 = vadd.f32 %v2162, %v2200
        %v2239 = vadd.f32 %v2163, %v2196
        %v2240 = vadd.f32 %v2164, %v2200
        %v2241 = vadd.f32 %v2165, %v2196
        %v2242 = vadd.f32 %v2166, %v2200
        %v2243 = vadd.f32 %v2167, %v2196
        %v2244 = vadd.f32 %v2168, %v2200
        %v2245 = vadd.f32 %v2169, %v2196
        %v2246 = vadd.f32 %v2170, %v2200
        %v2247 = vadd.f32 %v2171, %v2196
        %v2248 = vadd.f32 %v2172, %v2200
        %v2249 = vadd.f32 %v2173, %v2196
        %v2250 = vadd.f32 %v2174, %v2200
        %v2251 = vadd.f32 %v2175, %v2196
        %v2252 = vadd.f32 %v2176, %v2200
        %v2253 = vadd.f32 %v2177, %v2196
        %v2254 = vadd.f32 %v2178, %v2200
        %v2255 = vadd.f32 %v2179, %v2196
        %v2256 = vadd.f32 %v2180, %v2200
        %v2257 = vadd.f32 %v2181, %v2196
        %v2258 = vadd.f32 %v2182, %v2200
        %v2259 = vadd.f32 %v2183, %v2196
        %v2260 = vadd.f32 %v2184, %v2200
        %v2261 = vadd.f32 %v2185, %v2196
        %v2262 = vadd.f32 %v2186, %v2200
        %v2263 = vadd.f32 %v2187, %v2196
        %v2264 = vadd.f32 %v2188, %v2200
        %v2265 = vadd.f32 %v2189, %v2196
        %v2266 = vadd.f32 %v2190, %v2200
        %vm2267 = vcmp.gt.f32.partialorder %v2203, 0.0
        %vm2268 = vcmp.gt.f32.partialorder %v2204, 0.0
        %vm2269 = vcmp.gt.f32.partialorder %v2205, 0.0
        %vm2270 = vcmp.gt.f32.partialorder %v2206, 0.0
        %vm2271 = vcmp.gt.f32.partialorder %v2207, 0.0
        %vm2272 = vcmp.gt.f32.partialorder %v2208, 0.0
        %vm2273 = vcmp.gt.f32.partialorder %v2209, 0.0
        %vm2274 = vcmp.gt.f32.partialorder %v2210, 0.0
        %vm2275 = vcmp.gt.f32.partialorder %v2211, 0.0
        %vm2276 = vcmp.gt.f32.partialorder %v2212, 0.0
        %vm2277 = vcmp.gt.f32.partialorder %v2213, 0.0
        %vm2278 = vcmp.gt.f32.partialorder %v2214, 0.0
        %vm2279 = vcmp.gt.f32.partialorder %v2215, 0.0
        %vm2280 = vcmp.gt.f32.partialorder %v2216, 0.0
        %vm2281 = vcmp.gt.f32.partialorder %v2217, 0.0
        %vm2282 = vcmp.gt.f32.partialorder %v2218, 0.0
        %vm2283 = vcmp.gt.f32.partialorder %v2219, 0.0
        %vm2284 = vcmp.gt.f32.partialorder %v2220, 0.0
        %vm2285 = vcmp.gt.f32.partialorder %v2221, 0.0
        %vm2286 = vcmp.gt.f32.partialorder %v2222, 0.0
        %vm2287 = vcmp.gt.f32.partialorder %v2223, 0.0
        %vm2288 = vcmp.gt.f32.partialorder %v2224, 0.0
        %vm2289 = vcmp.gt.f32.partialorder %v2225, 0.0
        %vm2290 = vcmp.gt.f32.partialorder %v2226, 0.0
        %vm2291 = vcmp.gt.f32.partialorder %v2227, 0.0
        %vm2292 = vcmp.gt.f32.partialorder %v2228, 0.0
        %vm2293 = vcmp.gt.f32.partialorder %v2229, 0.0
        %vm2294 = vcmp.gt.f32.partialorder %v2230, 0.0
        %vm2295 = vcmp.gt.f32.partialorder %v2231, 0.0
        %vm2296 = vcmp.gt.f32.partialorder %v2232, 0.0
        %vm2297 = vcmp.gt.f32.partialorder %v2233, 0.0
        %vm2298 = vcmp.gt.f32.partialorder %v2234, 0.0
        %vm2299 = vcmp.gt.f32.partialorder %v2235, 0.0
        %vm2300 = vcmp.gt.f32.partialorder %v2236, 0.0
        %vm2301 = vcmp.gt.f32.partialorder %v2237, 0.0
        %vm2302 = vcmp.gt.f32.partialorder %v2238, 0.0
        %vm2303 = vcmp.gt.f32.partialorder %v2239, 0.0
        %vm2304 = vcmp.gt.f32.partialorder %v2240, 0.0
        %vm2305 = vcmp.gt.f32.partialorder %v2241, 0.0
        %vm2306 = vcmp.gt.f32.partialorder %v2242, 0.0
        %vm2307 = vcmp.gt.f32.partialorder %v2243, 0.0
        %vm2308 = vcmp.gt.f32.partialorder %v2244, 0.0
        %vm2309 = vcmp.gt.f32.partialorder %v2245, 0.0
        %vm2310 = vcmp.gt.f32.partialorder %v2246, 0.0
        %vm2311 = vcmp.gt.f32.partialorder %v2247, 0.0
        %vm2312 = vcmp.gt.f32.partialorder %v2248, 0.0
        %vm2313 = vcmp.gt.f32.partialorder %v2249, 0.0
        %vm2314 = vcmp.gt.f32.partialorder %v2250, 0.0
        %vm2315 = vcmp.gt.f32.partialorder %v2251, 0.0
        %vm2316 = vcmp.gt.f32.partialorder %v2252, 0.0
        %vm2317 = vcmp.gt.f32.partialorder %v2253, 0.0
        %vm2318 = vcmp.gt.f32.partialorder %v2254, 0.0
        %vm2319 = vcmp.gt.f32.partialorder %v2255, 0.0
        %vm2320 = vcmp.gt.f32.partialorder %v2256, 0.0
        %vm2321 = vcmp.gt.f32.partialorder %v2257, 0.0
        %vm2322 = vcmp.gt.f32.partialorder %v2258, 0.0
        %vm2323 = vcmp.gt.f32.partialorder %v2259, 0.0
        %vm2324 = vcmp.gt.f32.partialorder %v2260, 0.0
        %vm2325 = vcmp.gt.f32.partialorder %v2261, 0.0
        %vm2326 = vcmp.gt.f32.partialorder %v2262, 0.0
        %vm2327 = vcmp.gt.f32.partialorder %v2263, 0.0
        %vm2328 = vcmp.gt.f32.partialorder %v2264, 0.0
        %vm2329 = vcmp.gt.f32.partialorder %v2265, 0.0
        %vm2330 = vcmp.gt.f32.partialorder %v2266, 0.0
        %v2331 = vmul.f32 %v2203, 0.1
        %v2332 = vmul.f32 %v2204, 0.1
        %v2333 = vmul.f32 %v2205, 0.1
        %v2334 = vmul.f32 %v2206, 0.1
        %v2335 = vmul.f32 %v2207, 0.1
        %v2336 = vmul.f32 %v2208, 0.1
        %v2337 = vmul.f32 %v2209, 0.1
        %v2338 = vmul.f32 %v2210, 0.1
        %v2339 = vmul.f32 %v2211, 0.1
        %v2340 = vmul.f32 %v2212, 0.1
        %v2341 = vmul.f32 %v2213, 0.1
        %v2342 = vmul.f32 %v2214, 0.1
        %v2343 = vmul.f32 %v2215, 0.1
        %v2344 = vmul.f32 %v2216, 0.1
        %v2345 = vmul.f32 %v2217, 0.1
        %v2346 = vmul.f32 %v2218, 0.1
        %v2347 = vmul.f32 %v2219, 0.1
        %v2348 = vmul.f32 %v2220, 0.1
        %v2349 = vmul.f32 %v2221, 0.1
        %v2350 = vmul.f32 %v2222, 0.1
        %v2351 = vmul.f32 %v2223, 0.1
        %v2352 = vmul.f32 %v2224, 0.1
        %v2353 = vmul.f32 %v2225, 0.1
        %v2354 = vmul.f32 %v2226, 0.1
        %v2355 = vmul.f32 %v2227, 0.1
        %v2356 = vmul.f32 %v2228, 0.1
        %v2357 = vmul.f32 %v2229, 0.1
        %v2358 = vmul.f32 %v2230, 0.1
        %v2359 = vmul.f32 %v2231, 0.1
        %v2360 = vmul.f32 %v2232, 0.1
        %v2361 = vmul.f32 %v2233, 0.1
        %v2362 = vmul.f32 %v2234, 0.1
        %v2363 = vmul.f32 %v2235, 0.1
        %v2364 = vmul.f32 %v2236, 0.1
        %v2365 = vmul.f32 %v2237, 0.1
        %v2366 = vmul.f32 %v2238, 0.1
        %v2367 = vmul.f32 %v2239, 0.1
        %v2368 = vmul.f32 %v2240, 0.1
        %v2369 = vmul.f32 %v2241, 0.1
        %v2370 = vmul.f32 %v2242, 0.1
        %v2371 = vmul.f32 %v2243, 0.1
        %v2372 = vmul.f32 %v2244, 0.1
        %v2373 = vmul.f32 %v2245, 0.1
        %v2374 = vmul.f32 %v2246, 0.1
        %v2375 = vmul.f32 %v2247, 0.1
        %v2376 = vmul.f32 %v2248, 0.1
        %v2377 = vmul.f32 %v2249, 0.1
        %v2378 = vmul.f32 %v2250, 0.1
        %v2379 = vmul.f32 %v2251, 0.1
        %v2380 = vmul.f32 %v2252, 0.1
        %v2381 = vmul.f32 %v2253, 0.1
        %v2382 = vmul.f32 %v2254, 0.1
        %v2383 = vmul.f32 %v2255, 0.1
        %v2384 = vmul.f32 %v2256, 0.1
        %v2385 = vmul.f32 %v2257, 0.1
        %v2386 = vmul.f32 %v2258, 0.1
        %v2387 = vmul.f32 %v2259, 0.1
        %v2388 = vmul.f32 %v2260, 0.1
        %v2389 = vmul.f32 %v2261, 0.1
        %v2390 = vmul.f32 %v2262, 0.1
        %v2391 = vmul.f32 %v2263, 0.1
        %v2392 = vmul.f32 %v2264, 0.1
        %v2393 = vmul.f32 %v2265, 0.1
        %v2394 = vmul.f32 %v2266, 0.1
        %v2395 = vsel %vm2267, %v2203, %v2331
        %v2396 = vsel %vm2268, %v2204, %v2332
        %v2397 = vsel %vm2269, %v2205, %v2333
        %v2398 = vsel %vm2270, %v2206, %v2334
        %v2399 = vsel %vm2271, %v2207, %v2335
        %v2400 = vsel %vm2272, %v2208, %v2336
        %v2401 = vsel %vm2273, %v2209, %v2337
        %v2402 = vsel %vm2274, %v2210, %v2338
        %v2403 = vsel %vm2275, %v2211, %v2339
        %v2404 = vsel %vm2276, %v2212, %v2340
        %v2405 = vsel %vm2277, %v2213, %v2341
        %v2406 = vsel %vm2278, %v2214, %v2342
        %v2407 = vsel %vm2279, %v2215, %v2343
        %v2408 = vsel %vm2280, %v2216, %v2344
        %v2409 = vsel %vm2281, %v2217, %v2345
        %v2410 = vsel %vm2282, %v2218, %v2346
        %v2411 = vsel %vm2283, %v2219, %v2347
        %v2412 = vsel %vm2284, %v2220, %v2348
        %v2413 = vsel %vm2285, %v2221, %v2349
        %v2414 = vsel %vm2286, %v2222, %v2350
        %v2415 = vsel %vm2287, %v2223, %v2351
        %v2416 = vsel %vm2288, %v2224, %v2352
        %v2417 = vsel %vm2289, %v2225, %v2353
        %v2418 = vsel %vm2290, %v2226, %v2354
        %v2419 = vsel %vm2291, %v2227, %v2355
        %v2420 = vsel %vm2292, %v2228, %v2356
        %v2421 = vsel %vm2293, %v2229, %v2357
        %v2422 = vsel %vm2294, %v2230, %v2358
        %v2423 = vsel %vm2295, %v2231, %v2359
        %v2424 = vsel %vm2296, %v2232, %v2360
        %v2425 = vsel %vm2297, %v2233, %v2361
        %v2426 = vsel %vm2298, %v2234, %v2362
        %v2427 = vsel %vm2299, %v2235, %v2363
        %v2428 = vsel %vm2300, %v2236, %v2364
        %v2429 = vsel %vm2301, %v2237, %v2365
        %v2430 = vsel %vm2302, %v2238, %v2366
        %v2431 = vsel %vm2303, %v2239, %v2367
        %v2432 = vsel %vm2304, %v2240, %v2368
        %v2433 = vsel %vm2305, %v2241, %v2369
        %v2434 = vsel %vm2306, %v2242, %v2370
        %v2435 = vsel %vm2307, %v2243, %v2371
        %v2436 = vsel %vm2308, %v2244, %v2372
        %v2437 = vsel %vm2309, %v2245, %v2373
        %v2438 = vsel %vm2310, %v2246, %v2374
        %v2439 = vsel %vm2311, %v2247, %v2375
        %v2440 = vsel %vm2312, %v2248, %v2376
        %v2441 = vsel %vm2313, %v2249, %v2377
        %v2442 = vsel %vm2314, %v2250, %v2378
        %v2443 = vsel %vm2315, %v2251, %v2379
        %v2444 = vsel %vm2316, %v2252, %v2380
        %v2445 = vsel %vm2317, %v2253, %v2381
        %v2446 = vsel %vm2318, %v2254, %v2382
        %v2447 = vsel %vm2319, %v2255, %v2383
        %v2448 = vsel %vm2320, %v2256, %v2384
        %v2449 = vsel %vm2321, %v2257, %v2385
        %v2450 = vsel %vm2322, %v2258, %v2386
        %v2451 = vsel %vm2323, %v2259, %v2387
        %v2452 = vsel %vm2324, %v2260, %v2388
        %v2453 = vsel %vm2325, %v2261, %v2389
        %v2454 = vsel %vm2326, %v2262, %v2390
        %v2455 = vsel %vm2327, %v2263, %v2391
        %v2456 = vsel %vm2328, %v2264, %v2392
        %v2457 = vsel %vm2329, %v2265, %v2393
        %v2458 = vsel %vm2330, %v2266, %v2394
        %2459 = vst [vmem:[%s344] sm:$0xff] %v2395
        %2460 = vst [vmem:[%s344 + $0x8] sm:$0xff] %v2396
        %2461 = vst [vmem:[%s344 + $0x10] sm:$0xff] %v2397
        %2462 = vst [vmem:[%s344 + $0x18] sm:$0xff] %v2398
        %2463 = vst [vmem:[%s344 + $0x20] sm:$0xff] %v2399
        %2464 = vst [vmem:[%s344 + $0x28] sm:$0xff] %v2400
        %2465 = vst [vmem:[%s344 + $0x30] sm:$0xff] %v2401
        %2466 = vst [vmem:[%s344 + $0x38] sm:$0xff] %v2402
        %2467 = vst [vmem:[%s344 + $0x40] sm:$0xff] %v2403
        %2468 = vst [vmem:[%s344 + $0x48] sm:$0xff] %v2404
        %2469 = vst [vmem:[%s344 + $0x50] sm:$0xff] %v2405
        %2470 = vst [vmem:[%s344 + $0x58] sm:$0xff] %v2406
        %2471 = vst [vmem:[%s344 + $0x60] sm:$0xff] %v2407
        %2472 = vst [vmem:[%s344 + $0x68] sm:$0xff] %v2408
        %2473 = vst [vmem:[%s344 + $0x70] sm:$0xff] %v2409
        %2474 = vst [vmem:[%s344 + $0x78] sm:$0xff] %v2410
        %2475 = vst [vmem:[%s344 + $0x80] sm:$0xff] %v2411
        %2476 = vst [vmem:[%s344 + $0x88] sm:$0xff] %v2412
        %2477 = vst [vmem:[%s344 + $0x90] sm:$0xff] %v2413
        %2478 = vst [vmem:[%s344 + $0x98] sm:$0xff] %v2414
        %2479 = vst [vmem:[%s344 + $0xa0] sm:$0xff] %v2415
        %2480 = vst [vmem:[%s344 + $0xa8] sm:$0xff] %v2416
        %2481 = vst [vmem:[%s344 + $0xb0] sm:$0xff] %v2417
        %2482 = vst [vmem:[%s344 + $0xb8] sm:$0xff] %v2418
        %2483 = vst [vmem:[%s344 + $0xc0] sm:$0xff] %v2419
        %2484 = vst [vmem:[%s344 + $0xc8] sm:$0xff] %v2420
        %2485 = vst [vmem:[%s344 + $0xd0] sm:$0xff] %v2421
        %2486 = vst [vmem:[%s344 + $0xd8] sm:$0xff] %v2422
        %2487 = vst [vmem:[%s344 + $0xe0] sm:$0xff] %v2423
        %2488 = vst [vmem:[%s344 + $0xe8] sm:$0xff] %v2424
        %2489 = vst [vmem:[%s344 + $0xf0] sm:$0xff] %v2425
        %2490 = vst [vmem:[%s344 + $0xf8] sm:$0xff] %v2426
        %2491 = vst [vmem:[%s344 + $0x100] sm:$0xff] %v2427
        %2492 = vst [vmem:[%s344 + $0x108] sm:$0xff] %v2428
        %2493 = vst [vmem:[%s344 + $0x110] sm:$0xff] %v2429
        %2494 = vst [vmem:[%s344 + $0x118] sm:$0xff] %v2430
        %2495 = vst [vmem:[%s344 + $0x120] sm:$0xff] %v2431
        %2496 = vst [vmem:[%s344 + $0x128] sm:$0xff] %v2432
        %2497 = vst [vmem:[%s344 + $0x130] sm:$0xff] %v2433
        %2498 = vst [vmem:[%s344 + $0x138] sm:$0xff] %v2434
        %2499 = vst [vmem:[%s344 + $0x140] sm:$0xff] %v2435
        %2500 = vst [vmem:[%s344 + $0x148] sm:$0xff] %v2436
        %2501 = vst [vmem:[%s344 + $0x150] sm:$0xff] %v2437
        %2502 = vst [vmem:[%s344 + $0x158] sm:$0xff] %v2438
        %2503 = vst [vmem:[%s344 + $0x160] sm:$0xff] %v2439
        %2504 = vst [vmem:[%s344 + $0x168] sm:$0xff] %v2440
        %2505 = vst [vmem:[%s344 + $0x170] sm:$0xff] %v2441
        %2506 = vst [vmem:[%s344 + $0x178] sm:$0xff] %v2442
        %2507 = vst [vmem:[%s344 + $0x180] sm:$0xff] %v2443
        %2508 = vst [vmem:[%s344 + $0x188] sm:$0xff] %v2444
        %2509 = vst [vmem:[%s344 + $0x190] sm:$0xff] %v2445
        %2510 = vst [vmem:[%s344 + $0x198] sm:$0xff] %v2446
        %2511 = vst [vmem:[%s344 + $0x1a0] sm:$0xff] %v2447
        %2512 = vst [vmem:[%s344 + $0x1a8] sm:$0xff] %v2448
        %2513 = vst [vmem:[%s344 + $0x1b0] sm:$0xff] %v2449
        %2514 = vst [vmem:[%s344 + $0x1b8] sm:$0xff] %v2450
        %2515 = vst [vmem:[%s344 + $0x1c0] sm:$0xff] %v2451
        %2516 = vst [vmem:[%s344 + $0x1c8] sm:$0xff] %v2452
        %2517 = vst [vmem:[%s344 + $0x1d0] sm:$0xff] %v2453
        %2518 = vst [vmem:[%s344 + $0x1d8] sm:$0xff] %v2454
        %2519 = vst [vmem:[%s344 + $0x1e0] sm:$0xff] %v2455
        %2520 = vst [vmem:[%s344 + $0x1e8] sm:$0xff] %v2456
        %2521 = vst [vmem:[%s344 + $0x1f0] sm:$0xff] %v2457
        %2522 = vst [vmem:[%s344 + $0x1f8] sm:$0xff] %v2458
        %s2523 = sand.u32 %s230, 1
        %s2524 = scalar_lea.sflag [#allocation3], %s2523
        %s2525 = sand.u32 %s230, 1
        %s2526 = smul.addr %s2525, 512
        %s2527 = scalar_lea.vmem [#allocation2], %s2526
        // Predicated region
        $region57: #{fpn_forward.3} parent=55 // pred_check
          %p2528 = pneg %p240
        $region58: #{fpn_forward.3} parent=55 // pred_check_branch
          %2530 = sbr.rel (%p2528) target = $region60
        $region59: #{fpn_forward.3} parent=55 // pred_region
          %s2531 = smul.u32 32, %s23
          %s2533 = ssub.s32 8192, 8192
          %2534 = vsyncadd %s2524, %s2533
          %s2535 = smul.addr %s2531, 2
          %s2536 = smul.addr %s2535, 128
          %s2537 = scalar_lea.hbm %s9, %s2536
          %s2538 = sshll.u32 %s2527, 4
          %s2539 = int_to_ptr.vmem [resolvable:$true] %s2538
          %2544 = dma.vmem_to_hbm [thread:$0]  %s2539, 8192, %s2537, %s2524, 256, 256, 16
        $region60: #{fpn_forward.3} parent=55 // pred_fallthru
          _
      $region56: #{fpn_forward.3} parent=5 // pred_fallthru
        _
      %p2545 = scmp.le.s32.totalorder 2, %s18
      // Predicated region
      $region61: #{fpn_forward.3} parent=5 // pred_check
        %p2546 = pneg %p2545
      $region62: #{fpn_forward.3} parent=5 // pred_check_branch
        %2548 = sbr.rel (%p2546) target = $region64
      $region63: #{fpn_forward.3} parent=5 // pred_region
        %s2549 = ssub.s32 %s18, 2
        // Predicated region
        $region65: #{fpn_forward.3} parent=63 // pred_check
          %p2550 = pneg %p246
        $region66: #{fpn_forward.3} parent=63 // pred_check_branch
          %2552 = sbr.rel (%p2550) target = $region68
        $region67: #{fpn_forward.3} parent=63 // pred_region
          %s2553 = sand.u32 %s231, 1
          %s2554 = scalar_lea.sflag [#allocation3], %s2553
          %s2555 = sand.u32 %s231, 1
          %s2556 = smul.addr %s2555, 512
          %s2557 = scalar_lea.vmem [#allocation2], %s2556
          %2558 = dma.done %s2554, 8192
        $region68: #{fpn_forward.3} parent=63 // pred_fallthru
          _
      $region64: #{fpn_forward.3} parent=5 // pred_fallthru
        _
    $region6: #{fpn_forward.3} parent=1 // loop_footer
      %s22 = sadd.s32 1, %s18
    $region7: #{fpn_forward.3} parent=1 // loop_footer_branch
      %17 = sbr.rel target = $region3
    $region8: #{fpn_forward.3} parent=1 // loop_exit
      _
    %2559 = vsyncpa [#allocation3], 1
    %s2560 = scalar_lea.sflag [#allocation3], 1
    %2561 = vsyncpa %s2560, 1

// kernel: fpn_forward.2
$region0: #{fpn_forward.2}
  #allocation0 [shape = 'u32[]', space=smem, size = 0x4, offset = 0x4, fixed_abs, tag = 'smem constant byte address 0x4 - core index']
  #allocation1 [shape = 'u32[144,128]{1,0:T(1,128)}', space=vmem, size = 0x12000, scoped, tag = 'internal scratch']
  %s0 = inlined_call_operand.vmem [shape: bf16[32,1024], index: 0, kind: input, shape index: {}]
  %s1 = inlined_call_operand.vmem [shape: bf16[128,512], index: 1, kind: input, shape index: {}]
  %s2 = inlined_call_operand.vmem [shape: bf16[1024,256], index: 2, kind: input, shape index: {}]
  %s3 = inlined_call_operand.vmem [shape: f32[1,256], index: 3, kind: input, shape index: {}]
  %s4 = inlined_call_operand.vmem [shape: f32[1,256], index: 4, kind: input, shape index: {}]
  %s5 = inlined_call_operand.hbm [shape: bf16[512,256], index: 5, kind: input, shape index: {}]
  %s6 = inlined_call_operand.vmem [shape: f32[1,256], index: 6, kind: input, shape index: {}]
  %s7 = inlined_call_operand.vmem [shape: f32[1,256], index: 7, kind: input, shape index: {}]
  %s8 = inlined_call_operand.vmem [shape: bf16[256,256], index: 8, kind: input, shape index: {}]
  %s9 = inlined_call_operand.vmem [shape: f32[1,256], index: 9, kind: input, shape index: {}]
  %s10 = inlined_call_operand.vmem [shape: f32[1,256], index: 10, kind: input, shape index: {}]
  %s11 = inlined_call_operand.vmem [shape: bf16[128,32], index: 11, kind: input, shape index: {}]
  %s12 = inlined_call_operand.vmem [shape: f32[32,256], index: 12, kind: output, shape index: {0}]
  %s13 = inlined_call_operand.hbm [shape: f32[128,256], index: 13, kind: output, shape index: {1}]
  %s14 = inlined_call_operand.vmem [shape: bf16[128,256], index: 14, kind: output, shape index: {2}]
  %15 = xla_tuple %s12, %s13, %s14
  %s16 = sld [smem:[#allocation0]]
  $region78: #{fpn_forward.2} parent=0
    _
  %s18 = ssub.s32 1, %s16
  %s19 = scalar_select 0, %s18, %s16
  $region1: #{fpn_forward.2} parent=0
    #allocation2 [shape = 'u8[262144]{0}', space=vmem, size = 0x40000, scoped, tag = 'input window, operand 5, single buffered']
    #allocation3 [shape = 's32[1]{0}', space=sflag, size = 0x4, scoped, tag = 'scoped memory for fpn_forward.2']
    #allocation4 [shape = 's32[1]{0}', space=sflag, size = 0x4, scoped, tag = 'scoped memory for fpn_forward.2']
    #allocation5 [shape = 'u8[131072]{0}', space=vmem, size = 0x20000, scoped, tag = 'output window, operand 1, single buffered']
    %20 = vsyncpa [#allocation3], 0
    %21 = vsyncpa [#allocation4], 0
    // Predicated region
    $region2: #{fpn_forward.2} parent=1 // pred_check
      _
    $region3: #{fpn_forward.2} parent=1 // pred_check_branch
      %23 = sbr.rel (0) target = $region5
    $region4: #{fpn_forward.2} parent=1 // pred_region
      _
    $region5: #{fpn_forward.2} parent=1 // pred_fallthru
      _
    // Predicated region
    $region6: #{fpn_forward.2} parent=1 // pred_check
      _
    $region7: #{fpn_forward.2} parent=1 // pred_check_branch
      %25 = sbr.rel (0) target = $region9
    $region8: #{fpn_forward.2} parent=1 // pred_region
      _
    $region9: #{fpn_forward.2} parent=1 // pred_fallthru
      _
    // Predicated region
    $region10: #{fpn_forward.2} parent=1 // pred_check
      _
    $region11: #{fpn_forward.2} parent=1 // pred_check_branch
      %27 = sbr.rel (0) target = $region13
    $region12: #{fpn_forward.2} parent=1 // pred_region
      _
    $region13: #{fpn_forward.2} parent=1 // pred_fallthru
      _
    // Predicated region
    $region14: #{fpn_forward.2} parent=1 // pred_check
      _
    $region15: #{fpn_forward.2} parent=1 // pred_check_branch
      %29 = sbr.rel (0) target = $region17
    $region16: #{fpn_forward.2} parent=1 // pred_region
      _
    $region17: #{fpn_forward.2} parent=1 // pred_fallthru
      _
    // Predicated region
    $region18: #{fpn_forward.2} parent=1 // pred_check
      _
    $region19: #{fpn_forward.2} parent=1 // pred_check_branch
      %31 = sbr.rel (0) target = $region21
    $region20: #{fpn_forward.2} parent=1 // pred_region
      _
    $region21: #{fpn_forward.2} parent=1 // pred_fallthru
      _
    // Predicated region
    $region22: #{fpn_forward.2} parent=1 // pred_check
      _
    $region23: #{fpn_forward.2} parent=1 // pred_check_branch
      %33 = sbr.rel (0) target = $region25
    $region24: #{fpn_forward.2} parent=1 // pred_region
      %s35 = ssub.s32 8192, 8192
      %36 = vsyncadd [#allocation3], %s35
      %s37 = sshll.u32 [#allocation2], 4
      %s38 = int_to_ptr.vmem [resolvable:$true] %s37
      %43 = dma.hbm_to_vmem [thread:$0]  %s5, 8192, %s38, [#allocation3], 128, 128, 8
    $region25: #{fpn_forward.2} parent=1 // pred_fallthru
      _
    // Predicated region
    $region26: #{fpn_forward.2} parent=1 // pred_check
      _
    $region27: #{fpn_forward.2} parent=1 // pred_check_branch
      %45 = sbr.rel (0) target = $region29
    $region28: #{fpn_forward.2} parent=1 // pred_region
      _
    $region29: #{fpn_forward.2} parent=1 // pred_fallthru
      _
    // Predicated region
    $region30: #{fpn_forward.2} parent=1 // pred_check
      _
    $region31: #{fpn_forward.2} parent=1 // pred_check_branch
      %47 = sbr.rel (0) target = $region33
    $region32: #{fpn_forward.2} parent=1 // pred_region
      _
    $region33: #{fpn_forward.2} parent=1 // pred_fallthru
      _
    // Predicated region
    $region34: #{fpn_forward.2} parent=1 // pred_check
      _
    $region35: #{fpn_forward.2} parent=1 // pred_check_branch
      %49 = sbr.rel (0) target = $region37
    $region36: #{fpn_forward.2} parent=1 // pred_region
      _
    $region37: #{fpn_forward.2} parent=1 // pred_fallthru
      _
    // Predicated region
    $region38: #{fpn_forward.2} parent=1 // pred_check
      _
    $region39: #{fpn_forward.2} parent=1 // pred_check_branch
      %51 = sbr.rel (0) target = $region41
    $region40: #{fpn_forward.2} parent=1 // pred_region
      _
    $region41: #{fpn_forward.2} parent=1 // pred_fallthru
      _
    // Predicated region
    $region42: #{fpn_forward.2} parent=1 // pred_check
      _
    $region43: #{fpn_forward.2} parent=1 // pred_check_branch
      %53 = sbr.rel (0) target = $region45
    $region44: #{fpn_forward.2} parent=1 // pred_region
      _
    $region45: #{fpn_forward.2} parent=1 // pred_fallthru
      _
    // Predicated region
    $region46: #{fpn_forward.2} parent=1 // pred_check
      _
    $region47: #{fpn_forward.2} parent=1 // pred_check_branch
      %55 = sbr.rel (0) target = $region49
    $region48: #{fpn_forward.2} parent=1 // pred_region
      _
    $region49: #{fpn_forward.2} parent=1 // pred_fallthru
      _
    // Predicated region
    $region50: #{fpn_forward.2} parent=1 // pred_check
      _
    $region51: #{fpn_forward.2} parent=1 // pred_check_branch
      %57 = sbr.rel (0) target = $region53
    $region52: #{fpn_forward.2} parent=1 // pred_region
      %58 = dma.done [#allocation3], 8192
    $region53: #{fpn_forward.2} parent=1 // pred_fallthru
      _
    %v60 = vld [vmem:[%s0] sm:$0xff]
    %v61 = vld [vmem:[%s0 + $0x8] sm:$0xff]
    %v62 = vld [vmem:[%s0 + $0x10] sm:$0xff]
    %v63 = vld [vmem:[%s0 + $0x18] sm:$0xff]
    %v64 = vld [vmem:[%s0 + $0x20] sm:$0xff]
    %v65 = vld [vmem:[%s0 + $0x28] sm:$0xff]
    %v66 = vld [vmem:[%s0 + $0x30] sm:$0xff]
    %v67 = vld [vmem:[%s0 + $0x38] sm:$0xff]
    %v68 = vld [vmem:[%s0 + $0x40] sm:$0xff]
    %v69 = vld [vmem:[%s0 + $0x48] sm:$0xff]
    %v70 = vld [vmem:[%s0 + $0x50] sm:$0xff]
    %v71 = vld [vmem:[%s0 + $0x58] sm:$0xff]
    %v72 = vld [vmem:[%s0 + $0x60] sm:$0xff]
    %v73 = vld [vmem:[%s0 + $0x68] sm:$0xff]
    %v74 = vld [vmem:[%s0 + $0x70] sm:$0xff]
    %v75 = vld [vmem:[%s0 + $0x78] sm:$0xff]
    %v76 = vld [vmem:[%s2] sm:$0xff]
    %v77 = vld [vmem:[%s2 + $0x8] sm:$0xff]
    %v78 = vld [vmem:[%s2 + $0x10] sm:$0xff]
    %v79 = vld [vmem:[%s2 + $0x18] sm:$0xff]
    %v80 = vld [vmem:[%s2 + $0x20] sm:$0xff]
    %v81 = vld [vmem:[%s2 + $0x28] sm:$0xff]
    %v82 = vld [vmem:[%s2 + $0x30] sm:$0xff]
    %v83 = vld [vmem:[%s2 + $0x38] sm:$0xff]
    %v84 = vld [vmem:[%s2 + $0x40] sm:$0xff]
    %v85 = vld [vmem:[%s2 + $0x48] sm:$0xff]
    %v86 = vld [vmem:[%s2 + $0x50] sm:$0xff]
    %v87 = vld [vmem:[%s2 + $0x58] sm:$0xff]
    %v88 = vld [vmem:[%s2 + $0x60] sm:$0xff]
    %v89 = vld [vmem:[%s2 + $0x68] sm:$0xff]
    %v90 = vld [vmem:[%s2 + $0x70] sm:$0xff]
    %v91 = vld [vmem:[%s2 + $0x78] sm:$0xff]
    %v92 = vld [vmem:[%s2 + $0x80] sm:$0xff]
    %v93 = vld [vmem:[%s2 + $0x88] sm:$0xff]
    %v94 = vld [vmem:[%s2 + $0x90] sm:$0xff]
    %v95 = vld [vmem:[%s2 + $0x98] sm:$0xff]
    %v96 = vld [vmem:[%s2 + $0xa0] sm:$0xff]
    %v97 = vld [vmem:[%s2 + $0xa8] sm:$0xff]
    %v98 = vld [vmem:[%s2 + $0xb0] sm:$0xff]
    %v99 = vld [vmem:[%s2 + $0xb8] sm:$0xff]
    %v100 = vld [vmem:[%s2 + $0xc0] sm:$0xff]
    %v101 = vld [vmem:[%s2 + $0xc8] sm:$0xff]
    %v102 = vld [vmem:[%s2 + $0xd0] sm:$0xff]
    %v103 = vld [vmem:[%s2 + $0xd8] sm:$0xff]
    %v104 = vld [vmem:[%s2 + $0xe0] sm:$0xff]
    %v105 = vld [vmem:[%s2 + $0xe8] sm:$0xff]
    %v106 = vld [vmem:[%s2 + $0xf0] sm:$0xff]
    %v107 = vld [vmem:[%s2 + $0xf8] sm:$0xff]
    %v108 = vld [vmem:[%s2 + $0x100] sm:$0xff]
    %v109 = vld [vmem:[%s2 + $0x108] sm:$0xff]
    %v110 = vld [vmem:[%s2 + $0x110] sm:$0xff]
    %v111 = vld [vmem:[%s2 + $0x118] sm:$0xff]
    %v112 = vld [vmem:[%s2 + $0x120] sm:$0xff]
    %v113 = vld [vmem:[%s2 + $0x128] sm:$0xff]
    %v114 = vld [vmem:[%s2 + $0x130] sm:$0xff]
    %v115 = vld [vmem:[%s2 + $0x138] sm:$0xff]
    %v116 = vld [vmem:[%s2 + $0x140] sm:$0xff]
    %v117 = vld [vmem:[%s2 + $0x148] sm:$0xff]
    %v118 = vld [vmem:[%s2 + $0x150] sm:$0xff]
    %v119 = vld [vmem:[%s2 + $0x158] sm:$0xff]
    %v120 = vld [vmem:[%s2 + $0x160] sm:$0xff]
    %v121 = vld [vmem:[%s2 + $0x168] sm:$0xff]
    %v122 = vld [vmem:[%s2 + $0x170] sm:$0xff]
    %v123 = vld [vmem:[%s2 + $0x178] sm:$0xff]
    %v124 = vld [vmem:[%s2 + $0x180] sm:$0xff]
    %v125 = vld [vmem:[%s2 + $0x188] sm:$0xff]
    %v126 = vld [vmem:[%s2 + $0x190] sm:$0xff]
    %v127 = vld [vmem:[%s2 + $0x198] sm:$0xff]
    %v128 = vld [vmem:[%s2 + $0x1a0] sm:$0xff]
    %v129 = vld [vmem:[%s2 + $0x1a8] sm:$0xff]
    %v130 = vld [vmem:[%s2 + $0x1b0] sm:$0xff]
    %v131 = vld [vmem:[%s2 + $0x1b8] sm:$0xff]
    %v132 = vld [vmem:[%s2 + $0x1c0] sm:$0xff]
    %v133 = vld [vmem:[%s2 + $0x1c8] sm:$0xff]
    %v134 = vld [vmem:[%s2 + $0x1d0] sm:$0xff]
    %v135 = vld [vmem:[%s2 + $0x1d8] sm:$0xff]
    %v136 = vld [vmem:[%s2 + $0x1e0] sm:$0xff]
    %v137 = vld [vmem:[%s2 + $0x1e8] sm:$0xff]
    %v138 = vld [vmem:[%s2 + $0x1f0] sm:$0xff]
    %v139 = vld [vmem:[%s2 + $0x1f8] sm:$0xff]
    %v140 = vld [vmem:[%s2 + $0x200] sm:$0xff]
    %v141 = vld [vmem:[%s2 + $0x208] sm:$0xff]
    %v142 = vld [vmem:[%s2 + $0x210] sm:$0xff]
    %v143 = vld [vmem:[%s2 + $0x218] sm:$0xff]
    %v144 = vld [vmem:[%s2 + $0x220] sm:$0xff]
    %v145 = vld [vmem:[%s2 + $0x228] sm:$0xff]
    %v146 = vld [vmem:[%s2 + $0x230] sm:$0xff]
    %v147 = vld [vmem:[%s2 + $0x238] sm:$0xff]
    %v148 = vld [vmem:[%s2 + $0x240] sm:$0xff]
    %v149 = vld [vmem:[%s2 + $0x248] sm:$0xff]
    %v150 = vld [vmem:[%s2 + $0x250] sm:$0xff]
    %v151 = vld [vmem:[%s2 + $0x258] sm:$0xff]
    %v152 = vld [vmem:[%s2 + $0x260] sm:$0xff]
    %v153 = vld [vmem:[%s2 + $0x268] sm:$0xff]
    %v154 = vld [vmem:[%s2 + $0x270] sm:$0xff]
    %v155 = vld [vmem:[%s2 + $0x278] sm:$0xff]
    %v156 = vld [vmem:[%s2 + $0x280] sm:$0xff]
    %v157 = vld [vmem:[%s2 + $0x288] sm:$0xff]
    %v158 = vld [vmem:[%s2 + $0x290] sm:$0xff]
    %v159 = vld [vmem:[%s2 + $0x298] sm:$0xff]
    %v160 = vld [vmem:[%s2 + $0x2a0] sm:$0xff]
    %v161 = vld [vmem:[%s2 + $0x2a8] sm:$0xff]
    %v162 = vld [vmem:[%s2 + $0x2b0] sm:$0xff]
    %v163 = vld [vmem:[%s2 + $0x2b8] sm:$0xff]
    %v164 = vld [vmem:[%s2 + $0x2c0] sm:$0xff]
    %v165 = vld [vmem:[%s2 + $0x2c8] sm:$0xff]
    %v166 = vld [vmem:[%s2 + $0x2d0] sm:$0xff]
    %v167 = vld [vmem:[%s2 + $0x2d8] sm:$0xff]
    %v168 = vld [vmem:[%s2 + $0x2e0] sm:$0xff]
    %v169 = vld [vmem:[%s2 + $0x2e8] sm:$0xff]
    %v170 = vld [vmem:[%s2 + $0x2f0] sm:$0xff]
    %v171 = vld [vmem:[%s2 + $0x2f8] sm:$0xff]
    %v172 = vld [vmem:[%s2 + $0x300] sm:$0xff]
    %v173 = vld [vmem:[%s2 + $0x308] sm:$0xff]
    %v174 = vld [vmem:[%s2 + $0x310] sm:$0xff]
    %v175 = vld [vmem:[%s2 + $0x318] sm:$0xff]
    %v176 = vld [vmem:[%s2 + $0x320] sm:$0xff]
    %v177 = vld [vmem:[%s2 + $0x328] sm:$0xff]
    %v178 = vld [vmem:[%s2 + $0x330] sm:$0xff]
    %v179 = vld [vmem:[%s2 + $0x338] sm:$0xff]
    %v180 = vld [vmem:[%s2 + $0x340] sm:$0xff]
    %v181 = vld [vmem:[%s2 + $0x348] sm:$0xff]
    %v182 = vld [vmem:[%s2 + $0x350] sm:$0xff]
    %v183 = vld [vmem:[%s2 + $0x358] sm:$0xff]
    %v184 = vld [vmem:[%s2 + $0x360] sm:$0xff]
    %v185 = vld [vmem:[%s2 + $0x368] sm:$0xff]
    %v186 = vld [vmem:[%s2 + $0x370] sm:$0xff]
    %v187 = vld [vmem:[%s2 + $0x378] sm:$0xff]
    %v188 = vld [vmem:[%s2 + $0x380] sm:$0xff]
    %v189 = vld [vmem:[%s2 + $0x388] sm:$0xff]
    %v190 = vld [vmem:[%s2 + $0x390] sm:$0xff]
    %v191 = vld [vmem:[%s2 + $0x398] sm:$0xff]
    %v192 = vld [vmem:[%s2 + $0x3a0] sm:$0xff]
    %v193 = vld [vmem:[%s2 + $0x3a8] sm:$0xff]
    %v194 = vld [vmem:[%s2 + $0x3b0] sm:$0xff]
    %v195 = vld [vmem:[%s2 + $0x3b8] sm:$0xff]
    %v196 = vld [vmem:[%s2 + $0x3c0] sm:$0xff]
    %v197 = vld [vmem:[%s2 + $0x3c8] sm:$0xff]
    %v198 = vld [vmem:[%s2 + $0x3d0] sm:$0xff]
    %v199 = vld [vmem:[%s2 + $0x3d8] sm:$0xff]
    %v200 = vld [vmem:[%s2 + $0x3e0] sm:$0xff]
    %v201 = vld [vmem:[%s2 + $0x3e8] sm:$0xff]
    %v202 = vld [vmem:[%s2 + $0x3f0] sm:$0xff]
    %v203 = vld [vmem:[%s2 + $0x3f8] sm:$0xff]
    %v220 = vunpack.c.l.b16 %v60
    %v221 = vunpack.c.h.b16 %v60
    %v222 = vunpack.c.l.b16 %v61
    %v223 = vunpack.c.h.b16 %v61
    %v224 = vunpack.c.l.b16 %v62
    %v225 = vunpack.c.h.b16 %v62
    %v226 = vunpack.c.l.b16 %v63
    %v227 = vunpack.c.h.b16 %v63
    %v228 = vunpack.c.l.b16 %v64
    %v229 = vunpack.c.h.b16 %v64
    %v230 = vunpack.c.l.b16 %v65
    %v231 = vunpack.c.h.b16 %v65
    %v232 = vunpack.c.l.b16 %v66
    %v233 = vunpack.c.h.b16 %v66
    %v234 = vunpack.c.l.b16 %v67
    %v235 = vunpack.c.h.b16 %v67
    %v236 = vunpack.c.l.b16 %v68
    %v237 = vunpack.c.h.b16 %v68
    %v238 = vunpack.c.l.b16 %v69
    %v239 = vunpack.c.h.b16 %v69
    %v240 = vunpack.c.l.b16 %v70
    %v241 = vunpack.c.h.b16 %v70
    %v242 = vunpack.c.l.b16 %v71
    %v243 = vunpack.c.h.b16 %v71
    %v244 = vunpack.c.l.b16 %v72
    %v245 = vunpack.c.h.b16 %v72
    %v246 = vunpack.c.l.b16 %v73
    %v247 = vunpack.c.h.b16 %v73
    %v248 = vunpack.c.l.b16 %v74
    %v249 = vunpack.c.h.b16 %v74
    %v250 = vunpack.c.l.b16 %v75
    %v251 = vunpack.c.h.b16 %v75
    %v252 = vpack.c.b16 %v228, %v220
    %v253 = vpack.c.b16 %v229, %v221
    %v254 = vpack.c.b16 %v230, %v222
    %v255 = vpack.c.b16 %v231, %v223
    %v256 = vpack.c.b16 %v232, %v224
    %v257 = vpack.c.b16 %v233, %v225
    %v258 = vpack.c.b16 %v234, %v226
    %v259 = vpack.c.b16 %v235, %v227
    %v260 = vpack.c.b16 %v244, %v236
    %v261 = vpack.c.b16 %v245, %v237
    %v262 = vpack.c.b16 %v246, %v238
    %v263 = vpack.c.b16 %v247, %v239
    %v264 = vpack.c.b16 %v248, %v240
    %v265 = vpack.c.b16 %v249, %v241
    %v266 = vpack.c.b16 %v250, %v242
    %v267 = vpack.c.b16 %v251, %v243
    %v412 = vunpack.c.l.b16 %v76
    %v413 = vunpack.c.h.b16 %v76
    %v414 = vunpack.c.l.b16 %v77
    %v415 = vunpack.c.h.b16 %v77
    %v416 = vunpack.c.l.b16 %v78
    %v417 = vunpack.c.h.b16 %v78
    %v418 = vunpack.c.l.b16 %v79
    %v419 = vunpack.c.h.b16 %v79
    %v420 = vunpack.c.l.b16 %v80
    %v421 = vunpack.c.h.b16 %v80
    %v422 = vunpack.c.l.b16 %v81
    %v423 = vunpack.c.h.b16 %v81
    %v424 = vunpack.c.l.b16 %v82
    %v425 = vunpack.c.h.b16 %v82
    %v426 = vunpack.c.l.b16 %v83
    %v427 = vunpack.c.h.b16 %v83
    %v428 = vunpack.c.l.b16 %v84
    %v429 = vunpack.c.h.b16 %v84
    %v430 = vunpack.c.l.b16 %v85
    %v431 = vunpack.c.h.b16 %v85
    %v432 = vunpack.c.l.b16 %v86
    %v433 = vunpack.c.h.b16 %v86
    %v434 = vunpack.c.l.b16 %v87
    %v435 = vunpack.c.h.b16 %v87
    %v436 = vunpack.c.l.b16 %v88
    %v437 = vunpack.c.h.b16 %v88
    %v438 = vunpack.c.l.b16 %v89
    %v439 = vunpack.c.h.b16 %v89
    %v440 = vunpack.c.l.b16 %v90
    %v441 = vunpack.c.h.b16 %v90
    %v442 = vunpack.c.l.b16 %v91
    %v443 = vunpack.c.h.b16 %v91
    %v444 = vunpack.c.l.b16 %v92
    %v445 = vunpack.c.h.b16 %v92
    %v446 = vunpack.c.l.b16 %v93
    %v447 = vunpack.c.h.b16 %v93
    %v448 = vunpack.c.l.b16 %v94
    %v449 = vunpack.c.h.b16 %v94
    %v450 = vunpack.c.l.b16 %v95
    %v451 = vunpack.c.h.b16 %v95
    %v452 = vunpack.c.l.b16 %v96
    %v453 = vunpack.c.h.b16 %v96
    %v454 = vunpack.c.l.b16 %v97
    %v455 = vunpack.c.h.b16 %v97
    %v456 = vunpack.c.l.b16 %v98
    %v457 = vunpack.c.h.b16 %v98
    %v458 = vunpack.c.l.b16 %v99
    %v459 = vunpack.c.h.b16 %v99
    %v460 = vunpack.c.l.b16 %v100
    %v461 = vunpack.c.h.b16 %v100
    %v462 = vunpack.c.l.b16 %v101
    %v463 = vunpack.c.h.b16 %v101
    %v464 = vunpack.c.l.b16 %v102
    %v465 = vunpack.c.h.b16 %v102
    %v466 = vunpack.c.l.b16 %v103
    %v467 = vunpack.c.h.b16 %v103
    %v468 = vunpack.c.l.b16 %v104
    %v469 = vunpack.c.h.b16 %v104
    %v470 = vunpack.c.l.b16 %v105
    %v471 = vunpack.c.h.b16 %v105
    %v472 = vunpack.c.l.b16 %v106
    %v473 = vunpack.c.h.b16 %v106
    %v474 = vunpack.c.l.b16 %v107
    %v475 = vunpack.c.h.b16 %v107
    %v476 = vunpack.c.l.b16 %v108
    %v477 = vunpack.c.h.b16 %v108
    %v478 = vunpack.c.l.b16 %v109
    %v479 = vunpack.c.h.b16 %v109
    %v480 = vunpack.c.l.b16 %v110
    %v481 = vunpack.c.h.b16 %v110
    %v482 = vunpack.c.l.b16 %v111
    %v483 = vunpack.c.h.b16 %v111
    %v484 = vunpack.c.l.b16 %v112
    %v485 = vunpack.c.h.b16 %v112
    %v486 = vunpack.c.l.b16 %v113
    %v487 = vunpack.c.h.b16 %v113
    %v488 = vunpack.c.l.b16 %v114
    %v489 = vunpack.c.h.b16 %v114
    %v490 = vunpack.c.l.b16 %v115
    %v491 = vunpack.c.h.b16 %v115
    %v492 = vunpack.c.l.b16 %v116
    %v493 = vunpack.c.h.b16 %v116
    %v494 = vunpack.c.l.b16 %v117
    %v495 = vunpack.c.h.b16 %v117
    %v496 = vunpack.c.l.b16 %v118
    %v497 = vunpack.c.h.b16 %v118
    %v498 = vunpack.c.l.b16 %v119
    %v499 = vunpack.c.h.b16 %v119
    %v500 = vunpack.c.l.b16 %v120
    %v501 = vunpack.c.h.b16 %v120
    %v502 = vunpack.c.l.b16 %v121
    %v503 = vunpack.c.h.b16 %v121
    %v504 = vunpack.c.l.b16 %v122
    %v505 = vunpack.c.h.b16 %v122
    %v506 = vunpack.c.l.b16 %v123
    %v507 = vunpack.c.h.b16 %v123
    %v508 = vunpack.c.l.b16 %v124
    %v509 = vunpack.c.h.b16 %v124
    %v510 = vunpack.c.l.b16 %v125
    %v511 = vunpack.c.h.b16 %v125
    %v512 = vunpack.c.l.b16 %v126
    %v513 = vunpack.c.h.b16 %v126
    %v514 = vunpack.c.l.b16 %v127
    %v515 = vunpack.c.h.b16 %v127
    %v516 = vunpack.c.l.b16 %v128
    %v517 = vunpack.c.h.b16 %v128
    %v518 = vunpack.c.l.b16 %v129
    %v519 = vunpack.c.h.b16 %v129
    %v520 = vunpack.c.l.b16 %v130
    %v521 = vunpack.c.h.b16 %v130
    %v522 = vunpack.c.l.b16 %v131
    %v523 = vunpack.c.h.b16 %v131
    %v524 = vunpack.c.l.b16 %v132
    %v525 = vunpack.c.h.b16 %v132
    %v526 = vunpack.c.l.b16 %v133
    %v527 = vunpack.c.h.b16 %v133
    %v528 = vunpack.c.l.b16 %v134
    %v529 = vunpack.c.h.b16 %v134
    %v530 = vunpack.c.l.b16 %v135
    %v531 = vunpack.c.h.b16 %v135
    %v532 = vunpack.c.l.b16 %v136
    %v533 = vunpack.c.h.b16 %v136
    %v534 = vunpack.c.l.b16 %v137
    %v535 = vunpack.c.h.b16 %v137
    %v536 = vunpack.c.l.b16 %v138
    %v537 = vunpack.c.h.b16 %v138
    %v538 = vunpack.c.l.b16 %v139
    %v539 = vunpack.c.h.b16 %v139
    %v540 = vunpack.c.l.b16 %v140
    %v541 = vunpack.c.h.b16 %v140
    %v542 = vunpack.c.l.b16 %v141
    %v543 = vunpack.c.h.b16 %v141
    %v544 = vunpack.c.l.b16 %v142
    %v545 = vunpack.c.h.b16 %v142
    %v546 = vunpack.c.l.b16 %v143
    %v547 = vunpack.c.h.b16 %v143
    %v548 = vunpack.c.l.b16 %v144
    %v549 = vunpack.c.h.b16 %v144
    %v550 = vunpack.c.l.b16 %v145
    %v551 = vunpack.c.h.b16 %v145
    %v552 = vunpack.c.l.b16 %v146
    %v553 = vunpack.c.h.b16 %v146
    %v554 = vunpack.c.l.b16 %v147
    %v555 = vunpack.c.h.b16 %v147
    %v556 = vunpack.c.l.b16 %v148
    %v557 = vunpack.c.h.b16 %v148
    %v558 = vunpack.c.l.b16 %v149
    %v559 = vunpack.c.h.b16 %v149
    %v560 = vunpack.c.l.b16 %v150
    %v561 = vunpack.c.h.b16 %v150
    %v562 = vunpack.c.l.b16 %v151
    %v563 = vunpack.c.h.b16 %v151
    %v564 = vunpack.c.l.b16 %v152
    %v565 = vunpack.c.h.b16 %v152
    %v566 = vunpack.c.l.b16 %v153
    %v567 = vunpack.c.h.b16 %v153
    %v568 = vunpack.c.l.b16 %v154
    %v569 = vunpack.c.h.b16 %v154
    %v570 = vunpack.c.l.b16 %v155
    %v571 = vunpack.c.h.b16 %v155
    %v572 = vunpack.c.l.b16 %v156
    %v573 = vunpack.c.h.b16 %v156
    %v574 = vunpack.c.l.b16 %v157
    %v575 = vunpack.c.h.b16 %v157
    %v576 = vunpack.c.l.b16 %v158
    %v577 = vunpack.c.h.b16 %v158
    %v578 = vunpack.c.l.b16 %v159
    %v579 = vunpack.c.h.b16 %v159
    %v580 = vunpack.c.l.b16 %v160
    %v581 = vunpack.c.h.b16 %v160
    %v582 = vunpack.c.l.b16 %v161
    %v583 = vunpack.c.h.b16 %v161
    %v584 = vunpack.c.l.b16 %v162
    %v585 = vunpack.c.h.b16 %v162
    %v586 = vunpack.c.l.b16 %v163
    %v587 = vunpack.c.h.b16 %v163
    %v588 = vunpack.c.l.b16 %v164
    %v589 = vunpack.c.h.b16 %v164
    %v590 = vunpack.c.l.b16 %v165
    %v591 = vunpack.c.h.b16 %v165
    %v592 = vunpack.c.l.b16 %v166
    %v593 = vunpack.c.h.b16 %v166
    %v594 = vunpack.c.l.b16 %v167
    %v595 = vunpack.c.h.b16 %v167
    %v596 = vunpack.c.l.b16 %v168
    %v597 = vunpack.c.h.b16 %v168
    %v598 = vunpack.c.l.b16 %v169
    %v599 = vunpack.c.h.b16 %v169
    %v600 = vunpack.c.l.b16 %v170
    %v601 = vunpack.c.h.b16 %v170
    %v602 = vunpack.c.l.b16 %v171
    %v603 = vunpack.c.h.b16 %v171
    %v604 = vunpack.c.l.b16 %v172
    %v605 = vunpack.c.h.b16 %v172
    %v606 = vunpack.c.l.b16 %v173
    %v607 = vunpack.c.h.b16 %v173
    %v608 = vunpack.c.l.b16 %v174
    %v609 = vunpack.c.h.b16 %v174
    %v610 = vunpack.c.l.b16 %v175
    %v611 = vunpack.c.h.b16 %v175
    %v612 = vunpack.c.l.b16 %v176
    %v613 = vunpack.c.h.b16 %v176
    %v614 = vunpack.c.l.b16 %v177
    %v615 = vunpack.c.h.b16 %v177
    %v616 = vunpack.c.l.b16 %v178
    %v617 = vunpack.c.h.b16 %v178
    %v618 = vunpack.c.l.b16 %v179
    %v619 = vunpack.c.h.b16 %v179
    %v620 = vunpack.c.l.b16 %v180
    %v621 = vunpack.c.h.b16 %v180
    %v622 = vunpack.c.l.b16 %v181
    %v623 = vunpack.c.h.b16 %v181
    %v624 = vunpack.c.l.b16 %v182
    %v625 = vunpack.c.h.b16 %v182
    %v626 = vunpack.c.l.b16 %v183
    %v627 = vunpack.c.h.b16 %v183
    %v628 = vunpack.c.l.b16 %v184
    %v629 = vunpack.c.h.b16 %v184
    %v630 = vunpack.c.l.b16 %v185
    %v631 = vunpack.c.h.b16 %v185
    %v632 = vunpack.c.l.b16 %v186
    %v633 = vunpack.c.h.b16 %v186
    %v634 = vunpack.c.l.b16 %v187
    %v635 = vunpack.c.h.b16 %v187
    %v636 = vunpack.c.l.b16 %v188
    %v637 = vunpack.c.h.b16 %v188
    %v638 = vunpack.c.l.b16 %v189
    %v639 = vunpack.c.h.b16 %v189
    %v640 = vunpack.c.l.b16 %v190
    %v641 = vunpack.c.h.b16 %v190
    %v642 = vunpack.c.l.b16 %v191
    %v643 = vunpack.c.h.b16 %v191
    %v644 = vunpack.c.l.b16 %v192
    %v645 = vunpack.c.h.b16 %v192
    %v646 = vunpack.c.l.b16 %v193
    %v647 = vunpack.c.h.b16 %v193
    %v648 = vunpack.c.l.b16 %v194
    %v649 = vunpack.c.h.b16 %v194
    %v650 = vunpack.c.l.b16 %v195
    %v651 = vunpack.c.h.b16 %v195
    %v652 = vunpack.c.l.b16 %v196
    %v653 = vunpack.c.h.b16 %v196
    %v654 = vunpack.c.l.b16 %v197
    %v655 = vunpack.c.h.b16 %v197
    %v656 = vunpack.c.l.b16 %v198
    %v657 = vunpack.c.h.b16 %v198
    %v658 = vunpack.c.l.b16 %v199
    %v659 = vunpack.c.h.b16 %v199
    %v660 = vunpack.c.l.b16 %v200
    %v661 = vunpack.c.h.b16 %v200
    %v662 = vunpack.c.l.b16 %v201
    %v663 = vunpack.c.h.b16 %v201
    %v664 = vunpack.c.l.b16 %v202
    %v665 = vunpack.c.h.b16 %v202
    %v666 = vunpack.c.l.b16 %v203
    %v667 = vunpack.c.h.b16 %v203
    %v668 = vpack.c.b16 %v414, %v412
    %v669 = vpack.c.b16 %v415, %v413
    %v670 = vpack.c.b16 %v418, %v416
    %v671 = vpack.c.b16 %v419, %v417
    %v672 = vpack.c.b16 %v422, %v420
    %v673 = vpack.c.b16 %v423, %v421
    %v674 = vpack.c.b16 %v426, %v424
    %v675 = vpack.c.b16 %v427, %v425
    %v676 = vpack.c.b16 %v430, %v428
    %v677 = vpack.c.b16 %v431, %v429
    %v678 = vpack.c.b16 %v434, %v432
    %v679 = vpack.c.b16 %v435, %v433
    %v680 = vpack.c.b16 %v438, %v436
    %v681 = vpack.c.b16 %v439, %v437
    %v682 = vpack.c.b16 %v442, %v440
    %v683 = vpack.c.b16 %v443, %v441
    %v684 = vpack.c.b16 %v446, %v444
    %v685 = vpack.c.b16 %v447, %v445
    %v686 = vpack.c.b16 %v450, %v448
    %v687 = vpack.c.b16 %v451, %v449
    %v688 = vpack.c.b16 %v454, %v452
    %v689 = vpack.c.b16 %v455, %v453
    %v690 = vpack.c.b16 %v458, %v456
    %v691 = vpack.c.b16 %v459, %v457
    %v692 = vpack.c.b16 %v462, %v460
    %v693 = vpack.c.b16 %v463, %v461
    %v694 = vpack.c.b16 %v466, %v464
    %v695 = vpack.c.b16 %v467, %v465
    %v696 = vpack.c.b16 %v470, %v468
    %v697 = vpack.c.b16 %v471, %v469
    %v698 = vpack.c.b16 %v474, %v472
    %v699 = vpack.c.b16 %v475, %v473
    %v700 = vpack.c.b16 %v478, %v476
    %v701 = vpack.c.b16 %v479, %v477
    %v702 = vpack.c.b16 %v482, %v480
    %v703 = vpack.c.b16 %v483, %v481
    %v704 = vpack.c.b16 %v486, %v484
    %v705 = vpack.c.b16 %v487, %v485
    %v706 = vpack.c.b16 %v490, %v488
    %v707 = vpack.c.b16 %v491, %v489
    %v708 = vpack.c.b16 %v494, %v492
    %v709 = vpack.c.b16 %v495, %v493
    %v710 = vpack.c.b16 %v498, %v496
    %v711 = vpack.c.b16 %v499, %v497
    %v712 = vpack.c.b16 %v502, %v500
    %v713 = vpack.c.b16 %v503, %v501
    %v714 = vpack.c.b16 %v506, %v504
    %v715 = vpack.c.b16 %v507, %v505
    %v716 = vpack.c.b16 %v510, %v508
    %v717 = vpack.c.b16 %v511, %v509
    %v718 = vpack.c.b16 %v514, %v512
    %v719 = vpack.c.b16 %v515, %v513
    %v720 = vpack.c.b16 %v518, %v516
    %v721 = vpack.c.b16 %v519, %v517
    %v722 = vpack.c.b16 %v522, %v520
    %v723 = vpack.c.b16 %v523, %v521
    %v724 = vpack.c.b16 %v526, %v524
    %v725 = vpack.c.b16 %v527, %v525
    %v726 = vpack.c.b16 %v530, %v528
    %v727 = vpack.c.b16 %v531, %v529
    %v728 = vpack.c.b16 %v534, %v532
    %v729 = vpack.c.b16 %v535, %v533
    %v730 = vpack.c.b16 %v538, %v536
    %v731 = vpack.c.b16 %v539, %v537
    %v732 = vpack.c.b16 %v542, %v540
    %v733 = vpack.c.b16 %v543, %v541
    %v734 = vpack.c.b16 %v546, %v544
    %v735 = vpack.c.b16 %v547, %v545
    %v736 = vpack.c.b16 %v550, %v548
    %v737 = vpack.c.b16 %v551, %v549
    %v738 = vpack.c.b16 %v554, %v552
    %v739 = vpack.c.b16 %v555, %v553
    %v740 = vpack.c.b16 %v558, %v556
    %v741 = vpack.c.b16 %v559, %v557
    %v742 = vpack.c.b16 %v562, %v560
    %v743 = vpack.c.b16 %v563, %v561
    %v744 = vpack.c.b16 %v566, %v564
    %v745 = vpack.c.b16 %v567, %v565
    %v746 = vpack.c.b16 %v570, %v568
    %v747 = vpack.c.b16 %v571, %v569
    %v748 = vpack.c.b16 %v574, %v572
    %v749 = vpack.c.b16 %v575, %v573
    %v750 = vpack.c.b16 %v578, %v576
    %v751 = vpack.c.b16 %v579, %v577
    %v752 = vpack.c.b16 %v582, %v580
    %v753 = vpack.c.b16 %v583, %v581
    %v754 = vpack.c.b16 %v586, %v584
    %v755 = vpack.c.b16 %v587, %v585
    %v756 = vpack.c.b16 %v590, %v588
    %v757 = vpack.c.b16 %v591, %v589
    %v758 = vpack.c.b16 %v594, %v592
    %v759 = vpack.c.b16 %v595, %v593
    %v760 = vpack.c.b16 %v598, %v596
    %v761 = vpack.c.b16 %v599, %v597
    %v762 = vpack.c.b16 %v602, %v600
    %v763 = vpack.c.b16 %v603, %v601
    %v764 = vpack.c.b16 %v606, %v604
    %v765 = vpack.c.b16 %v607, %v605
    %v766 = vpack.c.b16 %v610, %v608
    %v767 = vpack.c.b16 %v611, %v609
    %v768 = vpack.c.b16 %v614, %v612
    %v769 = vpack.c.b16 %v615, %v613
    %v770 = vpack.c.b16 %v618, %v616
    %v771 = vpack.c.b16 %v619, %v617
    %v772 = vpack.c.b16 %v622, %v620
    %v773 = vpack.c.b16 %v623, %v621
    %v774 = vpack.c.b16 %v626, %v624
    %v775 = vpack.c.b16 %v627, %v625
    %v776 = vpack.c.b16 %v630, %v628
    %v777 = vpack.c.b16 %v631, %v629
    %v778 = vpack.c.b16 %v634, %v632
    %v779 = vpack.c.b16 %v635, %v633
    %v780 = vpack.c.b16 %v638, %v636
    %v781 = vpack.c.b16 %v639, %v637
    %v782 = vpack.c.b16 %v642, %v640
    %v783 = vpack.c.b16 %v643, %v641
    %v784 = vpack.c.b16 %v646, %v644
    %v785 = vpack.c.b16 %v647, %v645
    %v786 = vpack.c.b16 %v650, %v648
    %v787 = vpack.c.b16 %v651, %v649
    %v788 = vpack.c.b16 %v654, %v652
    %v789 = vpack.c.b16 %v655, %v653
    %v790 = vpack.c.b16 %v658, %v656
    %v791 = vpack.c.b16 %v659, %v657
    %v792 = vpack.c.b16 %v662, %v660
    %v793 = vpack.c.b16 %v663, %v661
    %v794 = vpack.c.b16 %v666, %v664
    %v795 = vpack.c.b16 %v667, %v665
    %924 = vmatprep.subr.bf16.mxu0 %v683
    %925 = vmatpush1.bf16.msra.mxu0 %v682
    %926 = vmatprep.subr.bf16.mxu0 %v681
    %927 = vmatpush1.bf16.msra.mxu0 %v680
    %928 = vmatprep.subr.bf16.mxu0 %v679
    %929 = vmatpush1.bf16.msra.mxu0 %v678
    %930 = vmatprep.subr.bf16.mxu0 %v677
    %931 = vmatpush1.bf16.msra.mxu0 %v676
    %932 = vmatprep.subr.bf16.mxu0 %v675
    %933 = vmatpush1.bf16.msra.mxu0 %v674
    %934 = vmatprep.subr.bf16.mxu0 %v673
    %935 = vmatpush1.bf16.msra.mxu0 %v672
    %936 = vmatprep.subr.bf16.mxu0 %v671
    %937 = vmatpush1.bf16.msra.mxu0 %v670
    %938 = vmatprep.subr.bf16.mxu0 %v669
    %939 = vmatpush1.bf16.msra.mxu0 %v668
    %940 = vmatprep.subr.bf16.mxu0 %v699
    %941 = vmatpush2.bf16.msra.mxu0 %v698
    %942 = vmatprep.subr.bf16.mxu0 %v697
    %943 = vmatpush2.bf16.msra.mxu0 %v696
    %944 = vmatprep.subr.bf16.mxu0 %v695
    %945 = vmatpush2.bf16.msra.mxu0 %v694
    %946 = vmatprep.subr.bf16.mxu0 %v693
    %947 = vmatpush2.bf16.msra.mxu0 %v692
    %948 = vmatprep.subr.bf16.mxu0 %v691
    %949 = vmatpush2.bf16.msra.mxu0 %v690
    %950 = vmatprep.subr.bf16.mxu0 %v689
    %951 = vmatpush2.bf16.msra.mxu0 %v688
    %952 = vmatprep.subr.bf16.mxu0 %v687
    %953 = vmatpush2.bf16.msra.mxu0 %v686
    %954 = vmatprep.subr.bf16.mxu0 %v685
    %955 = vmatpush2.bf16.msra.mxu0 %v684
    %956 = vmatprep.mubr.bf16.mxu0 %v253
    %957 = vmatmul.mubr.bf16.gmra.mxu0 %v252
    %v958 = vpop.f32.mrf.mxu0
    %v959 = vadd.f32 0.0, %v958
    %v960 = vpop.f32.mrf.mxu0
    %v961 = vadd.f32 0.0, %v960
    %v962 = vpop.f32.mrf.mxu0
    %v963 = vadd.f32 0.0, %v962
    %v964 = vpop.f32.mrf.mxu0
    %v965 = vadd.f32 0.0, %v964
    %966 = vmatprep.mubr.bf16.mxu0 %v261
    %967 = vmatmul.mubr.bf16.gmra.mxu0 %v260
    %v968 = vpop.f32.mrf.mxu0
    %v969 = vadd.f32 0.0, %v968
    %v970 = vpop.f32.mrf.mxu0
    %v971 = vadd.f32 0.0, %v970
    %v972 = vpop.f32.mrf.mxu0
    %v973 = vadd.f32 0.0, %v972
    %v974 = vpop.f32.mrf.mxu0
    %v975 = vadd.f32 0.0, %v974
    %976 = vdwg.mxu0
    %977 = vmatprep.subr.bf16.mxu0 %v715
    %978 = vmatpush1.bf16.msra.mxu0 %v714
    %979 = vmatprep.subr.bf16.mxu0 %v713
    %980 = vmatpush1.bf16.msra.mxu0 %v712
    %981 = vmatprep.subr.bf16.mxu0 %v711
    %982 = vmatpush1.bf16.msra.mxu0 %v710
    %983 = vmatprep.subr.bf16.mxu0 %v709
    %984 = vmatpush1.bf16.msra.mxu0 %v708
    %985 = vmatprep.subr.bf16.mxu0 %v707
    %986 = vmatpush1.bf16.msra.mxu0 %v706
    %987 = vmatprep.subr.bf16.mxu0 %v705
    %988 = vmatpush1.bf16.msra.mxu0 %v704
    %989 = vmatprep.subr.bf16.mxu0 %v703
    %990 = vmatpush1.bf16.msra.mxu0 %v702
    %991 = vmatprep.subr.bf16.mxu0 %v701
    %992 = vmatpush1.bf16.msra.mxu0 %v700
    %993 = vmatprep.subr.bf16.mxu0 %v731
    %994 = vmatpush2.bf16.msra.mxu0 %v730
    %995 = vmatprep.subr.bf16.mxu0 %v729
    %996 = vmatpush2.bf16.msra.mxu0 %v728
    %997 = vmatprep.subr.bf16.mxu0 %v727
    %998 = vmatpush2.bf16.msra.mxu0 %v726
    %999 = vmatprep.subr.bf16.mxu0 %v725
    %1000 = vmatpush2.bf16.msra.mxu0 %v724
    %1001 = vmatprep.subr.bf16.mxu0 %v723
    %1002 = vmatpush2.bf16.msra.mxu0 %v722
    %1003 = vmatprep.subr.bf16.mxu0 %v721
    %1004 = vmatpush2.bf16.msra.mxu0 %v720
    %1005 = vmatprep.subr.bf16.mxu0 %v719
    %1006 = vmatpush2.bf16.msra.mxu0 %v718
    %1007 = vmatprep.subr.bf16.mxu0 %v717
    %1008 = vmatpush2.bf16.msra.mxu0 %v716
    %1009 = vmatprep.mubr.bf16.mxu0 %v255
    %1010 = vmatmul.mubr.bf16.gmra.mxu0 %v254
    %v1011 = vpop.f32.mrf.mxu0
    %v1012 = vadd.f32 %v959, %v1011
    %v1013 = vpop.f32.mrf.mxu0
    %v1014 = vadd.f32 %v961, %v1013
    %v1015 = vpop.f32.mrf.mxu0
    %v1016 = vadd.f32 %v963, %v1015
    %v1017 = vpop.f32.mrf.mxu0
    %v1018 = vadd.f32 %v965, %v1017
    %1019 = vmatprep.mubr.bf16.mxu0 %v263
    %1020 = vmatmul.mubr.bf16.gmra.mxu0 %v262
    %v1021 = vpop.f32.mrf.mxu0
    %v1022 = vadd.f32 %v969, %v1021
    %v1023 = vpop.f32.mrf.mxu0
    %v1024 = vadd.f32 %v971, %v1023
    %v1025 = vpop.f32.mrf.mxu0
    %v1026 = vadd.f32 %v973, %v1025
    %v1027 = vpop.f32.mrf.mxu0
    %v1028 = vadd.f32 %v975, %v1027
    %1029 = vdwg.mxu0
    %1030 = vmatprep.subr.bf16.mxu0 %v747
    %1031 = vmatpush1.bf16.msra.mxu0 %v746
    %1032 = vmatprep.subr.bf16.mxu0 %v745
    %1033 = vmatpush1.bf16.msra.mxu0 %v744
    %1034 = vmatprep.subr.bf16.mxu0 %v743
    %1035 = vmatpush1.bf16.msra.mxu0 %v742
    %1036 = vmatprep.subr.bf16.mxu0 %v741
    %1037 = vmatpush1.bf16.msra.mxu0 %v740
    %1038 = vmatprep.subr.bf16.mxu0 %v739
    %1039 = vmatpush1.bf16.msra.mxu0 %v738
    %1040 = vmatprep.subr.bf16.mxu0 %v737
    %1041 = vmatpush1.bf16.msra.mxu0 %v736
    %1042 = vmatprep.subr.bf16.mxu0 %v735
    %1043 = vmatpush1.bf16.msra.mxu0 %v734
    %1044 = vmatprep.subr.bf16.mxu0 %v733
    %1045 = vmatpush1.bf16.msra.mxu0 %v732
    %1046 = vmatprep.subr.bf16.mxu0 %v763
    %1047 = vmatpush2.bf16.msra.mxu0 %v762
    %1048 = vmatprep.subr.bf16.mxu0 %v761
    %1049 = vmatpush2.bf16.msra.mxu0 %v760
    %1050 = vmatprep.subr.bf16.mxu0 %v759
    %1051 = vmatpush2.bf16.msra.mxu0 %v758
    %1052 = vmatprep.subr.bf16.mxu0 %v757
    %1053 = vmatpush2.bf16.msra.mxu0 %v756
    %1054 = vmatprep.subr.bf16.mxu0 %v755
    %1055 = vmatpush2.bf16.msra.mxu0 %v754
    %1056 = vmatprep.subr.bf16.mxu0 %v753
    %1057 = vmatpush2.bf16.msra.mxu0 %v752
    %1058 = vmatprep.subr.bf16.mxu0 %v751
    %1059 = vmatpush2.bf16.msra.mxu0 %v750
    %1060 = vmatprep.subr.bf16.mxu0 %v749
    %1061 = vmatpush2.bf16.msra.mxu0 %v748
    %1062 = vmatprep.mubr.bf16.mxu0 %v257
    %1063 = vmatmul.mubr.bf16.gmra.mxu0 %v256
    %v1064 = vpop.f32.mrf.mxu0
    %v1065 = vadd.f32 %v1012, %v1064
    %v1066 = vpop.f32.mrf.mxu0
    %v1067 = vadd.f32 %v1014, %v1066
    %v1068 = vpop.f32.mrf.mxu0
    %v1069 = vadd.f32 %v1016, %v1068
    %v1070 = vpop.f32.mrf.mxu0
    %v1071 = vadd.f32 %v1018, %v1070
    %1072 = vmatprep.mubr.bf16.mxu0 %v265
    %1073 = vmatmul.mubr.bf16.gmra.mxu0 %v264
    %v1074 = vpop.f32.mrf.mxu0
    %v1075 = vadd.f32 %v1022, %v1074
    %v1076 = vpop.f32.mrf.mxu0
    %v1077 = vadd.f32 %v1024, %v1076
    %v1078 = vpop.f32.mrf.mxu0
    %v1079 = vadd.f32 %v1026, %v1078
    %v1080 = vpop.f32.mrf.mxu0
    %v1081 = vadd.f32 %v1028, %v1080
    %1082 = vdwg.mxu0
    %1083 = vmatprep.subr.bf16.mxu0 %v779
    %1084 = vmatpush1.bf16.msra.mxu0 %v778
    %1085 = vmatprep.subr.bf16.mxu0 %v777
    %1086 = vmatpush1.bf16.msra.mxu0 %v776
    %1087 = vmatprep.subr.bf16.mxu0 %v775
    %1088 = vmatpush1.bf16.msra.mxu0 %v774
    %1089 = vmatprep.subr.bf16.mxu0 %v773
    %1090 = vmatpush1.bf16.msra.mxu0 %v772
    %1091 = vmatprep.subr.bf16.mxu0 %v771
    %1092 = vmatpush1.bf16.msra.mxu0 %v770
    %1093 = vmatprep.subr.bf16.mxu0 %v769
    %1094 = vmatpush1.bf16.msra.mxu0 %v768
    %1095 = vmatprep.subr.bf16.mxu0 %v767
    %1096 = vmatpush1.bf16.msra.mxu0 %v766
    %1097 = vmatprep.subr.bf16.mxu0 %v765
    %1098 = vmatpush1.bf16.msra.mxu0 %v764
    %1099 = vmatprep.subr.bf16.mxu0 %v795
    %1100 = vmatpush2.bf16.msra.mxu0 %v794
    %1101 = vmatprep.subr.bf16.mxu0 %v793
    %1102 = vmatpush2.bf16.msra.mxu0 %v792
    %1103 = vmatprep.subr.bf16.mxu0 %v791
    %1104 = vmatpush2.bf16.msra.mxu0 %v790
    %1105 = vmatprep.subr.bf16.mxu0 %v789
    %1106 = vmatpush2.bf16.msra.mxu0 %v788
    %1107 = vmatprep.subr.bf16.mxu0 %v787
    %1108 = vmatpush2.bf16.msra.mxu0 %v786
    %1109 = vmatprep.subr.bf16.mxu0 %v785
    %1110 = vmatpush2.bf16.msra.mxu0 %v784
    %1111 = vmatprep.subr.bf16.mxu0 %v783
    %1112 = vmatpush2.bf16.msra.mxu0 %v782
    %1113 = vmatprep.subr.bf16.mxu0 %v781
    %1114 = vmatpush2.bf16.msra.mxu0 %v780
    %1115 = vmatprep.mubr.bf16.mxu0 %v259
    %1116 = vmatmul.mubr.bf16.gmra.mxu0 %v258
    %v1117 = vpop.f32.mrf.mxu0
    %v1118 = vadd.f32 %v1065, %v1117
    %v1119 = vpop.f32.mrf.mxu0
    %v1120 = vadd.f32 %v1067, %v1119
    %v1121 = vpop.f32.mrf.mxu0
    %v1122 = vadd.f32 %v1069, %v1121
    %v1123 = vpop.f32.mrf.mxu0
    %v1124 = vadd.f32 %v1071, %v1123
    %1125 = vmatprep.mubr.bf16.mxu0 %v267
    %1126 = vmatmul.mubr.bf16.gmra.mxu0 %v266
    %v1127 = vpop.f32.mrf.mxu0
    %v1128 = vadd.f32 %v1075, %v1127
    %v1129 = vpop.f32.mrf.mxu0
    %v1130 = vadd.f32 %v1077, %v1129
    %v1131 = vpop.f32.mrf.mxu0
    %v1132 = vadd.f32 %v1079, %v1131
    %v1133 = vpop.f32.mrf.mxu0
    %v1134 = vadd.f32 %v1081, %v1133
    %1135 = vdwg.mxu0
    %v1136 = vld [vmem:[%s3] sm:$0x3]
    %v1138 = vlaneseq
    %v1139 = vshrl.u32 %v1138, 7
    %v1140 = vsub.s32 0, %v1139
    %v1141 = vrot.slane %v1136, %v1140
    %v1142 = vlaneseq
    %v1143 = vshrl.u32 %v1142, 7
    %v1144 = vsub.s32 1, %v1143
    %v1145 = vrot.slane %v1136, %v1144
    %v1148 = vmul.f32 %v1118, %v1141
    %v1149 = vmul.f32 %v1120, %v1145
    %v1150 = vmul.f32 %v1122, %v1141
    %v1151 = vmul.f32 %v1124, %v1145
    %v1152 = vmul.f32 %v1128, %v1141
    %v1153 = vmul.f32 %v1130, %v1145
    %v1154 = vmul.f32 %v1132, %v1141
    %v1155 = vmul.f32 %v1134, %v1145
    %v1156 = vld [vmem:[%s4] sm:$0x3]
    %v1158 = vlaneseq
    %v1159 = vshrl.u32 %v1158, 7
    %v1160 = vsub.s32 0, %v1159
    %v1161 = vrot.slane %v1156, %v1160
    %v1162 = vlaneseq
    %v1163 = vshrl.u32 %v1162, 7
    %v1164 = vsub.s32 1, %v1163
    %v1165 = vrot.slane %v1156, %v1164
    %v1168 = vadd.f32 %v1148, %v1161
    %v1169 = vadd.f32 %v1149, %v1165
    %v1170 = vadd.f32 %v1150, %v1161
    %v1171 = vadd.f32 %v1151, %v1165
    %v1172 = vadd.f32 %v1152, %v1161
    %v1173 = vadd.f32 %v1153, %v1165
    %v1174 = vadd.f32 %v1154, %v1161
    %v1175 = vadd.f32 %v1155, %v1165
    %vm1176 = vcmp.gt.f32.partialorder %v1168, 0.0
    %vm1177 = vcmp.gt.f32.partialorder %v1169, 0.0
    %vm1178 = vcmp.gt.f32.partialorder %v1170, 0.0
    %vm1179 = vcmp.gt.f32.partialorder %v1171, 0.0
    %vm1180 = vcmp.gt.f32.partialorder %v1172, 0.0
    %vm1181 = vcmp.gt.f32.partialorder %v1173, 0.0
    %vm1182 = vcmp.gt.f32.partialorder %v1174, 0.0
    %vm1183 = vcmp.gt.f32.partialorder %v1175, 0.0
    %v1184 = vmul.f32 %v1168, 0.1
    %v1185 = vmul.f32 %v1169, 0.1
    %v1186 = vmul.f32 %v1170, 0.1
    %v1187 = vmul.f32 %v1171, 0.1
    %v1188 = vmul.f32 %v1172, 0.1
    %v1189 = vmul.f32 %v1173, 0.1
    %v1190 = vmul.f32 %v1174, 0.1
    %v1191 = vmul.f32 %v1175, 0.1
    %v1192 = vsel %vm1176, %v1168, %v1184
    %v1193 = vsel %vm1177, %v1169, %v1185
    %v1194 = vsel %vm1178, %v1170, %v1186
    %v1195 = vsel %vm1179, %v1171, %v1187
    %v1196 = vsel %vm1180, %v1172, %v1188
    %v1197 = vsel %vm1181, %v1173, %v1189
    %v1198 = vsel %vm1182, %v1174, %v1190
    %v1199 = vsel %vm1183, %v1175, %v1191
    %1200 = vst [vmem:[%s12] sm:$0xff] %v1192
    %1201 = vst [vmem:[%s12 + $0x8] sm:$0xff] %v1193
    %1202 = vst [vmem:[%s12 + $0x10] sm:$0xff] %v1194
    %1203 = vst [vmem:[%s12 + $0x18] sm:$0xff] %v1195
    %1204 = vst [vmem:[%s12 + $0x20] sm:$0xff] %v1196
    %1205 = vst [vmem:[%s12 + $0x28] sm:$0xff] %v1197
    %1206 = vst [vmem:[%s12 + $0x30] sm:$0xff] %v1198
    %1207 = vst [vmem:[%s12 + $0x38] sm:$0xff] %v1199
    %v1208 = vld [vmem:[%s1] sm:$0xff]
    %v1209 = vld [vmem:[%s1 + $0x8] sm:$0xff]
    %v1210 = vld [vmem:[%s1 + $0x10] sm:$0xff]
    %v1211 = vld [vmem:[%s1 + $0x18] sm:$0xff]
    %v1212 = vld [vmem:[%s1 + $0x20] sm:$0xff]
    %v1213 = vld [vmem:[%s1 + $0x28] sm:$0xff]
    %v1214 = vld [vmem:[%s1 + $0x30] sm:$0xff]
    %v1215 = vld [vmem:[%s1 + $0x38] sm:$0xff]
    %v1216 = vld [vmem:[%s1 + $0x40] sm:$0xff]
    %v1217 = vld [vmem:[%s1 + $0x48] sm:$0xff]
    %v1218 = vld [vmem:[%s1 + $0x50] sm:$0xff]
    %v1219 = vld [vmem:[%s1 + $0x58] sm:$0xff]
    %v1220 = vld [vmem:[%s1 + $0x60] sm:$0xff]
    %v1221 = vld [vmem:[%s1 + $0x68] sm:$0xff]
    %v1222 = vld [vmem:[%s1 + $0x70] sm:$0xff]
    %v1223 = vld [vmem:[%s1 + $0x78] sm:$0xff]
    %v1224 = vld [vmem:[%s1 + $0x80] sm:$0xff]
    %v1225 = vld [vmem:[%s1 + $0x88] sm:$0xff]
    %v1226 = vld [vmem:[%s1 + $0x90] sm:$0xff]
    %v1227 = vld [vmem:[%s1 + $0x98] sm:$0xff]
    %v1228 = vld [vmem:[%s1 + $0xa0] sm:$0xff]
    %v1229 = vld [vmem:[%s1 + $0xa8] sm:$0xff]
    %v1230 = vld [vmem:[%s1 + $0xb0] sm:$0xff]
    %v1231 = vld [vmem:[%s1 + $0xb8] sm:$0xff]
    %v1232 = vld [vmem:[%s1 + $0xc0] sm:$0xff]
    %v1233 = vld [vmem:[%s1 + $0xc8] sm:$0xff]
    %v1234 = vld [vmem:[%s1 + $0xd0] sm:$0xff]
    %v1235 = vld [vmem:[%s1 + $0xd8] sm:$0xff]
    %v1236 = vld [vmem:[%s1 + $0xe0] sm:$0xff]
    %v1237 = vld [vmem:[%s1 + $0xe8] sm:$0xff]
    %v1238 = vld [vmem:[%s1 + $0xf0] sm:$0xff]
    %v1239 = vld [vmem:[%s1 + $0xf8] sm:$0xff]
    %v1240 = vld [vmem:[#allocation2] sm:$0xff]
    %v1241 = vld [vmem:[#allocation2 + $0x8] sm:$0xff]
    %v1242 = vld [vmem:[#allocation2 + $0x10] sm:$0xff]
    %v1243 = vld [vmem:[#allocation2 + $0x18] sm:$0xff]
    %v1244 = vld [vmem:[#allocation2 + $0x20] sm:$0xff]
    %v1245 = vld [vmem:[#allocation2 + $0x28] sm:$0xff]
    %v1246 = vld [vmem:[#allocation2 + $0x30] sm:$0xff]
    %v1247 = vld [vmem:[#allocation2 + $0x38] sm:$0xff]
    %v1248 = vld [vmem:[#allocation2 + $0x40] sm:$0xff]
    %v1249 = vld [vmem:[#allocation2 + $0x48] sm:$0xff]
    %v1250 = vld [vmem:[#allocation2 + $0x50] sm:$0xff]
    %v1251 = vld [vmem:[#allocation2 + $0x58] sm:$0xff]
    %v1252 = vld [vmem:[#allocation2 + $0x60] sm:$0xff]
    %v1253 = vld [vmem:[#allocation2 + $0x68] sm:$0xff]
    %v1254 = vld [vmem:[#allocation2 + $0x70] sm:$0xff]
    %v1255 = vld [vmem:[#allocation2 + $0x78] sm:$0xff]
    %v1256 = vld [vmem:[#allocation2 + $0x80] sm:$0xff]
    %v1257 = vld [vmem:[#allocation2 + $0x88] sm:$0xff]
    %v1258 = vld [vmem:[#allocation2 + $0x90] sm:$0xff]
    %v1259 = vld [vmem:[#allocation2 + $0x98] sm:$0xff]
    %v1260 = vld [vmem:[#allocation2 + $0xa0] sm:$0xff]
    %v1261 = vld [vmem:[#allocation2 + $0xa8] sm:$0xff]
    %v1262 = vld [vmem:[#allocation2 + $0xb0] sm:$0xff]
    %v1263 = vld [vmem:[#allocation2 + $0xb8] sm:$0xff]
    %v1264 = vld [vmem:[#allocation2 + $0xc0] sm:$0xff]
    %v1265 = vld [vmem:[#allocation2 + $0xc8] sm:$0xff]
    %v1266 = vld [vmem:[#allocation2 + $0xd0] sm:$0xff]
    %v1267 = vld [vmem:[#allocation2 + $0xd8] sm:$0xff]
    %v1268 = vld [vmem:[#allocation2 + $0xe0] sm:$0xff]
    %v1269 = vld [vmem:[#allocation2 + $0xe8] sm:$0xff]
    %v1270 = vld [vmem:[#allocation2 + $0xf0] sm:$0xff]
    %v1271 = vld [vmem:[#allocation2 + $0xf8] sm:$0xff]
    %v1272 = vld [vmem:[#allocation2 + $0x100] sm:$0xff]
    %v1273 = vld [vmem:[#allocation2 + $0x108] sm:$0xff]
    %v1274 = vld [vmem:[#allocation2 + $0x110] sm:$0xff]
    %v1275 = vld [vmem:[#allocation2 + $0x118] sm:$0xff]
    %v1276 = vld [vmem:[#allocation2 + $0x120] sm:$0xff]
    %v1277 = vld [vmem:[#allocation2 + $0x128] sm:$0xff]
    %v1278 = vld [vmem:[#allocation2 + $0x130] sm:$0xff]
    %v1279 = vld [vmem:[#allocation2 + $0x138] sm:$0xff]
    %v1280 = vld [vmem:[#allocation2 + $0x140] sm:$0xff]
    %v1281 = vld [vmem:[#allocation2 + $0x148] sm:$0xff]
    %v1282 = vld [vmem:[#allocation2 + $0x150] sm:$0xff]
    %v1283 = vld [vmem:[#allocation2 + $0x158] sm:$0xff]
    %v1284 = vld [vmem:[#allocation2 + $0x160] sm:$0xff]
    %v1285 = vld [vmem:[#allocation2 + $0x168] sm:$0xff]
    %v1286 = vld [vmem:[#allocation2 + $0x170] sm:$0xff]
    %v1287 = vld [vmem:[#allocation2 + $0x178] sm:$0xff]
    %v1288 = vld [vmem:[#allocation2 + $0x180] sm:$0xff]
    %v1289 = vld [vmem:[#allocation2 + $0x188] sm:$0xff]
    %v1290 = vld [vmem:[#allocation2 + $0x190] sm:$0xff]
    %v1291 = vld [vmem:[#allocation2 + $0x198] sm:$0xff]
    %v1292 = vld [vmem:[#allocation2 + $0x1a0] sm:$0xff]
    %v1293 = vld [vmem:[#allocation2 + $0x1a8] sm:$0xff]
    %v1294 = vld [vmem:[#allocation2 + $0x1b0] sm:$0xff]
    %v1295 = vld [vmem:[#allocation2 + $0x1b8] sm:$0xff]
    %v1296 = vld [vmem:[#allocation2 + $0x1c0] sm:$0xff]
    %v1297 = vld [vmem:[#allocation2 + $0x1c8] sm:$0xff]
    %v1298 = vld [vmem:[#allocation2 + $0x1d0] sm:$0xff]
    %v1299 = vld [vmem:[#allocation2 + $0x1d8] sm:$0xff]
    %v1300 = vld [vmem:[#allocation2 + $0x1e0] sm:$0xff]
    %v1301 = vld [vmem:[#allocation2 + $0x1e8] sm:$0xff]
    %v1302 = vld [vmem:[#allocation2 + $0x1f0] sm:$0xff]
    %v1303 = vld [vmem:[#allocation2 + $0x1f8] sm:$0xff]
    %v1336 = vunpack.c.l.b16 %v1208
    %v1337 = vunpack.c.h.b16 %v1208
    %v1338 = vunpack.c.l.b16 %v1209
    %v1339 = vunpack.c.h.b16 %v1209
    %v1340 = vunpack.c.l.b16 %v1210
    %v1341 = vunpack.c.h.b16 %v1210
    %v1342 = vunpack.c.l.b16 %v1211
    %v1343 = vunpack.c.h.b16 %v1211
    %v1344 = vunpack.c.l.b16 %v1212
    %v1345 = vunpack.c.h.b16 %v1212
    %v1346 = vunpack.c.l.b16 %v1213
    %v1347 = vunpack.c.h.b16 %v1213
    %v1348 = vunpack.c.l.b16 %v1214
    %v1349 = vunpack.c.h.b16 %v1214
    %v1350 = vunpack.c.l.b16 %v1215
    %v1351 = vunpack.c.h.b16 %v1215
    %v1352 = vunpack.c.l.b16 %v1216
    %v1353 = vunpack.c.h.b16 %v1216
    %v1354 = vunpack.c.l.b16 %v1217
    %v1355 = vunpack.c.h.b16 %v1217
    %v1356 = vunpack.c.l.b16 %v1218
    %v1357 = vunpack.c.h.b16 %v1218
    %v1358 = vunpack.c.l.b16 %v1219
    %v1359 = vunpack.c.h.b16 %v1219
    %v1360 = vunpack.c.l.b16 %v1220
    %v1361 = vunpack.c.h.b16 %v1220
    %v1362 = vunpack.c.l.b16 %v1221
    %v1363 = vunpack.c.h.b16 %v1221
    %v1364 = vunpack.c.l.b16 %v1222
    %v1365 = vunpack.c.h.b16 %v1222
    %v1366 = vunpack.c.l.b16 %v1223
    %v1367 = vunpack.c.h.b16 %v1223
    %v1368 = vunpack.c.l.b16 %v1224
    %v1369 = vunpack.c.h.b16 %v1224
    %v1370 = vunpack.c.l.b16 %v1225
    %v1371 = vunpack.c.h.b16 %v1225
    %v1372 = vunpack.c.l.b16 %v1226
    %v1373 = vunpack.c.h.b16 %v1226
    %v1374 = vunpack.c.l.b16 %v1227
    %v1375 = vunpack.c.h.b16 %v1227
    %v1376 = vunpack.c.l.b16 %v1228
    %v1377 = vunpack.c.h.b16 %v1228
    %v1378 = vunpack.c.l.b16 %v1229
    %v1379 = vunpack.c.h.b16 %v1229
    %v1380 = vunpack.c.l.b16 %v1230
    %v1381 = vunpack.c.h.b16 %v1230
    %v1382 = vunpack.c.l.b16 %v1231
    %v1383 = vunpack.c.h.b16 %v1231
    %v1384 = vunpack.c.l.b16 %v1232
    %v1385 = vunpack.c.h.b16 %v1232
    %v1386 = vunpack.c.l.b16 %v1233
    %v1387 = vunpack.c.h.b16 %v1233
    %v1388 = vunpack.c.l.b16 %v1234
    %v1389 = vunpack.c.h.b16 %v1234
    %v1390 = vunpack.c.l.b16 %v1235
    %v1391 = vunpack.c.h.b16 %v1235
    %v1392 = vunpack.c.l.b16 %v1236
    %v1393 = vunpack.c.h.b16 %v1236
    %v1394 = vunpack.c.l.b16 %v1237
    %v1395 = vunpack.c.h.b16 %v1237
    %v1396 = vunpack.c.l.b16 %v1238
    %v1397 = vunpack.c.h.b16 %v1238
    %v1398 = vunpack.c.l.b16 %v1239
    %v1399 = vunpack.c.h.b16 %v1239
    %v1400 = vpack.c.b16 %v1340, %v1336
    %v1401 = vpack.c.b16 %v1341, %v1337
    %v1402 = vpack.c.b16 %v1342, %v1338
    %v1403 = vpack.c.b16 %v1343, %v1339
    %v1404 = vpack.c.b16 %v1348, %v1344
    %v1405 = vpack.c.b16 %v1349, %v1345
    %v1406 = vpack.c.b16 %v1350, %v1346
    %v1407 = vpack.c.b16 %v1351, %v1347
    %v1408 = vpack.c.b16 %v1356, %v1352
    %v1409 = vpack.c.b16 %v1357, %v1353
    %v1410 = vpack.c.b16 %v1358, %v1354
    %v1411 = vpack.c.b16 %v1359, %v1355
    %v1412 = vpack.c.b16 %v1364, %v1360
    %v1413 = vpack.c.b16 %v1365, %v1361
    %v1414 = vpack.c.b16 %v1366, %v1362
    %v1415 = vpack.c.b16 %v1367, %v1363
    %v1416 = vpack.c.b16 %v1372, %v1368
    %v1417 = vpack.c.b16 %v1373, %v1369
    %v1418 = vpack.c.b16 %v1374, %v1370
    %v1419 = vpack.c.b16 %v1375, %v1371
    %v1420 = vpack.c.b16 %v1380, %v1376
    %v1421 = vpack.c.b16 %v1381, %v1377
    %v1422 = vpack.c.b16 %v1382, %v1378
    %v1423 = vpack.c.b16 %v1383, %v1379
    %v1424 = vpack.c.b16 %v1388, %v1384
    %v1425 = vpack.c.b16 %v1389, %v1385
    %v1426 = vpack.c.b16 %v1390, %v1386
    %v1427 = vpack.c.b16 %v1391, %v1387
    %v1428 = vpack.c.b16 %v1396, %v1392
    %v1429 = vpack.c.b16 %v1397, %v1393
    %v1430 = vpack.c.b16 %v1398, %v1394
    %v1431 = vpack.c.b16 %v1399, %v1395
    %v1528 = vunpack.c.l.b16 %v1240
    %v1529 = vunpack.c.h.b16 %v1240
    %v1530 = vunpack.c.l.b16 %v1241
    %v1531 = vunpack.c.h.b16 %v1241
    %v1532 = vunpack.c.l.b16 %v1242
    %v1533 = vunpack.c.h.b16 %v1242
    %v1534 = vunpack.c.l.b16 %v1243
    %v1535 = vunpack.c.h.b16 %v1243
    %v1536 = vunpack.c.l.b16 %v1244
    %v1537 = vunpack.c.h.b16 %v1244
    %v1538 = vunpack.c.l.b16 %v1245
    %v1539 = vunpack.c.h.b16 %v1245
    %v1540 = vunpack.c.l.b16 %v1246
    %v1541 = vunpack.c.h.b16 %v1246
    %v1542 = vunpack.c.l.b16 %v1247
    %v1543 = vunpack.c.h.b16 %v1247
    %v1544 = vunpack.c.l.b16 %v1248
    %v1545 = vunpack.c.h.b16 %v1248
    %v1546 = vunpack.c.l.b16 %v1249
    %v1547 = vunpack.c.h.b16 %v1249
    %v1548 = vunpack.c.l.b16 %v1250
    %v1549 = vunpack.c.h.b16 %v1250
    %v1550 = vunpack.c.l.b16 %v1251
    %v1551 = vunpack.c.h.b16 %v1251
    %v1552 = vunpack.c.l.b16 %v1252
    %v1553 = vunpack.c.h.b16 %v1252
    %v1554 = vunpack.c.l.b16 %v1253
    %v1555 = vunpack.c.h.b16 %v1253
    %v1556 = vunpack.c.l.b16 %v1254
    %v1557 = vunpack.c.h.b16 %v1254
    %v1558 = vunpack.c.l.b16 %v1255
    %v1559 = vunpack.c.h.b16 %v1255
    %v1560 = vunpack.c.l.b16 %v1256
    %v1561 = vunpack.c.h.b16 %v1256
    %v1562 = vunpack.c.l.b16 %v1257
    %v1563 = vunpack.c.h.b16 %v1257
    %v1564 = vunpack.c.l.b16 %v1258
    %v1565 = vunpack.c.h.b16 %v1258
    %v1566 = vunpack.c.l.b16 %v1259
    %v1567 = vunpack.c.h.b16 %v1259
    %v1568 = vunpack.c.l.b16 %v1260
    %v1569 = vunpack.c.h.b16 %v1260
    %v1570 = vunpack.c.l.b16 %v1261
    %v1571 = vunpack.c.h.b16 %v1261
    %v1572 = vunpack.c.l.b16 %v1262
    %v1573 = vunpack.c.h.b16 %v1262
    %v1574 = vunpack.c.l.b16 %v1263
    %v1575 = vunpack.c.h.b16 %v1263
    %v1576 = vunpack.c.l.b16 %v1264
    %v1577 = vunpack.c.h.b16 %v1264
    %v1578 = vunpack.c.l.b16 %v1265
    %v1579 = vunpack.c.h.b16 %v1265
    %v1580 = vunpack.c.l.b16 %v1266
    %v1581 = vunpack.c.h.b16 %v1266
    %v1582 = vunpack.c.l.b16 %v1267
    %v1583 = vunpack.c.h.b16 %v1267
    %v1584 = vunpack.c.l.b16 %v1268
    %v1585 = vunpack.c.h.b16 %v1268
    %v1586 = vunpack.c.l.b16 %v1269
    %v1587 = vunpack.c.h.b16 %v1269
    %v1588 = vunpack.c.l.b16 %v1270
    %v1589 = vunpack.c.h.b16 %v1270
    %v1590 = vunpack.c.l.b16 %v1271
    %v1591 = vunpack.c.h.b16 %v1271
    %v1592 = vunpack.c.l.b16 %v1272
    %v1593 = vunpack.c.h.b16 %v1272
    %v1594 = vunpack.c.l.b16 %v1273
    %v1595 = vunpack.c.h.b16 %v1273
    %v1596 = vunpack.c.l.b16 %v1274
    %v1597 = vunpack.c.h.b16 %v1274
    %v1598 = vunpack.c.l.b16 %v1275
    %v1599 = vunpack.c.h.b16 %v1275
    %v1600 = vunpack.c.l.b16 %v1276
    %v1601 = vunpack.c.h.b16 %v1276
    %v1602 = vunpack.c.l.b16 %v1277
    %v1603 = vunpack.c.h.b16 %v1277
    %v1604 = vunpack.c.l.b16 %v1278
    %v1605 = vunpack.c.h.b16 %v1278
    %v1606 = vunpack.c.l.b16 %v1279
    %v1607 = vunpack.c.h.b16 %v1279
    %v1608 = vunpack.c.l.b16 %v1280
    %v1609 = vunpack.c.h.b16 %v1280
    %v1610 = vunpack.c.l.b16 %v1281
    %v1611 = vunpack.c.h.b16 %v1281
    %v1612 = vunpack.c.l.b16 %v1282
    %v1613 = vunpack.c.h.b16 %v1282
    %v1614 = vunpack.c.l.b16 %v1283
    %v1615 = vunpack.c.h.b16 %v1283
    %v1616 = vunpack.c.l.b16 %v1284
    %v1617 = vunpack.c.h.b16 %v1284
    %v1618 = vunpack.c.l.b16 %v1285
    %v1619 = vunpack.c.h.b16 %v1285
    %v1620 = vunpack.c.l.b16 %v1286
    %v1621 = vunpack.c.h.b16 %v1286
    %v1622 = vunpack.c.l.b16 %v1287
    %v1623 = vunpack.c.h.b16 %v1287
    %v1624 = vunpack.c.l.b16 %v1288
    %v1625 = vunpack.c.h.b16 %v1288
    %v1626 = vunpack.c.l.b16 %v1289
    %v1627 = vunpack.c.h.b16 %v1289
    %v1628 = vunpack.c.l.b16 %v1290
    %v1629 = vunpack.c.h.b16 %v1290
    %v1630 = vunpack.c.l.b16 %v1291
    %v1631 = vunpack.c.h.b16 %v1291
    %v1632 = vunpack.c.l.b16 %v1292
    %v1633 = vunpack.c.h.b16 %v1292
    %v1634 = vunpack.c.l.b16 %v1293
    %v1635 = vunpack.c.h.b16 %v1293
    %v1636 = vunpack.c.l.b16 %v1294
    %v1637 = vunpack.c.h.b16 %v1294
    %v1638 = vunpack.c.l.b16 %v1295
    %v1639 = vunpack.c.h.b16 %v1295
    %v1640 = vunpack.c.l.b16 %v1296
    %v1641 = vunpack.c.h.b16 %v1296
    %v1642 = vunpack.c.l.b16 %v1297
    %v1643 = vunpack.c.h.b16 %v1297
    %v1644 = vunpack.c.l.b16 %v1298
    %v1645 = vunpack.c.h.b16 %v1298
    %v1646 = vunpack.c.l.b16 %v1299
    %v1647 = vunpack.c.h.b16 %v1299
    %v1648 = vunpack.c.l.b16 %v1300
    %v1649 = vunpack.c.h.b16 %v1300
    %v1650 = vunpack.c.l.b16 %v1301
    %v1651 = vunpack.c.h.b16 %v1301
    %v1652 = vunpack.c.l.b16 %v1302
    %v1653 = vunpack.c.h.b16 %v1302
    %v1654 = vunpack.c.l.b16 %v1303
    %v1655 = vunpack.c.h.b16 %v1303
    %v1656 = vpack.c.b16 %v1530, %v1528
    %v1657 = vpack.c.b16 %v1531, %v1529
    %v1658 = vpack.c.b16 %v1534, %v1532
    %v1659 = vpack.c.b16 %v1535, %v1533
    %v1660 = vpack.c.b16 %v1538, %v1536
    %v1661 = vpack.c.b16 %v1539, %v1537
    %v1662 = vpack.c.b16 %v1542, %v1540
    %v1663 = vpack.c.b16 %v1543, %v1541
    %v1664 = vpack.c.b16 %v1546, %v1544
    %v1665 = vpack.c.b16 %v1547, %v1545
    %v1666 = vpack.c.b16 %v1550, %v1548
    %v1667 = vpack.c.b16 %v1551, %v1549
    %v1668 = vpack.c.b16 %v1554, %v1552
    %v1669 = vpack.c.b16 %v1555, %v1553
    %v1670 = vpack.c.b16 %v1558, %v1556
    %v1671 = vpack.c.b16 %v1559, %v1557
    %v1672 = vpack.c.b16 %v1562, %v1560
    %v1673 = vpack.c.b16 %v1563, %v1561
    %v1674 = vpack.c.b16 %v1566, %v1564
    %v1675 = vpack.c.b16 %v1567, %v1565
    %v1676 = vpack.c.b16 %v1570, %v1568
    %v1677 = vpack.c.b16 %v1571, %v1569
    %v1678 = vpack.c.b16 %v1574, %v1572
    %v1679 = vpack.c.b16 %v1575, %v1573
    %v1680 = vpack.c.b16 %v1578, %v1576
    %v1681 = vpack.c.b16 %v1579, %v1577
    %v1682 = vpack.c.b16 %v1582, %v1580
    %v1683 = vpack.c.b16 %v1583, %v1581
    %v1684 = vpack.c.b16 %v1586, %v1584
    %v1685 = vpack.c.b16 %v1587, %v1585
    %v1686 = vpack.c.b16 %v1590, %v1588
    %v1687 = vpack.c.b16 %v1591, %v1589
    %v1688 = vpack.c.b16 %v1594, %v1592
    %v1689 = vpack.c.b16 %v1595, %v1593
    %v1690 = vpack.c.b16 %v1598, %v1596
    %v1691 = vpack.c.b16 %v1599, %v1597
    %v1692 = vpack.c.b16 %v1602, %v1600
    %v1693 = vpack.c.b16 %v1603, %v1601
    %v1694 = vpack.c.b16 %v1606, %v1604
    %v1695 = vpack.c.b16 %v1607, %v1605
    %v1696 = vpack.c.b16 %v1610, %v1608
    %v1697 = vpack.c.b16 %v1611, %v1609
    %v1698 = vpack.c.b16 %v1614, %v1612
    %v1699 = vpack.c.b16 %v1615, %v1613
    %v1700 = vpack.c.b16 %v1618, %v1616
    %v1701 = vpack.c.b16 %v1619, %v1617
    %v1702 = vpack.c.b16 %v1622, %v1620
    %v1703 = vpack.c.b16 %v1623, %v1621
    %v1704 = vpack.c.b16 %v1626, %v1624
    %v1705 = vpack.c.b16 %v1627, %v1625
    %v1706 = vpack.c.b16 %v1630, %v1628
    %v1707 = vpack.c.b16 %v1631, %v1629
    %v1708 = vpack.c.b16 %v1634, %v1632
    %v1709 = vpack.c.b16 %v1635, %v1633
    %v1710 = vpack.c.b16 %v1638, %v1636
    %v1711 = vpack.c.b16 %v1639, %v1637
    %v1712 = vpack.c.b16 %v1642, %v1640
    %v1713 = vpack.c.b16 %v1643, %v1641
    %v1714 = vpack.c.b16 %v1646, %v1644
    %v1715 = vpack.c.b16 %v1647, %v1645
    %v1716 = vpack.c.b16 %v1650, %v1648
    %v1717 = vpack.c.b16 %v1651, %v1649
    %v1718 = vpack.c.b16 %v1654, %v1652
    %v1719 = vpack.c.b16 %v1655, %v1653
    %1784 = vmatprep.subr.bf16.mxu0 %v1671
    %1785 = vmatpush1.bf16.msra.mxu0 %v1670
    %1786 = vmatprep.subr.bf16.mxu0 %v1669
    %1787 = vmatpush1.bf16.msra.mxu0 %v1668
    %1788 = vmatprep.subr.bf16.mxu0 %v1667
    %1789 = vmatpush1.bf16.msra.mxu0 %v1666
    %1790 = vmatprep.subr.bf16.mxu0 %v1665
    %1791 = vmatpush1.bf16.msra.mxu0 %v1664
    %1792 = vmatprep.subr.bf16.mxu0 %v1663
    %1793 = vmatpush1.bf16.msra.mxu0 %v1662
    %1794 = vmatprep.subr.bf16.mxu0 %v1661
    %1795 = vmatpush1.bf16.msra.mxu0 %v1660
    %1796 = vmatprep.subr.bf16.mxu0 %v1659
    %1797 = vmatpush1.bf16.msra.mxu0 %v1658
    %1798 = vmatprep.subr.bf16.mxu0 %v1657
    %1799 = vmatpush1.bf16.msra.mxu0 %v1656
    %1800 = vmatprep.subr.bf16.mxu0 %v1687
    %1801 = vmatpush2.bf16.msra.mxu0 %v1686
    %1802 = vmatprep.subr.bf16.mxu0 %v1685
    %1803 = vmatpush2.bf16.msra.mxu0 %v1684
    %1804 = vmatprep.subr.bf16.mxu0 %v1683
    %1805 = vmatpush2.bf16.msra.mxu0 %v1682
    %1806 = vmatprep.subr.bf16.mxu0 %v1681
    %1807 = vmatpush2.bf16.msra.mxu0 %v1680
    %1808 = vmatprep.subr.bf16.mxu0 %v1679
    %1809 = vmatpush2.bf16.msra.mxu0 %v1678
    %1810 = vmatprep.subr.bf16.mxu0 %v1677
    %1811 = vmatpush2.bf16.msra.mxu0 %v1676
    %1812 = vmatprep.subr.bf16.mxu0 %v1675
    %1813 = vmatpush2.bf16.msra.mxu0 %v1674
    %1814 = vmatprep.subr.bf16.mxu0 %v1673
    %1815 = vmatpush2.bf16.msra.mxu0 %v1672
    %1816 = vmatprep.mubr.bf16.mxu0 %v1401
    %1817 = vmatmul.mubr.bf16.gmra.mxu0 %v1400
    %v1818 = vpop.f32.mrf.mxu0
    %v1819 = vadd.f32 0.0, %v1818
    %v1820 = vpop.f32.mrf.mxu0
    %v1821 = vadd.f32 0.0, %v1820
    %v1822 = vpop.f32.mrf.mxu0
    %v1823 = vadd.f32 0.0, %v1822
    %v1824 = vpop.f32.mrf.mxu0
    %v1825 = vadd.f32 0.0, %v1824
    %1826 = vmatprep.mubr.bf16.mxu0 %v1405
    %1827 = vmatmul.mubr.bf16.gmra.mxu0 %v1404
    %v1828 = vpop.f32.mrf.mxu0
    %v1829 = vadd.f32 0.0, %v1828
    %v1830 = vpop.f32.mrf.mxu0
    %v1831 = vadd.f32 0.0, %v1830
    %v1832 = vpop.f32.mrf.mxu0
    %v1833 = vadd.f32 0.0, %v1832
    %v1834 = vpop.f32.mrf.mxu0
    %v1835 = vadd.f32 0.0, %v1834
    %1836 = vmatprep.mubr.bf16.mxu0 %v1409
    %1837 = vmatmul.mubr.bf16.gmra.mxu0 %v1408
    %v1838 = vpop.f32.mrf.mxu0
    %v1839 = vadd.f32 0.0, %v1838
    %v1840 = vpop.f32.mrf.mxu0
    %v1841 = vadd.f32 0.0, %v1840
    %v1842 = vpop.f32.mrf.mxu0
    %v1843 = vadd.f32 0.0, %v1842
    %v1844 = vpop.f32.mrf.mxu0
    %v1845 = vadd.f32 0.0, %v1844
    %1846 = vmatprep.mubr.bf16.mxu0 %v1413
    %1847 = vmatmul.mubr.bf16.gmra.mxu0 %v1412
    %v1848 = vpop.f32.mrf.mxu0
    %v1849 = vadd.f32 0.0, %v1848
    %v1850 = vpop.f32.mrf.mxu0
    %v1851 = vadd.f32 0.0, %v1850
    %v1852 = vpop.f32.mrf.mxu0
    %v1853 = vadd.f32 0.0, %v1852
    %v1854 = vpop.f32.mrf.mxu0
    %v1855 = vadd.f32 0.0, %v1854
    %1856 = vmatprep.mubr.bf16.mxu0 %v1417
    %1857 = vmatmul.mubr.bf16.gmra.mxu0 %v1416
    %v1858 = vpop.f32.mrf.mxu0
    %v1859 = vadd.f32 0.0, %v1858
    %v1860 = vpop.f32.mrf.mxu0
    %v1861 = vadd.f32 0.0, %v1860
    %v1862 = vpop.f32.mrf.mxu0
    %v1863 = vadd.f32 0.0, %v1862
    %v1864 = vpop.f32.mrf.mxu0
    %v1865 = vadd.f32 0.0, %v1864
    %1866 = vmatprep.mubr.bf16.mxu0 %v1421
    %1867 = vmatmul.mubr.bf16.gmra.mxu0 %v1420
    %v1868 = vpop.f32.mrf.mxu0
    %v1869 = vadd.f32 0.0, %v1868
    %v1870 = vpop.f32.mrf.mxu0
    %v1871 = vadd.f32 0.0, %v1870
    %v1872 = vpop.f32.mrf.mxu0
    %v1873 = vadd.f32 0.0, %v1872
    %v1874 = vpop.f32.mrf.mxu0
    %v1875 = vadd.f32 0.0, %v1874
    %1876 = vmatprep.mubr.bf16.mxu0 %v1425
    %1877 = vmatmul.mubr.bf16.gmra.mxu0 %v1424
    %v1878 = vpop.f32.mrf.mxu0
    %v1879 = vadd.f32 0.0, %v1878
    %v1880 = vpop.f32.mrf.mxu0
    %v1881 = vadd.f32 0.0, %v1880
    %v1882 = vpop.f32.mrf.mxu0
    %v1883 = vadd.f32 0.0, %v1882
    %v1884 = vpop.f32.mrf.mxu0
    %v1885 = vadd.f32 0.0, %v1884
    %1886 = vmatprep.mubr.bf16.mxu0 %v1429
    %1887 = vmatmul.mubr.bf16.gmra.mxu0 %v1428
    %v1888 = vpop.f32.mrf.mxu0
    %v1889 = vadd.f32 0.0, %v1888
    %v1890 = vpop.f32.mrf.mxu0
    %v1891 = vadd.f32 0.0, %v1890
    %v1892 = vpop.f32.mrf.mxu0
    %v1893 = vadd.f32 0.0, %v1892
    %v1894 = vpop.f32.mrf.mxu0
    %v1895 = vadd.f32 0.0, %v1894
    %1896 = vdwg.mxu0
    %1897 = vmatprep.subr.bf16.mxu0 %v1703
    %1898 = vmatpush1.bf16.msra.mxu0 %v1702
    %1899 = vmatprep.subr.bf16.mxu0 %v1701
    %1900 = vmatpush1.bf16.msra.mxu0 %v1700
    %1901 = vmatprep.subr.bf16.mxu0 %v1699
    %1902 = vmatpush1.bf16.msra.mxu0 %v1698
    %1903 = vmatprep.subr.bf16.mxu0 %v1697
    %1904 = vmatpush1.bf16.msra.mxu0 %v1696
    %1905 = vmatprep.subr.bf16.mxu0 %v1695
    %1906 = vmatpush1.bf16.msra.mxu0 %v1694
    %1907 = vmatprep.subr.bf16.mxu0 %v1693
    %1908 = vmatpush1.bf16.msra.mxu0 %v1692
    %1909 = vmatprep.subr.bf16.mxu0 %v1691
    %1910 = vmatpush1.bf16.msra.mxu0 %v1690
    %1911 = vmatprep.subr.bf16.mxu0 %v1689
    %1912 = vmatpush1.bf16.msra.mxu0 %v1688
    %1913 = vmatprep.subr.bf16.mxu0 %v1719
    %1914 = vmatpush2.bf16.msra.mxu0 %v1718
    %1915 = vmatprep.subr.bf16.mxu0 %v1717
    %1916 = vmatpush2.bf16.msra.mxu0 %v1716
    %1917 = vmatprep.subr.bf16.mxu0 %v1715
    %1918 = vmatpush2.bf16.msra.mxu0 %v1714
    %1919 = vmatprep.subr.bf16.mxu0 %v1713
    %1920 = vmatpush2.bf16.msra.mxu0 %v1712
    %1921 = vmatprep.subr.bf16.mxu0 %v1711
    %1922 = vmatpush2.bf16.msra.mxu0 %v1710
    %1923 = vmatprep.subr.bf16.mxu0 %v1709
    %1924 = vmatpush2.bf16.msra.mxu0 %v1708
    %1925 = vmatprep.subr.bf16.mxu0 %v1707
    %1926 = vmatpush2.bf16.msra.mxu0 %v1706
    %1927 = vmatprep.subr.bf16.mxu0 %v1705
    %1928 = vmatpush2.bf16.msra.mxu0 %v1704
    %1929 = vmatprep.mubr.bf16.mxu0 %v1403
    %1930 = vmatmul.mubr.bf16.gmra.mxu0 %v1402
    %v1931 = vpop.f32.mrf.mxu0
    %v1932 = vadd.f32 %v1819, %v1931
    %v1933 = vpop.f32.mrf.mxu0
    %v1934 = vadd.f32 %v1821, %v1933
    %v1935 = vpop.f32.mrf.mxu0
    %v1936 = vadd.f32 %v1823, %v1935
    %v1937 = vpop.f32.mrf.mxu0
    %v1938 = vadd.f32 %v1825, %v1937
    %1939 = vmatprep.mubr.bf16.mxu0 %v1407
    %1940 = vmatmul.mubr.bf16.gmra.mxu0 %v1406
    %v1941 = vpop.f32.mrf.mxu0
    %v1942 = vadd.f32 %v1829, %v1941
    %v1943 = vpop.f32.mrf.mxu0
    %v1944 = vadd.f32 %v1831, %v1943
    %v1945 = vpop.f32.mrf.mxu0
    %v1946 = vadd.f32 %v1833, %v1945
    %v1947 = vpop.f32.mrf.mxu0
    %v1948 = vadd.f32 %v1835, %v1947
    %1949 = vmatprep.mubr.bf16.mxu0 %v1411
    %1950 = vmatmul.mubr.bf16.gmra.mxu0 %v1410
    %v1951 = vpop.f32.mrf.mxu0
    %v1952 = vadd.f32 %v1839, %v1951
    %v1953 = vpop.f32.mrf.mxu0
    %v1954 = vadd.f32 %v1841, %v1953
    %v1955 = vpop.f32.mrf.mxu0
    %v1956 = vadd.f32 %v1843, %v1955
    %v1957 = vpop.f32.mrf.mxu0
    %v1958 = vadd.f32 %v1845, %v1957
    %1959 = vmatprep.mubr.bf16.mxu0 %v1415
    %1960 = vmatmul.mubr.bf16.gmra.mxu0 %v1414
    %v1961 = vpop.f32.mrf.mxu0
    %v1962 = vadd.f32 %v1849, %v1961
    %v1963 = vpop.f32.mrf.mxu0
    %v1964 = vadd.f32 %v1851, %v1963
    %v1965 = vpop.f32.mrf.mxu0
    %v1966 = vadd.f32 %v1853, %v1965
    %v1967 = vpop.f32.mrf.mxu0
    %v1968 = vadd.f32 %v1855, %v1967
    %1969 = vmatprep.mubr.bf16.mxu0 %v1419
    %1970 = vmatmul.mubr.bf16.gmra.mxu0 %v1418
    %v1971 = vpop.f32.mrf.mxu0
    %v1972 = vadd.f32 %v1859, %v1971
    %v1973 = vpop.f32.mrf.mxu0
    %v1974 = vadd.f32 %v1861, %v1973
    %v1975 = vpop.f32.mrf.mxu0
    %v1976 = vadd.f32 %v1863, %v1975
    %v1977 = vpop.f32.mrf.mxu0
    %v1978 = vadd.f32 %v1865, %v1977
    %1979 = vmatprep.mubr.bf16.mxu0 %v1423
    %1980 = vmatmul.mubr.bf16.gmra.mxu0 %v1422
    %v1981 = vpop.f32.mrf.mxu0
    %v1982 = vadd.f32 %v1869, %v1981
    %v1983 = vpop.f32.mrf.mxu0
    %v1984 = vadd.f32 %v1871, %v1983
    %v1985 = vpop.f32.mrf.mxu0
    %v1986 = vadd.f32 %v1873, %v1985
    %v1987 = vpop.f32.mrf.mxu0
    %v1988 = vadd.f32 %v1875, %v1987
    %1989 = vmatprep.mubr.bf16.mxu0 %v1427
    %1990 = vmatmul.mubr.bf16.gmra.mxu0 %v1426
    %v1991 = vpop.f32.mrf.mxu0
    %v1992 = vadd.f32 %v1879, %v1991
    %v1993 = vpop.f32.mrf.mxu0
    %v1994 = vadd.f32 %v1881, %v1993
    %v1995 = vpop.f32.mrf.mxu0
    %v1996 = vadd.f32 %v1883, %v1995
    %v1997 = vpop.f32.mrf.mxu0
    %v1998 = vadd.f32 %v1885, %v1997
    %1999 = vmatprep.mubr.bf16.mxu0 %v1431
    %2000 = vmatmul.mubr.bf16.gmra.mxu0 %v1430
    %v2001 = vpop.f32.mrf.mxu0
    %v2002 = vadd.f32 %v1889, %v2001
    %v2003 = vpop.f32.mrf.mxu0
    %v2004 = vadd.f32 %v1891, %v2003
    %v2005 = vpop.f32.mrf.mxu0
    %v2006 = vadd.f32 %v1893, %v2005
    %v2007 = vpop.f32.mrf.mxu0
    %v2008 = vadd.f32 %v1895, %v2007
    %2009 = vdwg.mxu0
    %v2010 = vld [vmem:[%s6] sm:$0x3]
    %v2012 = vlaneseq
    %v2013 = vshrl.u32 %v2012, 7
    %v2014 = vsub.s32 0, %v2013
    %v2015 = vrot.slane %v2010, %v2014
    %v2016 = vlaneseq
    %v2017 = vshrl.u32 %v2016, 7
    %v2018 = vsub.s32 1, %v2017
    %v2019 = vrot.slane %v2010, %v2018
    %v2022 = vmul.f32 %v1932, %v2015
    %v2023 = vmul.f32 %v1934, %v2019
    %v2024 = vmul.f32 %v1936, %v2015
    %v2025 = vmul.f32 %v1938, %v2019
    %v2026 = vmul.f32 %v1942, %v2015
    %v2027 = vmul.f32 %v1944, %v2019
    %v2028 = vmul.f32 %v1946, %v2015
    %v2029 = vmul.f32 %v1948, %v2019
    %v2030 = vmul.f32 %v1952, %v2015
    %v2031 = vmul.f32 %v1954, %v2019
    %v2032 = vmul.f32 %v1956, %v2015
    %v2033 = vmul.f32 %v1958, %v2019
    %v2034 = vmul.f32 %v1962, %v2015
    %v2035 = vmul.f32 %v1964, %v2019
    %v2036 = vmul.f32 %v1966, %v2015
    %v2037 = vmul.f32 %v1968, %v2019
    %v2038 = vmul.f32 %v1972, %v2015
    %v2039 = vmul.f32 %v1974, %v2019
    %v2040 = vmul.f32 %v1976, %v2015
    %v2041 = vmul.f32 %v1978, %v2019
    %v2042 = vmul.f32 %v1982, %v2015
    %v2043 = vmul.f32 %v1984, %v2019
    %v2044 = vmul.f32 %v1986, %v2015
    %v2045 = vmul.f32 %v1988, %v2019
    %v2046 = vmul.f32 %v1992, %v2015
    %v2047 = vmul.f32 %v1994, %v2019
    %v2048 = vmul.f32 %v1996, %v2015
    %v2049 = vmul.f32 %v1998, %v2019
    %v2050 = vmul.f32 %v2002, %v2015
    %v2051 = vmul.f32 %v2004, %v2019
    %v2052 = vmul.f32 %v2006, %v2015
    %v2053 = vmul.f32 %v2008, %v2019
    %v2054 = vld [vmem:[%s7] sm:$0x3]
    %v2056 = vlaneseq
    %v2057 = vshrl.u32 %v2056, 7
    %v2058 = vsub.s32 0, %v2057
    %v2059 = vrot.slane %v2054, %v2058
    %v2060 = vlaneseq
    %v2061 = vshrl.u32 %v2060, 7
    %v2062 = vsub.s32 1, %v2061
    %v2063 = vrot.slane %v2054, %v2062
    %v2066 = vadd.f32 %v2022, %v2059
    %v2067 = vadd.f32 %v2023, %v2063
    %v2068 = vadd.f32 %v2024, %v2059
    %v2069 = vadd.f32 %v2025, %v2063
    %v2070 = vadd.f32 %v2026, %v2059
    %v2071 = vadd.f32 %v2027, %v2063
    %v2072 = vadd.f32 %v2028, %v2059
    %v2073 = vadd.f32 %v2029, %v2063
    %v2074 = vadd.f32 %v2030, %v2059
    %v2075 = vadd.f32 %v2031, %v2063
    %v2076 = vadd.f32 %v2032, %v2059
    %v2077 = vadd.f32 %v2033, %v2063
    %v2078 = vadd.f32 %v2034, %v2059
    %v2079 = vadd.f32 %v2035, %v2063
    %v2080 = vadd.f32 %v2036, %v2059
    %v2081 = vadd.f32 %v2037, %v2063
    %v2082 = vadd.f32 %v2038, %v2059
    %v2083 = vadd.f32 %v2039, %v2063
    %v2084 = vadd.f32 %v2040, %v2059
    %v2085 = vadd.f32 %v2041, %v2063
    %v2086 = vadd.f32 %v2042, %v2059
    %v2087 = vadd.f32 %v2043, %v2063
    %v2088 = vadd.f32 %v2044, %v2059
    %v2089 = vadd.f32 %v2045, %v2063
    %v2090 = vadd.f32 %v2046, %v2059
    %v2091 = vadd.f32 %v2047, %v2063
    %v2092 = vadd.f32 %v2048, %v2059
    %v2093 = vadd.f32 %v2049, %v2063
    %v2094 = vadd.f32 %v2050, %v2059
    %v2095 = vadd.f32 %v2051, %v2063
    %v2096 = vadd.f32 %v2052, %v2059
    %v2097 = vadd.f32 %v2053, %v2063
    %vm2098 = vcmp.gt.f32.partialorder %v2066, 0.0
    %vm2099 = vcmp.gt.f32.partialorder %v2067, 0.0
    %vm2100 = vcmp.gt.f32.partialorder %v2068, 0.0
    %vm2101 = vcmp.gt.f32.partialorder %v2069, 0.0
    %vm2102 = vcmp.gt.f32.partialorder %v2070, 0.0
    %vm2103 = vcmp.gt.f32.partialorder %v2071, 0.0
    %vm2104 = vcmp.gt.f32.partialorder %v2072, 0.0
    %vm2105 = vcmp.gt.f32.partialorder %v2073, 0.0
    %vm2106 = vcmp.gt.f32.partialorder %v2074, 0.0
    %vm2107 = vcmp.gt.f32.partialorder %v2075, 0.0
    %vm2108 = vcmp.gt.f32.partialorder %v2076, 0.0
    %vm2109 = vcmp.gt.f32.partialorder %v2077, 0.0
    %vm2110 = vcmp.gt.f32.partialorder %v2078, 0.0
    %vm2111 = vcmp.gt.f32.partialorder %v2079, 0.0
    %vm2112 = vcmp.gt.f32.partialorder %v2080, 0.0
    %vm2113 = vcmp.gt.f32.partialorder %v2081, 0.0
    %vm2114 = vcmp.gt.f32.partialorder %v2082, 0.0
    %vm2115 = vcmp.gt.f32.partialorder %v2083, 0.0
    %vm2116 = vcmp.gt.f32.partialorder %v2084, 0.0
    %vm2117 = vcmp.gt.f32.partialorder %v2085, 0.0
    %vm2118 = vcmp.gt.f32.partialorder %v2086, 0.0
    %vm2119 = vcmp.gt.f32.partialorder %v2087, 0.0
    %vm2120 = vcmp.gt.f32.partialorder %v2088, 0.0
    %vm2121 = vcmp.gt.f32.partialorder %v2089, 0.0
    %vm2122 = vcmp.gt.f32.partialorder %v2090, 0.0
    %vm2123 = vcmp.gt.f32.partialorder %v2091, 0.0
    %vm2124 = vcmp.gt.f32.partialorder %v2092, 0.0
    %vm2125 = vcmp.gt.f32.partialorder %v2093, 0.0
    %vm2126 = vcmp.gt.f32.partialorder %v2094, 0.0
    %vm2127 = vcmp.gt.f32.partialorder %v2095, 0.0
    %vm2128 = vcmp.gt.f32.partialorder %v2096, 0.0
    %vm2129 = vcmp.gt.f32.partialorder %v2097, 0.0
    %v2130 = vmul.f32 %v2066, 0.1
    %v2131 = vmul.f32 %v2067, 0.1
    %v2132 = vmul.f32 %v2068, 0.1
    %v2133 = vmul.f32 %v2069, 0.1
    %v2134 = vmul.f32 %v2070, 0.1
    %v2135 = vmul.f32 %v2071, 0.1
    %v2136 = vmul.f32 %v2072, 0.1
    %v2137 = vmul.f32 %v2073, 0.1
    %v2138 = vmul.f32 %v2074, 0.1
    %v2139 = vmul.f32 %v2075, 0.1
    %v2140 = vmul.f32 %v2076, 0.1
    %v2141 = vmul.f32 %v2077, 0.1
    %v2142 = vmul.f32 %v2078, 0.1
    %v2143 = vmul.f32 %v2079, 0.1
    %v2144 = vmul.f32 %v2080, 0.1
    %v2145 = vmul.f32 %v2081, 0.1
    %v2146 = vmul.f32 %v2082, 0.1
    %v2147 = vmul.f32 %v2083, 0.1
    %v2148 = vmul.f32 %v2084, 0.1
    %v2149 = vmul.f32 %v2085, 0.1
    %v2150 = vmul.f32 %v2086, 0.1
    %v2151 = vmul.f32 %v2087, 0.1
    %v2152 = vmul.f32 %v2088, 0.1
    %v2153 = vmul.f32 %v2089, 0.1
    %v2154 = vmul.f32 %v2090, 0.1
    %v2155 = vmul.f32 %v2091, 0.1
    %v2156 = vmul.f32 %v2092, 0.1
    %v2157 = vmul.f32 %v2093, 0.1
    %v2158 = vmul.f32 %v2094, 0.1
    %v2159 = vmul.f32 %v2095, 0.1
    %v2160 = vmul.f32 %v2096, 0.1
    %v2161 = vmul.f32 %v2097, 0.1
    %v2162 = vsel %vm2098, %v2066, %v2130
    %v2163 = vsel %vm2099, %v2067, %v2131
    %v2164 = vsel %vm2100, %v2068, %v2132
    %v2165 = vsel %vm2101, %v2069, %v2133
    %v2166 = vsel %vm2102, %v2070, %v2134
    %v2167 = vsel %vm2103, %v2071, %v2135
    %v2168 = vsel %vm2104, %v2072, %v2136
    %v2169 = vsel %vm2105, %v2073, %v2137
    %v2170 = vsel %vm2106, %v2074, %v2138
    %v2171 = vsel %vm2107, %v2075, %v2139
    %v2172 = vsel %vm2108, %v2076, %v2140
    %v2173 = vsel %vm2109, %v2077, %v2141
    %v2174 = vsel %vm2110, %v2078, %v2142
    %v2175 = vsel %vm2111, %v2079, %v2143
    %v2176 = vsel %vm2112, %v2080, %v2144
    %v2177 = vsel %vm2113, %v2081, %v2145
    %v2178 = vsel %vm2114, %v2082, %v2146
    %v2179 = vsel %vm2115, %v2083, %v2147
    %v2180 = vsel %vm2116, %v2084, %v2148
    %v2181 = vsel %vm2117, %v2085, %v2149
    %v2182 = vsel %vm2118, %v2086, %v2150
    %v2183 = vsel %vm2119, %v2087, %v2151
    %v2184 = vsel %vm2120, %v2088, %v2152
    %v2185 = vsel %vm2121, %v2089, %v2153
    %v2186 = vsel %vm2122, %v2090, %v2154
    %v2187 = vsel %vm2123, %v2091, %v2155
    %v2188 = vsel %vm2124, %v2092, %v2156
    %v2189 = vsel %vm2125, %v2093, %v2157
    %v2190 = vsel %vm2126, %v2094, %v2158
    %v2191 = vsel %vm2127, %v2095, %v2159
    %v2192 = vsel %vm2128, %v2096, %v2160
    %v2193 = vsel %vm2129, %v2097, %v2161
    %v2194 = vld [vmem:[%s11] sm:$0xf]
    %v2195 = vld [vmem:[%s11 + $0x4] sm:$0xf]
    %v2196 = vld [vmem:[%s11 + $0x8] sm:$0xf]
    %v2197 = vld [vmem:[%s11 + $0xc] sm:$0xf]
    %v2198 = vld [vmem:[%s11 + $0x10] sm:$0xf]
    %v2199 = vld [vmem:[%s11 + $0x14] sm:$0xf]
    %v2200 = vld [vmem:[%s11 + $0x18] sm:$0xf]
    %v2201 = vld [vmem:[%s11 + $0x1c] sm:$0xf]
    %v2202 = vld [vmem:[%s11 + $0x20] sm:$0xf]
    %v2203 = vld [vmem:[%s11 + $0x24] sm:$0xf]
    %v2204 = vld [vmem:[%s11 + $0x28] sm:$0xf]
    %v2205 = vld [vmem:[%s11 + $0x2c] sm:$0xf]
    %v2206 = vld [vmem:[%s11 + $0x30] sm:$0xf]
    %v2207 = vld [vmem:[%s11 + $0x34] sm:$0xf]
    %v2208 = vld [vmem:[%s11 + $0x38] sm:$0xf]
    %v2209 = vld [vmem:[%s11 + $0x3c] sm:$0xf]
    %v2210 = vpack.c.bf16 %v1194, %v1192
    %v2211 = vpack.c.bf16 %v1195, %v1193
    %v2212 = vpack.c.bf16 %v1198, %v1196
    %v2213 = vpack.c.bf16 %v1199, %v1197
    %v2230 = vunpack.c.l.b16 %v2194
    %v2231 = vunpack.c.l.b16 %v2195
    %v2232 = vunpack.c.l.b16 %v2196
    %v2233 = vunpack.c.l.b16 %v2197
    %v2234 = vunpack.c.l.b16 %v2198
    %v2235 = vunpack.c.l.b16 %v2199
    %v2236 = vunpack.c.l.b16 %v2200
    %v2237 = vunpack.c.l.b16 %v2201
    %v2238 = vunpack.c.l.b16 %v2202
    %v2239 = vunpack.c.l.b16 %v2203
    %v2240 = vunpack.c.l.b16 %v2204
    %v2241 = vunpack.c.l.b16 %v2205
    %v2242 = vunpack.c.l.b16 %v2206
    %v2243 = vunpack.c.l.b16 %v2207
    %v2244 = vunpack.c.l.b16 %v2208
    %v2245 = vunpack.c.l.b16 %v2209
    %v2246 = vpack.c.b16 %v2231, %v2230
    %v2247 = vpack.c.b16 %v2233, %v2232
    %v2248 = vpack.c.b16 %v2235, %v2234
    %v2249 = vpack.c.b16 %v2237, %v2236
    %v2250 = vpack.c.b16 %v2239, %v2238
    %v2251 = vpack.c.b16 %v2241, %v2240
    %v2252 = vpack.c.b16 %v2243, %v2242
    %v2253 = vpack.c.b16 %v2245, %v2244
    %vm2254 = vcmask 261120
    %v2256 = vsel %vm2254, %v2246, 0
    %v2259 = vsel %vm2254, %v2247, 0
    %v2262 = vsel %vm2254, %v2248, 0
    %v2265 = vsel %vm2254, %v2249, 0
    %v2268 = vsel %vm2254, %v2250, 0
    %v2271 = vsel %vm2254, %v2251, 0
    %v2274 = vsel %vm2254, %v2252, 0
    %v2277 = vsel %vm2254, %v2253, 0
    %2279 = vmatprep.subr.bf16.mxu0 0
    %2280 = vmatpush1.bf16.msra.mxu0 0
    %2281 = vmatprep.subr.bf16.mxu0 0
    %2282 = vmatpush1.bf16.msra.mxu0 0
    %2283 = vmatprep.subr.bf16.mxu0 0
    %2284 = vmatpush1.bf16.msra.mxu0 0
    %2285 = vmatprep.subr.bf16.mxu0 0
    %2286 = vmatpush1.bf16.msra.mxu0 0
    %2287 = vmatprep.subr.bf16.mxu0 0
    %2288 = vmatpush1.bf16.msra.mxu0 0
    %2289 = vmatprep.subr.bf16.mxu0 0
    %2290 = vmatpush1.bf16.msra.mxu0 0
    %2291 = vmatprep.subr.bf16.mxu0 %v2213
    %2292 = vmatpush1.bf16.msra.mxu0 %v2212
    %2293 = vmatprep.subr.bf16.mxu0 %v2211
    %2294 = vmatpush1.bf16.msra.mxu0 %v2210
    %2295 = vmatprep.subr.bf16.mxu0 0
    %2296 = vmatpush2.bf16.msra.mxu0 0
    %2297 = vmatprep.subr.bf16.mxu0 0
    %2298 = vmatpush2.bf16.msra.mxu0 0
    %2299 = vmatprep.subr.bf16.mxu0 0
    %2300 = vmatpush2.bf16.msra.mxu0 0
    %2301 = vmatprep.subr.bf16.mxu0 0
    %2302 = vmatpush2.bf16.msra.mxu0 0
    %2303 = vmatprep.subr.bf16.mxu0 0
    %2304 = vmatpush2.bf16.msra.mxu0 0
    %2305 = vmatprep.subr.bf16.mxu0 0
    %2306 = vmatpush2.bf16.msra.mxu0 0
    %2307 = vmatprep.subr.bf16.mxu0 0
    %2308 = vmatpush2.bf16.msra.mxu0 0
    %2309 = vmatprep.subr.bf16.mxu0 0
    %2310 = vmatpush2.bf16.msra.mxu0 0
    %2311 = vmatprep.mubr.bf16.mxu0 0
    %2312 = vmatmul.mubr.bf16.gmra.mxu0 %v2256
    %v2313 = vpop.f32.mrf.mxu0
    %v2314 = vadd.f32 %v2162, %v2313
    %v2315 = vpop.f32.mrf.mxu0
    %v2316 = vadd.f32 %v2163, %v2315
    %v2317 = vpop.f32.mrf.mxu0
    %v2318 = vadd.f32 %v2164, %v2317
    %v2319 = vpop.f32.mrf.mxu0
    %v2320 = vadd.f32 %v2165, %v2319
    %2321 = vmatprep.mubr.bf16.mxu0 0
    %2322 = vmatmul.mubr.bf16.gmra.mxu0 %v2259
    %v2323 = vpop.f32.mrf.mxu0
    %v2324 = vadd.f32 %v2166, %v2323
    %v2325 = vpop.f32.mrf.mxu0
    %v2326 = vadd.f32 %v2167, %v2325
    %v2327 = vpop.f32.mrf.mxu0
    %v2328 = vadd.f32 %v2168, %v2327
    %v2329 = vpop.f32.mrf.mxu0
    %v2330 = vadd.f32 %v2169, %v2329
    %2331 = vmatprep.mubr.bf16.mxu0 0
    %2332 = vmatmul.mubr.bf16.gmra.mxu0 %v2262
    %v2333 = vpop.f32.mrf.mxu0
    %v2334 = vadd.f32 %v2170, %v2333
    %v2335 = vpop.f32.mrf.mxu0
    %v2336 = vadd.f32 %v2171, %v2335
    %v2337 = vpop.f32.mrf.mxu0
    %v2338 = vadd.f32 %v2172, %v2337
    %v2339 = vpop.f32.mrf.mxu0
    %v2340 = vadd.f32 %v2173, %v2339
    %2341 = vmatprep.mubr.bf16.mxu0 0
    %2342 = vmatmul.mubr.bf16.gmra.mxu0 %v2265
    %v2343 = vpop.f32.mrf.mxu0
    %v2344 = vadd.f32 %v2174, %v2343
    %v2345 = vpop.f32.mrf.mxu0
    %v2346 = vadd.f32 %v2175, %v2345
    %v2347 = vpop.f32.mrf.mxu0
    %v2348 = vadd.f32 %v2176, %v2347
    %v2349 = vpop.f32.mrf.mxu0
    %v2350 = vadd.f32 %v2177, %v2349
    %2351 = vmatprep.mubr.bf16.mxu0 0
    %2352 = vmatmul.mubr.bf16.gmra.mxu0 %v2268
    %v2353 = vpop.f32.mrf.mxu0
    %v2354 = vadd.f32 %v2178, %v2353
    %v2355 = vpop.f32.mrf.mxu0
    %v2356 = vadd.f32 %v2179, %v2355
    %v2357 = vpop.f32.mrf.mxu0
    %v2358 = vadd.f32 %v2180, %v2357
    %v2359 = vpop.f32.mrf.mxu0
    %v2360 = vadd.f32 %v2181, %v2359
    %2361 = vmatprep.mubr.bf16.mxu0 0
    %2362 = vmatmul.mubr.bf16.gmra.mxu0 %v2271
    %v2363 = vpop.f32.mrf.mxu0
    %v2364 = vadd.f32 %v2182, %v2363
    %v2365 = vpop.f32.mrf.mxu0
    %v2366 = vadd.f32 %v2183, %v2365
    %v2367 = vpop.f32.mrf.mxu0
    %v2368 = vadd.f32 %v2184, %v2367
    %v2369 = vpop.f32.mrf.mxu0
    %v2370 = vadd.f32 %v2185, %v2369
    %2371 = vmatprep.mubr.bf16.mxu0 0
    %2372 = vmatmul.mubr.bf16.gmra.mxu0 %v2274
    %v2373 = vpop.f32.mrf.mxu0
    %v2374 = vadd.f32 %v2186, %v2373
    %v2375 = vpop.f32.mrf.mxu0
    %v2376 = vadd.f32 %v2187, %v2375
    %v2377 = vpop.f32.mrf.mxu0
    %v2378 = vadd.f32 %v2188, %v2377
    %v2379 = vpop.f32.mrf.mxu0
    %v2380 = vadd.f32 %v2189, %v2379
    %2381 = vmatprep.mubr.bf16.mxu0 0
    %2382 = vmatmul.mubr.bf16.gmra.mxu0 %v2277
    %v2383 = vpop.f32.mrf.mxu0
    %v2384 = vadd.f32 %v2190, %v2383
    %v2385 = vpop.f32.mrf.mxu0
    %v2386 = vadd.f32 %v2191, %v2385
    %v2387 = vpop.f32.mrf.mxu0
    %v2388 = vadd.f32 %v2192, %v2387
    %v2389 = vpop.f32.mrf.mxu0
    %v2390 = vadd.f32 %v2193, %v2389
    %2391 = vdwg.mxu0
    %v2392 = vpack.c.bf16 %v2318, %v2314
    %v2393 = vpack.c.bf16 %v2320, %v2316
    %v2394 = vpack.c.bf16 %v2328, %v2324
    %v2395 = vpack.c.bf16 %v2330, %v2326
    %v2396 = vpack.c.bf16 %v2338, %v2334
    %v2397 = vpack.c.bf16 %v2340, %v2336
    %v2398 = vpack.c.bf16 %v2348, %v2344
    %v2399 = vpack.c.bf16 %v2350, %v2346
    %v2400 = vpack.c.bf16 %v2358, %v2354
    %v2401 = vpack.c.bf16 %v2360, %v2356
    %v2402 = vpack.c.bf16 %v2368, %v2364
    %v2403 = vpack.c.bf16 %v2370, %v2366
    %v2404 = vpack.c.bf16 %v2378, %v2374
    %v2405 = vpack.c.bf16 %v2380, %v2376
    %v2406 = vpack.c.bf16 %v2388, %v2384
    %v2407 = vpack.c.bf16 %v2390, %v2386
    %v2408 = vld [vmem:[%s8] sm:$0xff]
    %v2409 = vld [vmem:[%s8 + $0x8] sm:$0xff]
    %v2410 = vld [vmem:[%s8 + $0x10] sm:$0xff]
    %v2411 = vld [vmem:[%s8 + $0x18] sm:$0xff]
    %v2412 = vld [vmem:[%s8 + $0x20] sm:$0xff]
    %v2413 = vld [vmem:[%s8 + $0x28] sm:$0xff]
    %v2414 = vld [vmem:[%s8 + $0x30] sm:$0xff]
    %v2415 = vld [vmem:[%s8 + $0x38] sm:$0xff]
    %v2416 = vld [vmem:[%s8 + $0x40] sm:$0xff]
    %v2417 = vld [vmem:[%s8 + $0x48] sm:$0xff]
    %v2418 = vld [vmem:[%s8 + $0x50] sm:$0xff]
    %v2419 = vld [vmem:[%s8 + $0x58] sm:$0xff]
    %v2420 = vld [vmem:[%s8 + $0x60] sm:$0xff]
    %v2421 = vld [vmem:[%s8 + $0x68] sm:$0xff]
    %v2422 = vld [vmem:[%s8 + $0x70] sm:$0xff]
    %v2423 = vld [vmem:[%s8 + $0x78] sm:$0xff]
    %v2424 = vld [vmem:[%s8 + $0x80] sm:$0xff]
    %v2425 = vld [vmem:[%s8 + $0x88] sm:$0xff]
    %v2426 = vld [vmem:[%s8 + $0x90] sm:$0xff]
    %v2427 = vld [vmem:[%s8 + $0x98] sm:$0xff]
    %v2428 = vld [vmem:[%s8 + $0xa0] sm:$0xff]
    %v2429 = vld [vmem:[%s8 + $0xa8] sm:$0xff]
    %v2430 = vld [vmem:[%s8 + $0xb0] sm:$0xff]
    %v2431 = vld [vmem:[%s8 + $0xb8] sm:$0xff]
    %v2432 = vld [vmem:[%s8 + $0xc0] sm:$0xff]
    %v2433 = vld [vmem:[%s8 + $0xc8] sm:$0xff]
    %v2434 = vld [vmem:[%s8 + $0xd0] sm:$0xff]
    %v2435 = vld [vmem:[%s8 + $0xd8] sm:$0xff]
    %v2436 = vld [vmem:[%s8 + $0xe0] sm:$0xff]
    %v2437 = vld [vmem:[%s8 + $0xe8] sm:$0xff]
    %v2438 = vld [vmem:[%s8 + $0xf0] sm:$0xff]
    %v2439 = vld [vmem:[%s8 + $0xf8] sm:$0xff]
    %v2472 = vunpack.c.l.b16 %v2408
    %v2473 = vunpack.c.h.b16 %v2408
    %v2474 = vunpack.c.l.b16 %v2409
    %v2475 = vunpack.c.h.b16 %v2409
    %v2476 = vunpack.c.l.b16 %v2410
    %v2477 = vunpack.c.h.b16 %v2410
    %v2478 = vunpack.c.l.b16 %v2411
    %v2479 = vunpack.c.h.b16 %v2411
    %v2480 = vunpack.c.l.b16 %v2412
    %v2481 = vunpack.c.h.b16 %v2412
    %v2482 = vunpack.c.l.b16 %v2413
    %v2483 = vunpack.c.h.b16 %v2413
    %v2484 = vunpack.c.l.b16 %v2414
    %v2485 = vunpack.c.h.b16 %v2414
    %v2486 = vunpack.c.l.b16 %v2415
    %v2487 = vunpack.c.h.b16 %v2415
    %v2488 = vunpack.c.l.b16 %v2416
    %v2489 = vunpack.c.h.b16 %v2416
    %v2490 = vunpack.c.l.b16 %v2417
    %v2491 = vunpack.c.h.b16 %v2417
    %v2492 = vunpack.c.l.b16 %v2418
    %v2493 = vunpack.c.h.b16 %v2418
    %v2494 = vunpack.c.l.b16 %v2419
    %v2495 = vunpack.c.h.b16 %v2419
    %v2496 = vunpack.c.l.b16 %v2420
    %v2497 = vunpack.c.h.b16 %v2420
    %v2498 = vunpack.c.l.b16 %v2421
    %v2499 = vunpack.c.h.b16 %v2421
    %v2500 = vunpack.c.l.b16 %v2422
    %v2501 = vunpack.c.h.b16 %v2422
    %v2502 = vunpack.c.l.b16 %v2423
    %v2503 = vunpack.c.h.b16 %v2423
    %v2504 = vunpack.c.l.b16 %v2424
    %v2505 = vunpack.c.h.b16 %v2424
    %v2506 = vunpack.c.l.b16 %v2425
    %v2507 = vunpack.c.h.b16 %v2425
    %v2508 = vunpack.c.l.b16 %v2426
    %v2509 = vunpack.c.h.b16 %v2426
    %v2510 = vunpack.c.l.b16 %v2427
    %v2511 = vunpack.c.h.b16 %v2427
    %v2512 = vunpack.c.l.b16 %v2428
    %v2513 = vunpack.c.h.b16 %v2428
    %v2514 = vunpack.c.l.b16 %v2429
    %v2515 = vunpack.c.h.b16 %v2429
    %v2516 = vunpack.c.l.b16 %v2430
    %v2517 = vunpack.c.h.b16 %v2430
    %v2518 = vunpack.c.l.b16 %v2431
    %v2519 = vunpack.c.h.b16 %v2431
    %v2520 = vunpack.c.l.b16 %v2432
    %v2521 = vunpack.c.h.b16 %v2432
    %v2522 = vunpack.c.l.b16 %v2433
    %v2523 = vunpack.c.h.b16 %v2433
    %v2524 = vunpack.c.l.b16 %v2434
    %v2525 = vunpack.c.h.b16 %v2434
    %v2526 = vunpack.c.l.b16 %v2435
    %v2527 = vunpack.c.h.b16 %v2435
    %v2528 = vunpack.c.l.b16 %v2436
    %v2529 = vunpack.c.h.b16 %v2436
    %v2530 = vunpack.c.l.b16 %v2437
    %v2531 = vunpack.c.h.b16 %v2437
    %v2532 = vunpack.c.l.b16 %v2438
    %v2533 = vunpack.c.h.b16 %v2438
    %v2534 = vunpack.c.l.b16 %v2439
    %v2535 = vunpack.c.h.b16 %v2439
    %v2536 = vpack.c.b16 %v2474, %v2472
    %v2537 = vpack.c.b16 %v2475, %v2473
    %v2538 = vpack.c.b16 %v2478, %v2476
    %v2539 = vpack.c.b16 %v2479, %v2477
    %v2540 = vpack.c.b16 %v2482, %v2480
    %v2541 = vpack.c.b16 %v2483, %v2481
    %v2542 = vpack.c.b16 %v2486, %v2484
    %v2543 = vpack.c.b16 %v2487, %v2485
    %v2544 = vpack.c.b16 %v2490, %v2488
    %v2545 = vpack.c.b16 %v2491, %v2489
    %v2546 = vpack.c.b16 %v2494, %v2492
    %v2547 = vpack.c.b16 %v2495, %v2493
    %v2548 = vpack.c.b16 %v2498, %v2496
    %v2549 = vpack.c.b16 %v2499, %v2497
    %v2550 = vpack.c.b16 %v2502, %v2500
    %v2551 = vpack.c.b16 %v2503, %v2501
    %v2552 = vpack.c.b16 %v2506, %v2504
    %v2553 = vpack.c.b16 %v2507, %v2505
    %v2554 = vpack.c.b16 %v2510, %v2508
    %v2555 = vpack.c.b16 %v2511, %v2509
    %v2556 = vpack.c.b16 %v2514, %v2512
    %v2557 = vpack.c.b16 %v2515, %v2513
    %v2558 = vpack.c.b16 %v2518, %v2516
    %v2559 = vpack.c.b16 %v2519, %v2517
    %v2560 = vpack.c.b16 %v2522, %v2520
    %v2561 = vpack.c.b16 %v2523, %v2521
    %v2562 = vpack.c.b16 %v2526, %v2524
    %v2563 = vpack.c.b16 %v2527, %v2525
    %v2564 = vpack.c.b16 %v2530, %v2528
    %v2565 = vpack.c.b16 %v2531, %v2529
    %v2566 = vpack.c.b16 %v2534, %v2532
    %v2567 = vpack.c.b16 %v2535, %v2533
    %2600 = vmatprep.subr.bf16.mxu0 %v2551
    %2601 = vmatpush1.bf16.msra.mxu0 %v2550
    %2602 = vmatprep.subr.bf16.mxu0 %v2549
    %2603 = vmatpush1.bf16.msra.mxu0 %v2548
    %2604 = vmatprep.subr.bf16.mxu0 %v2547
    %2605 = vmatpush1.bf16.msra.mxu0 %v2546
    %2606 = vmatprep.subr.bf16.mxu0 %v2545
    %2607 = vmatpush1.bf16.msra.mxu0 %v2544
    %2608 = vmatprep.subr.bf16.mxu0 %v2543
    %2609 = vmatpush1.bf16.msra.mxu0 %v2542
    %2610 = vmatprep.subr.bf16.mxu0 %v2541
    %2611 = vmatpush1.bf16.msra.mxu0 %v2540
    %2612 = vmatprep.subr.bf16.mxu0 %v2539
    %2613 = vmatpush1.bf16.msra.mxu0 %v2538
    %2614 = vmatprep.subr.bf16.mxu0 %v2537
    %2615 = vmatpush1.bf16.msra.mxu0 %v2536
    %2616 = vmatprep.subr.bf16.mxu0 %v2567
    %2617 = vmatpush2.bf16.msra.mxu0 %v2566
    %2618 = vmatprep.subr.bf16.mxu0 %v2565
    %2619 = vmatpush2.bf16.msra.mxu0 %v2564
    %2620 = vmatprep.subr.bf16.mxu0 %v2563
    %2621 = vmatpush2.bf16.msra.mxu0 %v2562
    %2622 = vmatprep.subr.bf16.mxu0 %v2561
    %2623 = vmatpush2.bf16.msra.mxu0 %v2560
    %2624 = vmatprep.subr.bf16.mxu0 %v2559
    %2625 = vmatpush2.bf16.msra.mxu0 %v2558
    %2626 = vmatprep.subr.bf16.mxu0 %v2557
    %2627 = vmatpush2.bf16.msra.mxu0 %v2556
    %2628 = vmatprep.subr.bf16.mxu0 %v2555
    %2629 = vmatpush2.bf16.msra.mxu0 %v2554
    %2630 = vmatprep.subr.bf16.mxu0 %v2553
    %2631 = vmatpush2.bf16.msra.mxu0 %v2552
    %2632 = vmatprep.mubr.bf16.mxu0 %v2393
    %2633 = vmatmul.mubr.bf16.gmra.mxu0 %v2392
    %v2634 = vpop.f32.mrf.mxu0
    %v2635 = vadd.f32 0.0, %v2634
    %v2636 = vpop.f32.mrf.mxu0
    %v2637 = vadd.f32 0.0, %v2636
    %v2638 = vpop.f32.mrf.mxu0
    %v2639 = vadd.f32 0.0, %v2638
    %v2640 = vpop.f32.mrf.mxu0
    %v2641 = vadd.f32 0.0, %v2640
    %2642 = vmatprep.mubr.bf16.mxu0 %v2395
    %2643 = vmatmul.mubr.bf16.gmra.mxu0 %v2394
    %v2644 = vpop.f32.mrf.mxu0
    %v2645 = vadd.f32 0.0, %v2644
    %v2646 = vpop.f32.mrf.mxu0
    %v2647 = vadd.f32 0.0, %v2646
    %v2648 = vpop.f32.mrf.mxu0
    %v2649 = vadd.f32 0.0, %v2648
    %v2650 = vpop.f32.mrf.mxu0
    %v2651 = vadd.f32 0.0, %v2650
    %2652 = vmatprep.mubr.bf16.mxu0 %v2397
    %2653 = vmatmul.mubr.bf16.gmra.mxu0 %v2396
    %v2654 = vpop.f32.mrf.mxu0
    %v2655 = vadd.f32 0.0, %v2654
    %v2656 = vpop.f32.mrf.mxu0
    %v2657 = vadd.f32 0.0, %v2656
    %v2658 = vpop.f32.mrf.mxu0
    %v2659 = vadd.f32 0.0, %v2658
    %v2660 = vpop.f32.mrf.mxu0
    %v2661 = vadd.f32 0.0, %v2660
    %2662 = vmatprep.mubr.bf16.mxu0 %v2399
    %2663 = vmatmul.mubr.bf16.gmra.mxu0 %v2398
    %v2664 = vpop.f32.mrf.mxu0
    %v2665 = vadd.f32 0.0, %v2664
    %v2666 = vpop.f32.mrf.mxu0
    %v2667 = vadd.f32 0.0, %v2666
    %v2668 = vpop.f32.mrf.mxu0
    %v2669 = vadd.f32 0.0, %v2668
    %v2670 = vpop.f32.mrf.mxu0
    %v2671 = vadd.f32 0.0, %v2670
    %2672 = vmatprep.mubr.bf16.mxu0 %v2401
    %2673 = vmatmul.mubr.bf16.gmra.mxu0 %v2400
    %v2674 = vpop.f32.mrf.mxu0
    %v2675 = vadd.f32 0.0, %v2674
    %v2676 = vpop.f32.mrf.mxu0
    %v2677 = vadd.f32 0.0, %v2676
    %v2678 = vpop.f32.mrf.mxu0
    %v2679 = vadd.f32 0.0, %v2678
    %v2680 = vpop.f32.mrf.mxu0
    %v2681 = vadd.f32 0.0, %v2680
    %2682 = vmatprep.mubr.bf16.mxu0 %v2403
    %2683 = vmatmul.mubr.bf16.gmra.mxu0 %v2402
    %v2684 = vpop.f32.mrf.mxu0
    %v2685 = vadd.f32 0.0, %v2684
    %v2686 = vpop.f32.mrf.mxu0
    %v2687 = vadd.f32 0.0, %v2686
    %v2688 = vpop.f32.mrf.mxu0
    %v2689 = vadd.f32 0.0, %v2688
    %v2690 = vpop.f32.mrf.mxu0
    %v2691 = vadd.f32 0.0, %v2690
    %2692 = vmatprep.mubr.bf16.mxu0 %v2405
    %2693 = vmatmul.mubr.bf16.gmra.mxu0 %v2404
    %v2694 = vpop.f32.mrf.mxu0
    %v2695 = vadd.f32 0.0, %v2694
    %v2696 = vpop.f32.mrf.mxu0
    %v2697 = vadd.f32 0.0, %v2696
    %v2698 = vpop.f32.mrf.mxu0
    %v2699 = vadd.f32 0.0, %v2698
    %v2700 = vpop.f32.mrf.mxu0
    %v2701 = vadd.f32 0.0, %v2700
    %2702 = vmatprep.mubr.bf16.mxu0 %v2407
    %2703 = vmatmul.mubr.bf16.gmra.mxu0 %v2406
    %v2704 = vpop.f32.mrf.mxu0
    %v2705 = vadd.f32 0.0, %v2704
    %v2706 = vpop.f32.mrf.mxu0
    %v2707 = vadd.f32 0.0, %v2706
    %v2708 = vpop.f32.mrf.mxu0
    %v2709 = vadd.f32 0.0, %v2708
    %v2710 = vpop.f32.mrf.mxu0
    %v2711 = vadd.f32 0.0, %v2710
    %2712 = vdwg.mxu0
    %v2713 = vld [vmem:[%s9] sm:$0x3]
    %v2715 = vlaneseq
    %v2716 = vshrl.u32 %v2715, 7
    %v2717 = vsub.s32 0, %v2716
    %v2718 = vrot.slane %v2713, %v2717
    %v2719 = vlaneseq
    %v2720 = vshrl.u32 %v2719, 7
    %v2721 = vsub.s32 1, %v2720
    %v2722 = vrot.slane %v2713, %v2721
    %v2725 = vmul.f32 %v2635, %v2718
    %v2726 = vmul.f32 %v2637, %v2722
    %v2727 = vmul.f32 %v2639, %v2718
    %v2728 = vmul.f32 %v2641, %v2722
    %v2729 = vmul.f32 %v2645, %v2718
    %v2730 = vmul.f32 %v2647, %v2722
    %v2731 = vmul.f32 %v2649, %v2718
    %v2732 = vmul.f32 %v2651, %v2722
    %v2733 = vmul.f32 %v2655, %v2718
    %v2734 = vmul.f32 %v2657, %v2722
    %v2735 = vmul.f32 %v2659, %v2718
    %v2736 = vmul.f32 %v2661, %v2722
    %v2737 = vmul.f32 %v2665, %v2718
    %v2738 = vmul.f32 %v2667, %v2722
    %v2739 = vmul.f32 %v2669, %v2718
    %v2740 = vmul.f32 %v2671, %v2722
    %v2741 = vmul.f32 %v2675, %v2718
    %v2742 = vmul.f32 %v2677, %v2722
    %v2743 = vmul.f32 %v2679, %v2718
    %v2744 = vmul.f32 %v2681, %v2722
    %v2745 = vmul.f32 %v2685, %v2718
    %v2746 = vmul.f32 %v2687, %v2722
    %v2747 = vmul.f32 %v2689, %v2718
    %v2748 = vmul.f32 %v2691, %v2722
    %v2749 = vmul.f32 %v2695, %v2718
    %v2750 = vmul.f32 %v2697, %v2722
    %v2751 = vmul.f32 %v2699, %v2718
    %v2752 = vmul.f32 %v2701, %v2722
    %v2753 = vmul.f32 %v2705, %v2718
    %v2754 = vmul.f32 %v2707, %v2722
    %v2755 = vmul.f32 %v2709, %v2718
    %v2756 = vmul.f32 %v2711, %v2722
    %v2757 = vld [vmem:[%s10] sm:$0x3]
    %v2759 = vlaneseq
    %v2760 = vshrl.u32 %v2759, 7
    %v2761 = vsub.s32 0, %v2760
    %v2762 = vrot.slane %v2757, %v2761
    %v2763 = vlaneseq
    %v2764 = vshrl.u32 %v2763, 7
    %v2765 = vsub.s32 1, %v2764
    %v2766 = vrot.slane %v2757, %v2765
    %v2769 = vadd.f32 %v2725, %v2762
    %v2770 = vadd.f32 %v2726, %v2766
    %v2771 = vadd.f32 %v2727, %v2762
    %v2772 = vadd.f32 %v2728, %v2766
    %v2773 = vadd.f32 %v2729, %v2762
    %v2774 = vadd.f32 %v2730, %v2766
    %v2775 = vadd.f32 %v2731, %v2762
    %v2776 = vadd.f32 %v2732, %v2766
    %v2777 = vadd.f32 %v2733, %v2762
    %v2778 = vadd.f32 %v2734, %v2766
    %v2779 = vadd.f32 %v2735, %v2762
    %v2780 = vadd.f32 %v2736, %v2766
    %v2781 = vadd.f32 %v2737, %v2762
    %v2782 = vadd.f32 %v2738, %v2766
    %v2783 = vadd.f32 %v2739, %v2762
    %v2784 = vadd.f32 %v2740, %v2766
    %v2785 = vadd.f32 %v2741, %v2762
    %v2786 = vadd.f32 %v2742, %v2766
    %v2787 = vadd.f32 %v2743, %v2762
    %v2788 = vadd.f32 %v2744, %v2766
    %v2789 = vadd.f32 %v2745, %v2762
    %v2790 = vadd.f32 %v2746, %v2766
    %v2791 = vadd.f32 %v2747, %v2762
    %v2792 = vadd.f32 %v2748, %v2766
    %v2793 = vadd.f32 %v2749, %v2762
    %v2794 = vadd.f32 %v2750, %v2766
    %v2795 = vadd.f32 %v2751, %v2762
    %v2796 = vadd.f32 %v2752, %v2766
    %v2797 = vadd.f32 %v2753, %v2762
    %v2798 = vadd.f32 %v2754, %v2766
    %v2799 = vadd.f32 %v2755, %v2762
    %v2800 = vadd.f32 %v2756, %v2766
    %vm2801 = vcmp.gt.f32.partialorder %v2769, 0.0
    %vm2802 = vcmp.gt.f32.partialorder %v2770, 0.0
    %vm2803 = vcmp.gt.f32.partialorder %v2771, 0.0
    %vm2804 = vcmp.gt.f32.partialorder %v2772, 0.0
    %vm2805 = vcmp.gt.f32.partialorder %v2773, 0.0
    %vm2806 = vcmp.gt.f32.partialorder %v2774, 0.0
    %vm2807 = vcmp.gt.f32.partialorder %v2775, 0.0
    %vm2808 = vcmp.gt.f32.partialorder %v2776, 0.0
    %vm2809 = vcmp.gt.f32.partialorder %v2777, 0.0
    %vm2810 = vcmp.gt.f32.partialorder %v2778, 0.0
    %vm2811 = vcmp.gt.f32.partialorder %v2779, 0.0
    %vm2812 = vcmp.gt.f32.partialorder %v2780, 0.0
    %vm2813 = vcmp.gt.f32.partialorder %v2781, 0.0
    %vm2814 = vcmp.gt.f32.partialorder %v2782, 0.0
    %vm2815 = vcmp.gt.f32.partialorder %v2783, 0.0
    %vm2816 = vcmp.gt.f32.partialorder %v2784, 0.0
    %vm2817 = vcmp.gt.f32.partialorder %v2785, 0.0
    %vm2818 = vcmp.gt.f32.partialorder %v2786, 0.0
    %vm2819 = vcmp.gt.f32.partialorder %v2787, 0.0
    %vm2820 = vcmp.gt.f32.partialorder %v2788, 0.0
    %vm2821 = vcmp.gt.f32.partialorder %v2789, 0.0
    %vm2822 = vcmp.gt.f32.partialorder %v2790, 0.0
    %vm2823 = vcmp.gt.f32.partialorder %v2791, 0.0
    %vm2824 = vcmp.gt.f32.partialorder %v2792, 0.0
    %vm2825 = vcmp.gt.f32.partialorder %v2793, 0.0
    %vm2826 = vcmp.gt.f32.partialorder %v2794, 0.0
    %vm2827 = vcmp.gt.f32.partialorder %v2795, 0.0
    %vm2828 = vcmp.gt.f32.partialorder %v2796, 0.0
    %vm2829 = vcmp.gt.f32.partialorder %v2797, 0.0
    %vm2830 = vcmp.gt.f32.partialorder %v2798, 0.0
    %vm2831 = vcmp.gt.f32.partialorder %v2799, 0.0
    %vm2832 = vcmp.gt.f32.partialorder %v2800, 0.0
    %v2833 = vmul.f32 %v2769, 0.1
    %v2834 = vmul.f32 %v2770, 0.1
    %v2835 = vmul.f32 %v2771, 0.1
    %v2836 = vmul.f32 %v2772, 0.1
    %v2837 = vmul.f32 %v2773, 0.1
    %v2838 = vmul.f32 %v2774, 0.1
    %v2839 = vmul.f32 %v2775, 0.1
    %v2840 = vmul.f32 %v2776, 0.1
    %v2841 = vmul.f32 %v2777, 0.1
    %v2842 = vmul.f32 %v2778, 0.1
    %v2843 = vmul.f32 %v2779, 0.1
    %v2844 = vmul.f32 %v2780, 0.1
    %v2845 = vmul.f32 %v2781, 0.1
    %v2846 = vmul.f32 %v2782, 0.1
    %v2847 = vmul.f32 %v2783, 0.1
    %v2848 = vmul.f32 %v2784, 0.1
    %v2849 = vmul.f32 %v2785, 0.1
    %v2850 = vmul.f32 %v2786, 0.1
    %v2851 = vmul.f32 %v2787, 0.1
    %v2852 = vmul.f32 %v2788, 0.1
    %v2853 = vmul.f32 %v2789, 0.1
    %v2854 = vmul.f32 %v2790, 0.1
    %v2855 = vmul.f32 %v2791, 0.1
    %v2856 = vmul.f32 %v2792, 0.1
    %v2857 = vmul.f32 %v2793, 0.1
    %v2858 = vmul.f32 %v2794, 0.1
    %v2859 = vmul.f32 %v2795, 0.1
    %v2860 = vmul.f32 %v2796, 0.1
    %v2861 = vmul.f32 %v2797, 0.1
    %v2862 = vmul.f32 %v2798, 0.1
    %v2863 = vmul.f32 %v2799, 0.1
    %v2864 = vmul.f32 %v2800, 0.1
    %v2865 = vsel %vm2801, %v2769, %v2833
    %v2866 = vsel %vm2802, %v2770, %v2834
    %v2867 = vsel %vm2803, %v2771, %v2835
    %v2868 = vsel %vm2804, %v2772, %v2836
    %v2869 = vsel %vm2805, %v2773, %v2837
    %v2870 = vsel %vm2806, %v2774, %v2838
    %v2871 = vsel %vm2807, %v2775, %v2839
    %v2872 = vsel %vm2808, %v2776, %v2840
    %v2873 = vsel %vm2809, %v2777, %v2841
    %v2874 = vsel %vm2810, %v2778, %v2842
    %v2875 = vsel %vm2811, %v2779, %v2843
    %v2876 = vsel %vm2812, %v2780, %v2844
    %v2877 = vsel %vm2813, %v2781, %v2845
    %v2878 = vsel %vm2814, %v2782, %v2846
    %v2879 = vsel %vm2815, %v2783, %v2847
    %v2880 = vsel %vm2816, %v2784, %v2848
    %v2881 = vsel %vm2817, %v2785, %v2849
    %v2882 = vsel %vm2818, %v2786, %v2850
    %v2883 = vsel %vm2819, %v2787, %v2851
    %v2884 = vsel %vm2820, %v2788, %v2852
    %v2885 = vsel %vm2821, %v2789, %v2853
    %v2886 = vsel %vm2822, %v2790, %v2854
    %v2887 = vsel %vm2823, %v2791, %v2855
    %v2888 = vsel %vm2824, %v2792, %v2856
    %v2889 = vsel %vm2825, %v2793, %v2857
    %v2890 = vsel %vm2826, %v2794, %v2858
    %v2891 = vsel %vm2827, %v2795, %v2859
    %v2892 = vsel %vm2828, %v2796, %v2860
    %v2893 = vsel %vm2829, %v2797, %v2861
    %v2894 = vsel %vm2830, %v2798, %v2862
    %v2895 = vsel %vm2831, %v2799, %v2863
    %v2896 = vsel %vm2832, %v2800, %v2864
    %2897 = vst [vmem:[#allocation5] sm:$0xff] %v2865
    %2898 = vst [vmem:[#allocation5 + $0x8] sm:$0xff] %v2866
    %2899 = vst [vmem:[#allocation5 + $0x10] sm:$0xff] %v2867
    %2900 = vst [vmem:[#allocation5 + $0x18] sm:$0xff] %v2868
    %2901 = vst [vmem:[#allocation5 + $0x20] sm:$0xff] %v2869
    %2902 = vst [vmem:[#allocation5 + $0x28] sm:$0xff] %v2870
    %2903 = vst [vmem:[#allocation5 + $0x30] sm:$0xff] %v2871
    %2904 = vst [vmem:[#allocation5 + $0x38] sm:$0xff] %v2872
    %2905 = vst [vmem:[#allocation5 + $0x40] sm:$0xff] %v2873
    %2906 = vst [vmem:[#allocation5 + $0x48] sm:$0xff] %v2874
    %2907 = vst [vmem:[#allocation5 + $0x50] sm:$0xff] %v2875
    %2908 = vst [vmem:[#allocation5 + $0x58] sm:$0xff] %v2876
    %2909 = vst [vmem:[#allocation5 + $0x60] sm:$0xff] %v2877
    %2910 = vst [vmem:[#allocation5 + $0x68] sm:$0xff] %v2878
    %2911 = vst [vmem:[#allocation5 + $0x70] sm:$0xff] %v2879
    %2912 = vst [vmem:[#allocation5 + $0x78] sm:$0xff] %v2880
    %2913 = vst [vmem:[#allocation5 + $0x80] sm:$0xff] %v2881
    %2914 = vst [vmem:[#allocation5 + $0x88] sm:$0xff] %v2882
    %2915 = vst [vmem:[#allocation5 + $0x90] sm:$0xff] %v2883
    %2916 = vst [vmem:[#allocation5 + $0x98] sm:$0xff] %v2884
    %2917 = vst [vmem:[#allocation5 + $0xa0] sm:$0xff] %v2885
    %2918 = vst [vmem:[#allocation5 + $0xa8] sm:$0xff] %v2886
    %2919 = vst [vmem:[#allocation5 + $0xb0] sm:$0xff] %v2887
    %2920 = vst [vmem:[#allocation5 + $0xb8] sm:$0xff] %v2888
    %2921 = vst [vmem:[#allocation5 + $0xc0] sm:$0xff] %v2889
    %2922 = vst [vmem:[#allocation5 + $0xc8] sm:$0xff] %v2890
    %2923 = vst [vmem:[#allocation5 + $0xd0] sm:$0xff] %v2891
    %2924 = vst [vmem:[#allocation5 + $0xd8] sm:$0xff] %v2892
    %2925 = vst [vmem:[#allocation5 + $0xe0] sm:$0xff] %v2893
    %2926 = vst [vmem:[#allocation5 + $0xe8] sm:$0xff] %v2894
    %2927 = vst [vmem:[#allocation5 + $0xf0] sm:$0xff] %v2895
    %2928 = vst [vmem:[#allocation5 + $0xf8] sm:$0xff] %v2896
    %v2929 = vpack.c.bf16 %v2867, %v2865
    %v2930 = vpack.c.bf16 %v2868, %v2866
    %v2931 = vpack.c.bf16 %v2871, %v2869
    %v2932 = vpack.c.bf16 %v2872, %v2870
    %v2933 = vpack.c.bf16 %v2875, %v2873
    %v2934 = vpack.c.bf16 %v2876, %v2874
    %v2935 = vpack.c.bf16 %v2879, %v2877
    %v2936 = vpack.c.bf16 %v2880, %v2878
    %v2937 = vpack.c.bf16 %v2883, %v2881
    %v2938 = vpack.c.bf16 %v2884, %v2882
    %v2939 = vpack.c.bf16 %v2887, %v2885
    %v2940 = vpack.c.bf16 %v2888, %v2886
    %v2941 = vpack.c.bf16 %v2891, %v2889
    %v2942 = vpack.c.bf16 %v2892, %v2890
    %v2943 = vpack.c.bf16 %v2895, %v2893
    %v2944 = vpack.c.bf16 %v2896, %v2894
    %v2961 = vunpack.c.l.b16 %v2929
    %v2962 = vunpack.c.l.b16 %v2930
    %v2963 = vunpack.c.h.b16 %v2929
    %v2964 = vunpack.c.h.b16 %v2930
    %v2965 = vunpack.c.l.b16 %v2931
    %v2966 = vunpack.c.l.b16 %v2932
    %v2967 = vunpack.c.h.b16 %v2931
    %v2968 = vunpack.c.h.b16 %v2932
    %v2969 = vunpack.c.l.b16 %v2933
    %v2970 = vunpack.c.l.b16 %v2934
    %v2971 = vunpack.c.h.b16 %v2933
    %v2972 = vunpack.c.h.b16 %v2934
    %v2973 = vunpack.c.l.b16 %v2935
    %v2974 = vunpack.c.l.b16 %v2936
    %v2975 = vunpack.c.h.b16 %v2935
    %v2976 = vunpack.c.h.b16 %v2936
    %v2977 = vunpack.c.l.b16 %v2937
    %v2978 = vunpack.c.l.b16 %v2938
    %v2979 = vunpack.c.h.b16 %v2937
    %v2980 = vunpack.c.h.b16 %v2938
    %v2981 = vunpack.c.l.b16 %v2939
    %v2982 = vunpack.c.l.b16 %v2940
    %v2983 = vunpack.c.h.b16 %v2939
    %v2984 = vunpack.c.h.b16 %v2940
    %v2985 = vunpack.c.l.b16 %v2941
    %v2986 = vunpack.c.l.b16 %v2942
    %v2987 = vunpack.c.h.b16 %v2941
    %v2988 = vunpack.c.h.b16 %v2942
    %v2989 = vunpack.c.l.b16 %v2943
    %v2990 = vunpack.c.l.b16 %v2944
    %v2991 = vunpack.c.h.b16 %v2943
    %v2992 = vunpack.c.h.b16 %v2944
    %v2993 = vpack.c.b16 %v2962, %v2961
    %v2994 = vpack.c.b16 %v2964, %v2963
    %v2995 = vpack.c.b16 %v2966, %v2965
    %v2996 = vpack.c.b16 %v2968, %v2967
    %v2997 = vpack.c.b16 %v2970, %v2969
    %v2998 = vpack.c.b16 %v2972, %v2971
    %v2999 = vpack.c.b16 %v2974, %v2973
    %v3000 = vpack.c.b16 %v2976, %v2975
    %v3001 = vpack.c.b16 %v2978, %v2977
    %v3002 = vpack.c.b16 %v2980, %v2979
    %v3003 = vpack.c.b16 %v2982, %v2981
    %v3004 = vpack.c.b16 %v2984, %v2983
    %v3005 = vpack.c.b16 %v2986, %v2985
    %v3006 = vpack.c.b16 %v2988, %v2987
    %v3007 = vpack.c.b16 %v2990, %v2989
    %v3008 = vpack.c.b16 %v2992, %v2991
    %3025 = vst [vmem:[%s14] sm:$0xff] %v2993
    %3026 = vst [vmem:[%s14 + $0x8] sm:$0xff] %v2994
    %3027 = vst [vmem:[%s14 + $0x10] sm:$0xff] %v2995
    %3028 = vst [vmem:[%s14 + $0x18] sm:$0xff] %v2996
    %3029 = vst [vmem:[%s14 + $0x20] sm:$0xff] %v2997
    %3030 = vst [vmem:[%s14 + $0x28] sm:$0xff] %v2998
    %3031 = vst [vmem:[%s14 + $0x30] sm:$0xff] %v2999
    %3032 = vst [vmem:[%s14 + $0x38] sm:$0xff] %v3000
    %3033 = vst [vmem:[%s14 + $0x40] sm:$0xff] %v3001
    %3034 = vst [vmem:[%s14 + $0x48] sm:$0xff] %v3002
    %3035 = vst [vmem:[%s14 + $0x50] sm:$0xff] %v3003
    %3036 = vst [vmem:[%s14 + $0x58] sm:$0xff] %v3004
    %3037 = vst [vmem:[%s14 + $0x60] sm:$0xff] %v3005
    %3038 = vst [vmem:[%s14 + $0x68] sm:$0xff] %v3006
    %3039 = vst [vmem:[%s14 + $0x70] sm:$0xff] %v3007
    %3040 = vst [vmem:[%s14 + $0x78] sm:$0xff] %v3008
    // Predicated region
    $region54: #{fpn_forward.2} parent=1 // pred_check
      _
    $region55: #{fpn_forward.2} parent=1 // pred_check_branch
      %3042 = sbr.rel (0) target = $region57
    $region56: #{fpn_forward.2} parent=1 // pred_region
      _
    $region57: #{fpn_forward.2} parent=1 // pred_fallthru
      _
    // Predicated region
    $region58: #{fpn_forward.2} parent=1 // pred_check
      _
    $region59: #{fpn_forward.2} parent=1 // pred_check_branch
      %3044 = sbr.rel (0) target = $region61
    $region60: #{fpn_forward.2} parent=1 // pred_region
      %s3046 = ssub.s32 4096, 4096
      %3047 = vsyncadd [#allocation4], %s3046
      %s3048 = sshll.u32 [#allocation5], 4
      %s3049 = int_to_ptr.vmem [resolvable:$true] %s3048
      %3054 = dma.vmem_to_hbm [thread:$0]  %s3049, 4096, %s13, [#allocation4], 256, 256, 16
    $region61: #{fpn_forward.2} parent=1 // pred_fallthru
      _
    // Predicated region
    $region62: #{fpn_forward.2} parent=1 // pred_check
      _
    $region63: #{fpn_forward.2} parent=1 // pred_check_branch
      %3056 = sbr.rel (0) target = $region65
    $region64: #{fpn_forward.2} parent=1 // pred_region
      _
    $region65: #{fpn_forward.2} parent=1 // pred_fallthru
      _
    // Predicated region
    $region66: #{fpn_forward.2} parent=1 // pred_check
      _
    $region67: #{fpn_forward.2} parent=1 // pred_check_branch
      %3058 = sbr.rel (0) target = $region69
    $region68: #{fpn_forward.2} parent=1 // pred_region
      _
    $region69: #{fpn_forward.2} parent=1 // pred_fallthru
      _
    // Predicated region
    $region70: #{fpn_forward.2} parent=1 // pred_check
      _
    $region71: #{fpn_forward.2} parent=1 // pred_check_branch
      %3060 = sbr.rel (0) target = $region73
    $region72: #{fpn_forward.2} parent=1 // pred_region
      %3061 = dma.done [#allocation4], 4096
    $region73: #{fpn_forward.2} parent=1 // pred_fallthru
      _
    // Predicated region
    $region74: #{fpn_forward.2} parent=1 // pred_check
      _
    $region75: #{fpn_forward.2} parent=1 // pred_check_branch
      %3063 = sbr.rel (0) target = $region77
    $region76: #{fpn_forward.2} parent=1 // pred_region
      _
    $region77: #{fpn_forward.2} parent=1 // pred_fallthru
      _
    %3064 = vsyncpa [#allocation3], 1
    %3065 = vsyncpa [#allocation4], 1

</llo_original>
